<compile_context>
chip_gen: v7x
topology: tpu7x:2x2x1
jax: 0.10.0
libtpu: 0.0.40
codegen_flags: <defaults>
</compile_context>

<pallas_src>
import jax
import jax.numpy as jnp
from jax.experimental import pallas as pl
from jax.experimental.pallas import tpu as pltpu

EPS = 1e-5
NEG_SLOPE = 0.1
LANE = 128
SUBLANE = 8
MAX_ROW_TILE = 256                 # rows per tile: fits v7x (64 MiB VMEM) comfortably
VMEM_LIMIT = 32 * 1024 * 1024      # raise v5e's 16 MiB scoped default; safe on v6e/v7x


def _round_up(x, m):
    return (x + m - 1) // m * m


def _cbl_block_impl(x, weight, bias, gamma, beta):
    """Conv1d(padding=K//2) -> BatchNorm1d (training batch stats) -> LeakyReLU(0.1).

    x: (B, Cin, L) float32 (PyTorch NCW).  Returns (B, Cout, L) float32.
    The Conv1d bias is accepted but never added: training-mode BatchNorm subtracts
    the per-channel batch mean right after, which cancels it exactly.
    """
    del bias  # exactly cancelled by the BN mean subtraction below
    B, Cin, L = x.shape
    Cout, _, K = weight.shape
    pad = K // 2
    Lout = L + 2 * pad - K + 1                      # == L for odd K

    # ---- static tiling parameters -------------------------------------------
    Cpad = _round_up(Cout, LANE)                    # lane-dense channels (30 -> 128)
    F = K * Cin                                     # flattened conv taps
    TL = min(MAX_ROW_TILE, _round_up(Lout, SUBLANE))
    Lpad = _round_up(Lout, TL)
    nL = Lpad // TL
    halo = _round_up(K - 1, SUBLANE)                # extra input rows a tile reaches into
    Lp_total = Lpad + halo                          # padded-input rows (left pad + data + zeros)

    # ---- glue (fused under jit): layout + zero padding only ------------------
    x_lc = jnp.transpose(x, (0, 2, 1))                               # (B, L, Cin)
    xp = jnp.pad(x_lc, ((0, 0), (pad, Lp_total - L - pad), (0, 0)))  # (B, Lp_total, Cin)
    # flatten weight so patch column k*Cin + ci multiplies weight[co, ci, k]
    w_flat = jnp.transpose(weight, (2, 1, 0)).reshape(F, Cout)
    w_pad = jnp.pad(w_flat, ((0, 0), (0, Cpad - Cout)))              # (F, Cpad)
    gamma_p = jnp.pad(gamma, (0, Cpad - Cout))
    beta_p = jnp.pad(beta, (0, Cpad - Cout))

    # ==========================================================================
    # Pass 1: per-tile conv matmul + per-channel sum / sum-of-squares.
    # Patches are built in VMEM from the resident padded input (no K x im2col
    # traffic to HBM).  Stats accumulate into a per-batch output block that is
    # revisited along the 'arbitrary' L-tile axis; batch axis is 'parallel'.
    # ==========================================================================
    def conv_stats_kernel(x_ref, w_ref, y_ref, sum_ref, ssq_ref, p_scr):
        i = pl.program_id(1)
        start = pl.multiple_of(i * TL, SUBLANE)
        # scatter K shifted taps of the padded input into the (TL, F) patch scratch
        for k in range(K):                                   # static unroll
            p_scr[:, k * Cin:(k + 1) * Cin] = x_ref[0, pl.ds(start + k, TL), :]
        # one lane-dense MXU matmul per tile (bf16 inputs would be a further
        # v6e/v7x win if small numeric drift vs f32 is acceptable)
        y = jnp.dot(p_scr[...], w_ref[...], preferred_element_type=jnp.float32)

        # mask rows past the true output length (only possible in the last tile)
        rid = jax.lax.broadcasted_iota(jnp.int32, (TL, 1), 0)
        ym = jnp.where(rid < (Lout - i * TL), y, 0.0)

        @pl.when(i == 0)
        def _init():
            sum_ref[...] = jnp.zeros_like(sum_ref)
            ssq_ref[...] = jnp.zeros_like(ssq_ref)

        sum_ref[...] += jnp.sum(ym, axis=0)[None, None, :]
        ssq_ref[...] += jnp.sum(ym * ym, axis=0)[None, None, :]
        y_ref[...] = y[None].astype(y_ref.dtype)

    y_full, psum, psq = pl.pallas_call(
        conv_stats_kernel,
        grid=(B, nL),
        in_specs=(
            pl.BlockSpec((1, Lp_total, Cin), lambda b, i: (b, 0, 0)),  # resident per-batch input
            pl.BlockSpec((F, Cpad), lambda b, i: (0, 0)),              # resident weights
        ),
        out_specs=(
            pl.BlockSpec((1, TL, Cpad), lambda b, i: (b, i, 0)),
            pl.BlockSpec((1, 1, Cpad), lambda b, i: (b, 0, 0)),
            pl.BlockSpec((1, 1, Cpad), lambda b, i: (b, 0, 0)),
        ),
        out_shape=(
            jax.ShapeDtypeStruct((B, Lpad, Cpad), jnp.float32),
            jax.ShapeDtypeStruct((B, 1, Cpad), jnp.float32),
            jax.ShapeDtypeStruct((B, 1, Cpad), jnp.float32),
        ),
        scratch_shapes=[pltpu.VMEM((TL, F), jnp.float32)],
        compiler_params=pltpu.CompilerParams(
            dimension_semantics=("parallel", "arbitrary"),
            vmem_limit_bytes=VMEM_LIMIT),
    )(xp, w_pad)

    # ---- fold BN into one per-channel scale/shift (tiny (1, Cpad) math) -------
    count = B * Lout
    ssum = jnp.sum(psum, axis=0)                         # (1, Cpad)
    ssq = jnp.sum(psq, axis=0)                           # (1, Cpad)
    mean = ssum / count
    var = jnp.maximum(ssq / count - mean * mean, 0.0)    # biased variance (BN training mode)
    scale = gamma_p[None, :] * jax.lax.rsqrt(var + EPS)
    shift = beta_p[None, :] - mean * scale

    # ==========================================================================
    # Pass 2: single FMA (y*scale + shift) + LeakyReLU, fully parallel tiles.
    # ==========================================================================
    def bn_lrelu_kernel(y_ref, sc_ref, sh_ref, o_ref):
        z = y_ref[...] * sc_ref[...] + sh_ref[...]
        o_ref[...] = jnp.where(z > 0, z, NEG_SLOPE * z).astype(o_ref.dtype)

    out2 = pl.pallas_call(
        bn_lrelu_kernel,
        grid=(B * nL,),
        in_specs=(
            pl.BlockSpec((TL, Cpad), lambda m: (m, 0)),
            pl.BlockSpec((1, Cpad), lambda m: (0, 0)),
            pl.BlockSpec((1, Cpad), lambda m: (0, 0)),
        ),
        out_specs=pl.BlockSpec((TL, Cpad), lambda m: (m, 0)),
        out_shape=jax.ShapeDtypeStruct((B * Lpad, Cpad), x.dtype),
        compiler_params=pltpu.CompilerParams(
            dimension_semantics=("parallel",),
            vmem_limit_bytes=VMEM_LIMIT),
    )(y_full.reshape(B * Lpad, Cpad), scale, shift)

    # back to PyTorch NCW layout; drop channel / row padding.
    # (If downstream accepted NLC, this transpose could be skipped entirely.)
    out = out2.reshape(B, Lpad, Cpad)[:, :Lout, :Cout]
    return jnp.transpose(out, (0, 2, 1))


cbl_block = jax.jit(_cbl_block_impl)


def cbl_reference(x, weight, bias, gamma, beta):
    """Pure-JAX reference: Conv1d -> BatchNorm1d(training stats) -> LeakyReLU."""
    K = weight.shape[-1]
    pad = K // 2
    y = jax.lax.conv_general_dilated(
        x, weight, window_strides=(1,), padding=[(pad, pad)],
        dimension_numbers=("NCH", "OIH", "NCH"))
    y = y + bias[None, :, None]
    mean = jnp.mean(y, axis=(0, 2), keepdims=True)
    var = jnp.mean((y - mean) ** 2, axis=(0, 2), keepdims=True)
    y = (y - mean) * jax.lax.rsqrt(var + EPS) * gamma[None, :, None] + beta[None, :, None]
    return jnp.where(y > 0, y, NEG_SLOPE * y)


if __name__ == "__main__":
    B, Cin, L = 2, 1, 64
    Cout, K = 30, 55

    key = jax.random.PRNGKey(0)
    kx, kw, kb = jax.random.split(key, 3)

    x = jax.random.normal(kx, (B, Cin, L), jnp.float32)

    # Deterministic parameter init (mirrors PyTorch Conv1d default U(-1/sqrt(fan_in), ...))
    bound = 1.0 / (Cin * K) ** 0.5
    weight = jax.random.uniform(kw, (Cout, Cin, K), jnp.float32, -bound, bound)
    bias = jax.random.uniform(kb, (Cout,), jnp.float32, -bound, bound)
    gamma = jnp.ones((Cout,), jnp.float32)   # BatchNorm weight init
    beta = jnp.zeros((Cout,), jnp.float32)   # BatchNorm bias init

    y = jax.block_until_ready(cbl_block(x, weight, bias, gamma, beta))
    assert y.shape == (B, Cout, L), y.shape
    assert y.dtype == jnp.float32

    y_ref = jax.block_until_ready(cbl_reference(x, weight, bias, gamma, beta))
    err = float(jnp.max(jnp.abs(y - y_ref)))
    assert jnp.allclose(y, y_ref, atol=1e-3, rtol=1e-3), f"max abs err {err}"

    print("KERNEL_OK")
</pallas_src>

<mosaic_0001>
module attributes {stable_mosaic.version = 11 : i64} {
  func.func @bn_lrelu_kernel(%arg0: i32, %arg1: memref<64x128xf32, #tpu.memory_space<vmem>>, %arg2: memref<1x128xf32, #tpu.memory_space<vmem>>, %arg3: memref<1x128xf32, #tpu.memory_space<vmem>>, %arg4: memref<64x128xf32, #tpu.memory_space<vmem>>) attributes {dimension_semantics = [#tpu.dimension_semantics<parallel>], iteration_bounds = array<i64: 2>, scalar_prefetch = 0 : i64, scratch_operands = 0 : i64, tpu.core_type = #tpu.core_type<tc>, window_params = [{transform_indices = @transform_0, window_bounds = array<i64: 64, 128>}, {pipeline_mode = #tpu.pipeline_mode<synchronous>, transform_indices = @transform_1, window_bounds = array<i64: 1, 128>}, {pipeline_mode = #tpu.pipeline_mode<synchronous>, transform_indices = @transform_2, window_bounds = array<i64: 1, 128>}, {transform_indices = @transform_3, window_bounds = array<i64: 64, 128>}]} {
    %c0 = arith.constant 0 : index
    %c0_0 = arith.constant 0 : index
    %0 = vector.load %arg1[%c0, %c0_0] : memref<64x128xf32, #tpu.memory_space<vmem>>, vector<64x128xf32>
    %c0_1 = arith.constant 0 : index
    %c0_2 = arith.constant 0 : index
    %1 = vector.load %arg2[%c0_1, %c0_2] : memref<1x128xf32, #tpu.memory_space<vmem>>, vector<1x128xf32>
    %2 = vector.broadcast %1 : vector<1x128xf32> to vector<64x128xf32>
    %3 = arith.mulf %0, %2 : vector<64x128xf32>
    %c0_3 = arith.constant 0 : index
    %c0_4 = arith.constant 0 : index
    %4 = vector.load %arg3[%c0_3, %c0_4] : memref<1x128xf32, #tpu.memory_space<vmem>>, vector<1x128xf32>
    %5 = vector.broadcast %4 : vector<1x128xf32> to vector<64x128xf32>
    %6 = arith.addf %3, %5 : vector<64x128xf32>
    %cst = arith.constant 0.000000e+00 : f32
    %7 = vector.broadcast %cst : f32 to vector<64x128xf32>
    %8 = arith.cmpf ogt, %6, %7 : vector<64x128xf32>
    %cst_5 = arith.constant 1.000000e-01 : f32
    %9 = vector.broadcast %cst_5 : f32 to vector<64x128xf32>
    %10 = arith.mulf %9, %6 : vector<64x128xf32>
    %11 = arith.select %8, %6, %10 : vector<64x128xi1>, vector<64x128xf32>
    %c0_6 = arith.constant 0 : index
    %c0_7 = arith.constant 0 : index
    %12 = vector.load %arg4[%c0_6, %c0_7] : memref<64x128xf32, #tpu.memory_space<vmem>>, vector<64x128xf32>
    tpu.vector_store %arg4[%c0_6, %c0_7], %11 {strides = array<i32>} : memref<64x128xf32, #tpu.memory_space<vmem>>, vector<64x128xf32>,
    return
  }
  func.func @transform_0(%arg0: i32) -> (i32, i32) {
    %c0_i32 = arith.constant 0 : i32
    %c0_i32_0 = arith.constant 0 : i32
    return %arg0, %c0_i32 : i32, i32
  }
  func.func @transform_1(%arg0: i32) -> (i32, i32) {
    %c0_i32 = arith.constant 0 : i32
    %c0_i32_0 = arith.constant 0 : i32
    %c0_i32_1 = arith.constant 0 : i32
    return %c0_i32, %c0_i32_0 : i32, i32
  }
  func.func @transform_2(%arg0: i32) -> (i32, i32) {
    %c0_i32 = arith.constant 0 : i32
    %c0_i32_0 = arith.constant 0 : i32
    %c0_i32_1 = arith.constant 0 : i32
    return %c0_i32, %c0_i32_0 : i32, i32
  }
  func.func @transform_3(%arg0: i32) -> (i32, i32) {
    %c0_i32 = arith.constant 0 : i32
    %c0_i32_0 = arith.constant 0 : i32
    return %arg0, %c0_i32 : i32, i32
  }
}

module attributes {stable_mosaic.version = 11 : i64} {
  func.func @conv_stats_kernel(%arg0: i32, %arg1: i32, %arg2: memref<1x120x1xf32, #tpu.memory_space<vmem>>, %arg3: memref<55x128xf32, #tpu.memory_space<vmem>>, %arg4: memref<1x64x128xf32, #tpu.memory_space<vmem>>, %arg5: memref<1x1x128xf32, #tpu.memory_space<vmem>>, %arg6: memref<1x1x128xf32, #tpu.memory_space<vmem>>, %arg7: memref<64x55xf32, #tpu.memory_space<vmem>>) attributes {dimension_semantics = [#tpu.dimension_semantics<parallel>, #tpu.dimension_semantics<arbitrary>], iteration_bounds = array<i64: 2, 1>, scalar_prefetch = 0 : i64, scratch_operands = 1 : i64, tpu.core_type = #tpu.core_type<tc>, window_params = [{transform_indices = @transform_0, window_bounds = array<i64: 1, 120, 1>}, {pipeline_mode = #tpu.pipeline_mode<synchronous>, transform_indices = @transform_1, window_bounds = array<i64: 55, 128>}, {transform_indices = @transform_2, window_bounds = array<i64: 1, 64, 128>}, {transform_indices = @transform_3, window_bounds = array<i64: 1, 1, 128>}, {transform_indices = @transform_4, window_bounds = array<i64: 1, 1, 128>}]} {
    %c64_i32 = arith.constant 64 : i32
    %0 = arith.muli %arg1, %c64_i32 : i32
    %1 = tpu.assume_multiple %0, 8 : i32
    %c0_i32 = arith.constant 0 : i32
    %2 = arith.addi %1, %c0_i32 : i32
    %c0 = arith.constant 0 : index
    %3 = arith.index_cast %2 : i32 to index
    %c0_0 = arith.constant 0 : index
    %4 = vector.load %arg2[%c0, %3, %c0_0] : memref<1x120x1xf32, #tpu.memory_space<vmem>>, vector<1x64x1xf32>
    %5 = vector.shape_cast %4 : vector<1x64x1xf32> to vector<64x1xf32>
    %c0_1 = arith.constant 0 : index
    %c0_2 = arith.constant 0 : index
    %6 = vector.load %arg7[%c0_1, %c0_2] : memref<64x55xf32, #tpu.memory_space<vmem>>, vector<64x1xf32>
    tpu.vector_store %arg7[%c0_1, %c0_2], %5 {strides = array<i32>} : memref<64x55xf32, #tpu.memory_space<vmem>>, vector<64x1xf32>,
    %c1_i32 = arith.constant 1 : i32
    %7 = arith.addi %1, %c1_i32 : i32
    %c0_3 = arith.constant 0 : index
    %8 = arith.index_cast %7 : i32 to index
    %c0_4 = arith.constant 0 : index
    %9 = vector.load %arg2[%c0_3, %8, %c0_4] : memref<1x120x1xf32, #tpu.memory_space<vmem>>, vector<1x64x1xf32>
    %10 = vector.shape_cast %9 : vector<1x64x1xf32> to vector<64x1xf32>
    %c0_5 = arith.constant 0 : index
    %c1 = arith.constant 1 : index
    %11 = vector.load %arg7[%c0_5, %c1] : memref<64x55xf32, #tpu.memory_space<vmem>>, vector<64x1xf32>
    tpu.vector_store %arg7[%c0_5, %c1], %10 {strides = array<i32>} : memref<64x55xf32, #tpu.memory_space<vmem>>, vector<64x1xf32>,
    %c2_i32 = arith.constant 2 : i32
    %12 = arith.addi %1, %c2_i32 : i32
    %c0_6 = arith.constant 0 : index
    %13 = arith.index_cast %12 : i32 to index
    %c0_7 = arith.constant 0 : index
    %14 = vector.load %arg2[%c0_6, %13, %c0_7] : memref<1x120x1xf32, #tpu.memory_space<vmem>>, vector<1x64x1xf32>
    %15 = vector.shape_cast %14 : vector<1x64x1xf32> to vector<64x1xf32>
    %c0_8 = arith.constant 0 : index
    %c2 = arith.constant 2 : index
    %16 = vector.load %arg7[%c0_8, %c2] : memref<64x55xf32, #tpu.memory_space<vmem>>, vector<64x1xf32>
    tpu.vector_store %arg7[%c0_8, %c2], %15 {strides = array<i32>} : memref<64x55xf32, #tpu.memory_space<vmem>>, vector<64x1xf32>,
    %c3_i32 = arith.constant 3 : i32
    %17 = arith.addi %1, %c3_i32 : i32
    %c0_9 = arith.constant 0 : index
    %18 = arith.index_cast %17 : i32 to index
    %c0_10 = arith.constant 0 : index
    %19 = vector.load %arg2[%c0_9, %18, %c0_10] : memref<1x120x1xf32, #tpu.memory_space<vmem>>, vector<1x64x1xf32>
    %20 = vector.shape_cast %19 : vector<1x64x1xf32> to vector<64x1xf32>
    %c0_11 = arith.constant 0 : index
    %c3 = arith.constant 3 : index
    %21 = vector.load %arg7[%c0_11, %c3] : memref<64x55xf32, #tpu.memory_space<vmem>>, vector<64x1xf32>
    tpu.vector_store %arg7[%c0_11, %c3], %20 {strides = array<i32>} : memref<64x55xf32, #tpu.memory_space<vmem>>, vector<64x1xf32>,
    %c4_i32 = arith.constant 4 : i32
    %22 = arith.addi %1, %c4_i32 : i32
    %c0_12 = arith.constant 0 : index
    %23 = arith.index_cast %22 : i32 to index
    %c0_13 = arith.constant 0 : index
    %24 = vector.load %arg2[%c0_12, %23, %c0_13] : memref<1x120x1xf32, #tpu.memory_space<vmem>>, vector<1x64x1xf32>
    %25 = vector.shape_cast %24 : vector<1x64x1xf32> to vector<64x1xf32>
    %c0_14 = arith.constant 0 : index
    %c4 = arith.constant 4 : index
    %26 = vector.load %arg7[%c0_14, %c4] : memref<64x55xf32, #tpu.memory_space<vmem>>, vector<64x1xf32>
    tpu.vector_store %arg7[%c0_14, %c4], %25 {strides = array<i32>} : memref<64x55xf32, #tpu.memory_space<vmem>>, vector<64x1xf32>,
    %c5_i32 = arith.constant 5 : i32
    %27 = arith.addi %1, %c5_i32 : i32
    %c0_15 = arith.constant 0 : index
    %28 = arith.index_cast %27 : i32 to index
    %c0_16 = arith.constant 0 : index
    %29 = vector.load %arg2[%c0_15, %28, %c0_16] : memref<1x120x1xf32, #tpu.memory_space<vmem>>, vector<1x64x1xf32>
    %30 = vector.shape_cast %29 : vector<1x64x1xf32> to vector<64x1xf32>
    %c0_17 = arith.constant 0 : index
    %c5 = arith.constant 5 : index
    %31 = vector.load %arg7[%c0_17, %c5] : memref<64x55xf32, #tpu.memory_space<vmem>>, vector<64x1xf32>
    tpu.vector_store %arg7[%c0_17, %c5], %30 {strides = array<i32>} : memref<64x55xf32, #tpu.memory_space<vmem>>, vector<64x1xf32>,
    %c6_i32 = arith.constant 6 : i32
    %32 = arith.addi %1, %c6_i32 : i32
    %c0_18 = arith.constant 0 : index
    %33 = arith.index_cast %32 : i32 to index
    %c0_19 = arith.constant 0 : index
    %34 = vector.load %arg2[%c0_18, %33, %c0_19] : memref<1x120x1xf32, #tpu.memory_space<vmem>>, vector<1x64x1xf32>
    %35 = vector.shape_cast %34 : vector<1x64x1xf32> to vector<64x1xf32>
    %c0_20 = arith.constant 0 : index
    %c6 = arith.constant 6 : index
    %36 = vector.load %arg7[%c0_20, %c6] : memref<64x55xf32, #tpu.memory_space<vmem>>, vector<64x1xf32>
    tpu.vector_store %arg7[%c0_20, %c6], %35 {strides = array<i32>} : memref<64x55xf32, #tpu.memory_space<vmem>>, vector<64x1xf32>,
    %c7_i32 = arith.constant 7 : i32
    %37 = arith.addi %1, %c7_i32 : i32
    %c0_21 = arith.constant 0 : index
    %38 = arith.index_cast %37 : i32 to index
    %c0_22 = arith.constant 0 : index
    %39 = vector.load %arg2[%c0_21, %38, %c0_22] : memref<1x120x1xf32, #tpu.memory_space<vmem>>, vector<1x64x1xf32>
    %40 = vector.shape_cast %39 : vector<1x64x1xf32> to vector<64x1xf32>
    %c0_23 = arith.constant 0 : index
    %c7 = arith.constant 7 : index
    %41 = vector.load %arg7[%c0_23, %c7] : memref<64x55xf32, #tpu.memory_space<vmem>>, vector<64x1xf32>
    tpu.vector_store %arg7[%c0_23, %c7], %40 {strides = array<i32>} : memref<64x55xf32, #tpu.memory_space<vmem>>, vector<64x1xf32>,
    %c8_i32 = arith.constant 8 : i32
    %42 = arith.addi %1, %c8_i32 : i32
    %c0_24 = arith.constant 0 : index
    %43 = arith.index_cast %42 : i32 to index
    %c0_25 = arith.constant 0 : index
    %44 = vector.load %arg2[%c0_24, %43, %c0_25] : memref<1x120x1xf32, #tpu.memory_space<vmem>>, vector<1x64x1xf32>
    %45 = vector.shape_cast %44 : vector<1x64x1xf32> to vector<64x1xf32>
    %c0_26 = arith.constant 0 : index
    %c8 = arith.constant 8 : index
    %46 = vector.load %arg7[%c0_26, %c8] : memref<64x55xf32, #tpu.memory_space<vmem>>, vector<64x1xf32>
    tpu.vector_store %arg7[%c0_26, %c8], %45 {strides = array<i32>} : memref<64x55xf32, #tpu.memory_space<vmem>>, vector<64x1xf32>,
    %c9_i32 = arith.constant 9 : i32
    %47 = arith.addi %1, %c9_i32 : i32
    %c0_27 = arith.constant 0 : index
    %48 = arith.index_cast %47 : i32 to index
    %c0_28 = arith.constant 0 : index
    %49 = vector.load %arg2[%c0_27, %48, %c0_28] : memref<1x120x1xf32, #tpu.memory_space<vmem>>, vector<1x64x1xf32>
    %50 = vector.shape_cast %49 : vector<1x64x1xf32> to vector<64x1xf32>
    %c0_29 = arith.constant 0 : index
    %c9 = arith.constant 9 : index
    %51 = vector.load %arg7[%c0_29, %c9] : memref<64x55xf32, #tpu.memory_space<vmem>>, vector<64x1xf32>
    tpu.vector_store %arg7[%c0_29, %c9], %50 {strides = array<i32>} : memref<64x55xf32, #tpu.memory_space<vmem>>, vector<64x1xf32>,
    %c10_i32 = arith.constant 10 : i32
    %52 = arith.addi %1, %c10_i32 : i32
    %c0_30 = arith.constant 0 : index
    %53 = arith.index_cast %52 : i32 to index
    %c0_31 = arith.constant 0 : index
    %54 = vector.load %arg2[%c0_30, %53, %c0_31] : memref<1x120x1xf32, #tpu.memory_space<vmem>>, vector<1x64x1xf32>
    %55 = vector.shape_cast %54 : vector<1x64x1xf32> to vector<64x1xf32>
    %c0_32 = arith.constant 0 : index
    %c10 = arith.constant 10 : index
    %56 = vector.load %arg7[%c0_32, %c10] : memref<64x55xf32, #tpu.memory_space<vmem>>, vector<64x1xf32>
    tpu.vector_store %arg7[%c0_32, %c10], %55 {strides = array<i32>} : memref<64x55xf32, #tpu.memory_space<vmem>>, vector<64x1xf32>,
    %c11_i32 = arith.constant 11 : i32
    %57 = arith.addi %1, %c11_i32 : i32
    %c0_33 = arith.constant 0 : index
    %58 = arith.index_cast %57 : i32 to index
    %c0_34 = arith.constant 0 : index
    %59 = vector.load %arg2[%c0_33, %58, %c0_34] : memref<1x120x1xf32, #tpu.memory_space<vmem>>, vector<1x64x1xf32>
    %60 = vector.shape_cast %59 : vector<1x64x1xf32> to vector<64x1xf32>
    %c0_35 = arith.constant 0 : index
    %c11 = arith.constant 11 : index
    %61 = vector.load %arg7[%c0_35, %c11] : memref<64x55xf32, #tpu.memory_space<vmem>>, vector<64x1xf32>
    tpu.vector_store %arg7[%c0_35, %c11], %60 {strides = array<i32>} : memref<64x55xf32, #tpu.memory_space<vmem>>, vector<64x1xf32>,
    %c12_i32 = arith.constant 12 : i32
    %62 = arith.addi %1, %c12_i32 : i32
    %c0_36 = arith.constant 0 : index
    %63 = arith.index_cast %62 : i32 to index
    %c0_37 = arith.constant 0 : index
    %64 = vector.load %arg2[%c0_36, %63, %c0_37] : memref<1x120x1xf32, #tpu.memory_space<vmem>>, vector<1x64x1xf32>
    %65 = vector.shape_cast %64 : vector<1x64x1xf32> to vector<64x1xf32>
    %c0_38 = arith.constant 0 : index
    %c12 = arith.constant 12 : index
    %66 = vector.load %arg7[%c0_38, %c12] : memref<64x55xf32, #tpu.memory_space<vmem>>, vector<64x1xf32>
    tpu.vector_store %arg7[%c0_38, %c12], %65 {strides = array<i32>} : memref<64x55xf32, #tpu.memory_space<vmem>>, vector<64x1xf32>,
    %c13_i32 = arith.constant 13 : i32
    %67 = arith.addi %1, %c13_i32 : i32
    %c0_39 = arith.constant 0 : index
    %68 = arith.index_cast %67 : i32 to index
    %c0_40 = arith.constant 0 : index
    %69 = vector.load %arg2[%c0_39, %68, %c0_40] : memref<1x120x1xf32, #tpu.memory_space<vmem>>, vector<1x64x1xf32>
    %70 = vector.shape_cast %69 : vector<1x64x1xf32> to vector<64x1xf32>
    %c0_41 = arith.constant 0 : index
    %c13 = arith.constant 13 : index
    %71 = vector.load %arg7[%c0_41, %c13] : memref<64x55xf32, #tpu.memory_space<vmem>>, vector<64x1xf32>
    tpu.vector_store %arg7[%c0_41, %c13], %70 {strides = array<i32>} : memref<64x55xf32, #tpu.memory_space<vmem>>, vector<64x1xf32>,
    %c14_i32 = arith.constant 14 : i32
    %72 = arith.addi %1, %c14_i32 : i32
    %c0_42 = arith.constant 0 : index
    %73 = arith.index_cast %72 : i32 to index
    %c0_43 = arith.constant 0 : index
    %74 = vector.load %arg2[%c0_42, %73, %c0_43] : memref<1x120x1xf32, #tpu.memory_space<vmem>>, vector<1x64x1xf32>
    %75 = vector.shape_cast %74 : vector<1x64x1xf32> to vector<64x1xf32>
    %c0_44 = arith.constant 0 : index
    %c14 = arith.constant 14 : index
    %76 = vector.load %arg7[%c0_44, %c14] : memref<64x55xf32, #tpu.memory_space<vmem>>, vector<64x1xf32>
    tpu.vector_store %arg7[%c0_44, %c14], %75 {strides = array<i32>} : memref<64x55xf32, #tpu.memory_space<vmem>>, vector<64x1xf32>,
    %c15_i32 = arith.constant 15 : i32
    %77 = arith.addi %1, %c15_i32 : i32
    %c0_45 = arith.constant 0 : index
    %78 = arith.index_cast %77 : i32 to index
    %c0_46 = arith.constant 0 : index
    %79 = vector.load %arg2[%c0_45, %78, %c0_46] : memref<1x120x1xf32, #tpu.memory_space<vmem>>, vector<1x64x1xf32>
    %80 = vector.shape_cast %79 : vector<1x64x1xf32> to vector<64x1xf32>
    %c0_47 = arith.constant 0 : index
    %c15 = arith.constant 15 : index
    %81 = vector.load %arg7[%c0_47, %c15] : memref<64x55xf32, #tpu.memory_space<vmem>>, vector<64x1xf32>
    tpu.vector_store %arg7[%c0_47, %c15], %80 {strides = array<i32>} : memref<64x55xf32, #tpu.memory_space<vmem>>, vector<64x1xf32>,
    %c16_i32 = arith.constant 16 : i32
    %82 = arith.addi %1, %c16_i32 : i32
    %c0_48 = arith.constant 0 : index
    %83 = arith.index_cast %82 : i32 to index
    %c0_49 = arith.constant 0 : index
    %84 = vector.load %arg2[%c0_48, %83, %c0_49] : memref<1x120x1xf32, #tpu.memory_space<vmem>>, vector<1x64x1xf32>
    %85 = vector.shape_cast %84 : vector<1x64x1xf32> to vector<64x1xf32>
    %c0_50 = arith.constant 0 : index
    %c16 = arith.constant 16 : index
    %86 = vector.load %arg7[%c0_50, %c16] : memref<64x55xf32, #tpu.memory_space<vmem>>, vector<64x1xf32>
    tpu.vector_store %arg7[%c0_50, %c16], %85 {strides = array<i32>} : memref<64x55xf32, #tpu.memory_space<vmem>>, vector<64x1xf32>,
    %c17_i32 = arith.constant 17 : i32
    %87 = arith.addi %1, %c17_i32 : i32
    %c0_51 = arith.constant 0 : index
    %88 = arith.index_cast %87 : i32 to index
    %c0_52 = arith.constant 0 : index
    %89 = vector.load %arg2[%c0_51, %88, %c0_52] : memref<1x120x1xf32, #tpu.memory_space<vmem>>, vector<1x64x1xf32>
    %90 = vector.shape_cast %89 : vector<1x64x1xf32> to vector<64x1xf32>
    %c0_53 = arith.constant 0 : index
    %c17 = arith.constant 17 : index
    %91 = vector.load %arg7[%c0_53, %c17] : memref<64x55xf32, #tpu.memory_space<vmem>>, vector<64x1xf32>
    tpu.vector_store %arg7[%c0_53, %c17], %90 {strides = array<i32>} : memref<64x55xf32, #tpu.memory_space<vmem>>, vector<64x1xf32>,
    %c18_i32 = arith.constant 18 : i32
    %92 = arith.addi %1, %c18_i32 : i32
    %c0_54 = arith.constant 0 : index
    %93 = arith.index_cast %92 : i32 to index
    %c0_55 = arith.constant 0 : index
    %94 = vector.load %arg2[%c0_54, %93, %c0_55] : memref<1x120x1xf32, #tpu.memory_space<vmem>>, vector<1x64x1xf32>
    %95 = vector.shape_cast %94 : vector<1x64x1xf32> to vector<64x1xf32>
    %c0_56 = arith.constant 0 : index
    %c18 = arith.constant 18 : index
    %96 = vector.load %arg7[%c0_56, %c18] : memref<64x55xf32, #tpu.memory_space<vmem>>, vector<64x1xf32>
    tpu.vector_store %arg7[%c0_56, %c18], %95 {strides = array<i32>} : memref<64x55xf32, #tpu.memory_space<vmem>>, vector<64x1xf32>,
    %c19_i32 = arith.constant 19 : i32
    %97 = arith.addi %1, %c19_i32 : i32
    %c0_57 = arith.constant 0 : index
    %98 = arith.index_cast %97 : i32 to index
    %c0_58 = arith.constant 0 : index
    %99 = vector.load %arg2[%c0_57, %98, %c0_58] : memref<1x120x1xf32, #tpu.memory_space<vmem>>, vector<1x64x1xf32>
    %100 = vector.shape_cast %99 : vector<1x64x1xf32> to vector<64x1xf32>
    %c0_59 = arith.constant 0 : index
    %c19 = arith.constant 19 : index
    %101 = vector.load %arg7[%c0_59, %c19] : memref<64x55xf32, #tpu.memory_space<vmem>>, vector<64x1xf32>
    tpu.vector_store %arg7[%c0_59, %c19], %100 {strides = array<i32>} : memref<64x55xf32, #tpu.memory_space<vmem>>, vector<64x1xf32>,
    %c20_i32 = arith.constant 20 : i32
    %102 = arith.addi %1, %c20_i32 : i32
    %c0_60 = arith.constant 0 : index
    %103 = arith.index_cast %102 : i32 to index
    %c0_61 = arith.constant 0 : index
    %104 = vector.load %arg2[%c0_60, %103, %c0_61] : memref<1x120x1xf32, #tpu.memory_space<vmem>>, vector<1x64x1xf32>
    %105 = vector.shape_cast %104 : vector<1x64x1xf32> to vector<64x1xf32>
    %c0_62 = arith.constant 0 : index
    %c20 = arith.constant 20 : index
    %106 = vector.load %arg7[%c0_62, %c20] : memref<64x55xf32, #tpu.memory_space<vmem>>, vector<64x1xf32>
    tpu.vector_store %arg7[%c0_62, %c20], %105 {strides = array<i32>} : memref<64x55xf32, #tpu.memory_space<vmem>>, vector<64x1xf32>,
    %c21_i32 = arith.constant 21 : i32
    %107 = arith.addi %1, %c21_i32 : i32
    %c0_63 = arith.constant 0 : index
    %108 = arith.index_cast %107 : i32 to index
    %c0_64 = arith.constant 0 : index
    %109 = vector.load %arg2[%c0_63, %108, %c0_64] : memref<1x120x1xf32, #tpu.memory_space<vmem>>, vector<1x64x1xf32>
    %110 = vector.shape_cast %109 : vector<1x64x1xf32> to vector<64x1xf32>
    %c0_65 = arith.constant 0 : index
    %c21 = arith.constant 21 : index
    %111 = vector.load %arg7[%c0_65, %c21] : memref<64x55xf32, #tpu.memory_space<vmem>>, vector<64x1xf32>
    tpu.vector_store %arg7[%c0_65, %c21], %110 {strides = array<i32>} : memref<64x55xf32, #tpu.memory_space<vmem>>, vector<64x1xf32>,
    %c22_i32 = arith.constant 22 : i32
    %112 = arith.addi %1, %c22_i32 : i32
    %c0_66 = arith.constant 0 : index
    %113 = arith.index_cast %112 : i32 to index
    %c0_67 = arith.constant 0 : index
    %114 = vector.load %arg2[%c0_66, %113, %c0_67] : memref<1x120x1xf32, #tpu.memory_space<vmem>>, vector<1x64x1xf32>
    %115 = vector.shape_cast %114 : vector<1x64x1xf32> to vector<64x1xf32>
    %c0_68 = arith.constant 0 : index
    %c22 = arith.constant 22 : index
    %116 = vector.load %arg7[%c0_68, %c22] : memref<64x55xf32, #tpu.memory_space<vmem>>, vector<64x1xf32>
    tpu.vector_store %arg7[%c0_68, %c22], %115 {strides = array<i32>} : memref<64x55xf32, #tpu.memory_space<vmem>>, vector<64x1xf32>,
    %c23_i32 = arith.constant 23 : i32
    %117 = arith.addi %1, %c23_i32 : i32
    %c0_69 = arith.constant 0 : index
    %118 = arith.index_cast %117 : i32 to index
    %c0_70 = arith.constant 0 : index
    %119 = vector.load %arg2[%c0_69, %118, %c0_70] : memref<1x120x1xf32, #tpu.memory_space<vmem>>, vector<1x64x1xf32>
    %120 = vector.shape_cast %119 : vector<1x64x1xf32> to vector<64x1xf32>
    %c0_71 = arith.constant 0 : index
    %c23 = arith.constant 23 : index
    %121 = vector.load %arg7[%c0_71, %c23] : memref<64x55xf32, #tpu.memory_space<vmem>>, vector<64x1xf32>
    tpu.vector_store %arg7[%c0_71, %c23], %120 {strides = array<i32>} : memref<64x55xf32, #tpu.memory_space<vmem>>, vector<64x1xf32>,
    %c24_i32 = arith.constant 24 : i32
    %122 = arith.addi %1, %c24_i32 : i32
    %c0_72 = arith.constant 0 : index
    %123 = arith.index_cast %122 : i32 to index
    %c0_73 = arith.constant 0 : index
    %124 = vector.load %arg2[%c0_72, %123, %c0_73] : memref<1x120x1xf32, #tpu.memory_space<vmem>>, vector<1x64x1xf32>
    %125 = vector.shape_cast %124 : vector<1x64x1xf32> to vector<64x1xf32>
    %c0_74 = arith.constant 0 : index
    %c24 = arith.constant 24 : index
    %126 = vector.load %arg7[%c0_74, %c24] : memref<64x55xf32, #tpu.memory_space<vmem>>, vector<64x1xf32>
    tpu.vector_store %arg7[%c0_74, %c24], %125 {strides = array<i32>} : memref<64x55xf32, #tpu.memory_space<vmem>>, vector<64x1xf32>,
    %c25_i32 = arith.constant 25 : i32
    %127 = arith.addi %1, %c25_i32 : i32
    %c0_75 = arith.constant 0 : index
    %128 = arith.index_cast %127 : i32 to index
    %c0_76 = arith.constant 0 : index
    %129 = vector.load %arg2[%c0_75, %128, %c0_76] : memref<1x120x1xf32, #tpu.memory_space<vmem>>, vector<1x64x1xf32>
    %130 = vector.shape_cast %129 : vector<1x64x1xf32> to vector<64x1xf32>
    %c0_77 = arith.constant 0 : index
    %c25 = arith.constant 25 : index
    %131 = vector.load %arg7[%c0_77, %c25] : memref<64x55xf32, #tpu.memory_space<vmem>>, vector<64x1xf32>
    tpu.vector_store %arg7[%c0_77, %c25], %130 {strides = array<i32>} : memref<64x55xf32, #tpu.memory_space<vmem>>, vector<64x1xf32>,
    %c26_i32 = arith.constant 26 : i32
    %132 = arith.addi %1, %c26_i32 : i32
    %c0_78 = arith.constant 0 : index
    %133 = arith.index_cast %132 : i32 to index
    %c0_79 = arith.constant 0 : index
    %134 = vector.load %arg2[%c0_78, %133, %c0_79] : memref<1x120x1xf32, #tpu.memory_space<vmem>>, vector<1x64x1xf32>
    %135 = vector.shape_cast %134 : vector<1x64x1xf32> to vector<64x1xf32>
    %c0_80 = arith.constant 0 : index
    %c26 = arith.constant 26 : index
    %136 = vector.load %arg7[%c0_80, %c26] : memref<64x55xf32, #tpu.memory_space<vmem>>, vector<64x1xf32>
    tpu.vector_store %arg7[%c0_80, %c26], %135 {strides = array<i32>} : memref<64x55xf32, #tpu.memory_space<vmem>>, vector<64x1xf32>,
    %c27_i32 = arith.constant 27 : i32
    %137 = arith.addi %1, %c27_i32 : i32
    %c0_81 = arith.constant 0 : index
    %138 = arith.index_cast %137 : i32 to index
    %c0_82 = arith.constant 0 : index
    %139 = vector.load %arg2[%c0_81, %138, %c0_82] : memref<1x120x1xf32, #tpu.memory_space<vmem>>, vector<1x64x1xf32>
    %140 = vector.shape_cast %139 : vector<1x64x1xf32> to vector<64x1xf32>
    %c0_83 = arith.constant 0 : index
    %c27 = arith.constant 27 : index
    %141 = vector.load %arg7[%c0_83, %c27] : memref<64x55xf32, #tpu.memory_space<vmem>>, vector<64x1xf32>
    tpu.vector_store %arg7[%c0_83, %c27], %140 {strides = array<i32>} : memref<64x55xf32, #tpu.memory_space<vmem>>, vector<64x1xf32>,
    %c28_i32 = arith.constant 28 : i32
    %142 = arith.addi %1, %c28_i32 : i32
    %c0_84 = arith.constant 0 : index
    %143 = arith.index_cast %142 : i32 to index
    %c0_85 = arith.constant 0 : index
    %144 = vector.load %arg2[%c0_84, %143, %c0_85] : memref<1x120x1xf32, #tpu.memory_space<vmem>>, vector<1x64x1xf32>
    %145 = vector.shape_cast %144 : vector<1x64x1xf32> to vector<64x1xf32>
    %c0_86 = arith.constant 0 : index
    %c28 = arith.constant 28 : index
    %146 = vector.load %arg7[%c0_86, %c28] : memref<64x55xf32, #tpu.memory_space<vmem>>, vector<64x1xf32>
    tpu.vector_store %arg7[%c0_86, %c28], %145 {strides = array<i32>} : memref<64x55xf32, #tpu.memory_space<vmem>>, vector<64x1xf32>,
    %c29_i32 = arith.constant 29 : i32
    %147 = arith.addi %1, %c29_i32 : i32
    %c0_87 = arith.constant 0 : index
    %148 = arith.index_cast %147 : i32 to index
    %c0_88 = arith.constant 0 : index
    %149 = vector.load %arg2[%c0_87, %148, %c0_88] : memref<1x120x1xf32, #tpu.memory_space<vmem>>, vector<1x64x1xf32>
    %150 = vector.shape_cast %149 : vector<1x64x1xf32> to vector<64x1xf32>
    %c0_89 = arith.constant 0 : index
    %c29 = arith.constant 29 : index
    %151 = vector.load %arg7[%c0_89, %c29] : memref<64x55xf32, #tpu.memory_space<vmem>>, vector<64x1xf32>
    tpu.vector_store %arg7[%c0_89, %c29], %150 {strides = array<i32>} : memref<64x55xf32, #tpu.memory_space<vmem>>, vector<64x1xf32>,
    %c30_i32 = arith.constant 30 : i32
    %152 = arith.addi %1, %c30_i32 : i32
    %c0_90 = arith.constant 0 : index
    %153 = arith.index_cast %152 : i32 to index
    %c0_91 = arith.constant 0 : index
    %154 = vector.load %arg2[%c0_90, %153, %c0_91] : memref<1x120x1xf32, #tpu.memory_space<vmem>>, vector<1x64x1xf32>
    %155 = vector.shape_cast %154 : vector<1x64x1xf32> to vector<64x1xf32>
    %c0_92 = arith.constant 0 : index
    %c30 = arith.constant 30 : index
    %156 = vector.load %arg7[%c0_92, %c30] : memref<64x55xf32, #tpu.memory_space<vmem>>, vector<64x1xf32>
    tpu.vector_store %arg7[%c0_92, %c30], %155 {strides = array<i32>} : memref<64x55xf32, #tpu.memory_space<vmem>>, vector<64x1xf32>,
    %c31_i32 = arith.constant 31 : i32
    %157 = arith.addi %1, %c31_i32 : i32
    %c0_93 = arith.constant 0 : index
    %158 = arith.index_cast %157 : i32 to index
    %c0_94 = arith.constant 0 : index
    %159 = vector.load %arg2[%c0_93, %158, %c0_94] : memref<1x120x1xf32, #tpu.memory_space<vmem>>, vector<1x64x1xf32>
    %160 = vector.shape_cast %159 : vector<1x64x1xf32> to vector<64x1xf32>
    %c0_95 = arith.constant 0 : index
    %c31 = arith.constant 31 : index
    %161 = vector.load %arg7[%c0_95, %c31] : memref<64x55xf32, #tpu.memory_space<vmem>>, vector<64x1xf32>
    tpu.vector_store %arg7[%c0_95, %c31], %160 {strides = array<i32>} : memref<64x55xf32, #tpu.memory_space<vmem>>, vector<64x1xf32>,
    %c32_i32 = arith.constant 32 : i32
    %162 = arith.addi %1, %c32_i32 : i32
    %c0_96 = arith.constant 0 : index
    %163 = arith.index_cast %162 : i32 to index
    %c0_97 = arith.constant 0 : index
    %164 = vector.load %arg2[%c0_96, %163, %c0_97] : memref<1x120x1xf32, #tpu.memory_space<vmem>>, vector<1x64x1xf32>
    %165 = vector.shape_cast %164 : vector<1x64x1xf32> to vector<64x1xf32>
    %c0_98 = arith.constant 0 : index
    %c32 = arith.constant 32 : index
    %166 = vector.load %arg7[%c0_98, %c32] : memref<64x55xf32, #tpu.memory_space<vmem>>, vector<64x1xf32>
    tpu.vector_store %arg7[%c0_98, %c32], %165 {strides = array<i32>} : memref<64x55xf32, #tpu.memory_space<vmem>>, vector<64x1xf32>,
    %c33_i32 = arith.constant 33 : i32
    %167 = arith.addi %1, %c33_i32 : i32
    %c0_99 = arith.constant 0 : index
    %168 = arith.index_cast %167 : i32 to index
    %c0_100 = arith.constant 0 : index
    %169 = vector.load %arg2[%c0_99, %168, %c0_100] : memref<1x120x1xf32, #tpu.memory_space<vmem>>, vector<1x64x1xf32>
    %170 = vector.shape_cast %169 : vector<1x64x1xf32> to vector<64x1xf32>
    %c0_101 = arith.constant 0 : index
    %c33 = arith.constant 33 : index
    %171 = vector.load %arg7[%c0_101, %c33] : memref<64x55xf32, #tpu.memory_space<vmem>>, vector<64x1xf32>
    tpu.vector_store %arg7[%c0_101, %c33], %170 {strides = array<i32>} : memref<64x55xf32, #tpu.memory_space<vmem>>, vector<64x1xf32>,
    %c34_i32 = arith.constant 34 : i32
    %172 = arith.addi %1, %c34_i32 : i32
    %c0_102 = arith.constant 0 : index
    %173 = arith.index_cast %172 : i32 to index
    %c0_103 = arith.constant 0 : index
    %174 = vector.load %arg2[%c0_102, %173, %c0_103] : memref<1x120x1xf32, #tpu.memory_space<vmem>>, vector<1x64x1xf32>
    %175 = vector.shape_cast %174 : vector<1x64x1xf32> to vector<64x1xf32>
    %c0_104 = arith.constant 0 : index
    %c34 = arith.constant 34 : index
    %176 = vector.load %arg7[%c0_104, %c34] : memref<64x55xf32, #tpu.memory_space<vmem>>, vector<64x1xf32>
    tpu.vector_store %arg7[%c0_104, %c34], %175 {strides = array<i32>} : memref<64x55xf32, #tpu.memory_space<vmem>>, vector<64x1xf32>,
    %c35_i32 = arith.constant 35 : i32
    %177 = arith.addi %1, %c35_i32 : i32
    %c0_105 = arith.constant 0 : index
    %178 = arith.index_cast %177 : i32 to index
    %c0_106 = arith.constant 0 : index
    %179 = vector.load %arg2[%c0_105, %178, %c0_106] : memref<1x120x1xf32, #tpu.memory_space<vmem>>, vector<1x64x1xf32>
    %180 = vector.shape_cast %179 : vector<1x64x1xf32> to vector<64x1xf32>
    %c0_107 = arith.constant 0 : index
    %c35 = arith.constant 35 : index
    %181 = vector.load %arg7[%c0_107, %c35] : memref<64x55xf32, #tpu.memory_space<vmem>>, vector<64x1xf32>
    tpu.vector_store %arg7[%c0_107, %c35], %180 {strides = array<i32>} : memref<64x55xf32, #tpu.memory_space<vmem>>, vector<64x1xf32>,
    %c36_i32 = arith.constant 36 : i32
    %182 = arith.addi %1, %c36_i32 : i32
    %c0_108 = arith.constant 0 : index
    %183 = arith.index_cast %182 : i32 to index
    %c0_109 = arith.constant 0 : index
    %184 = vector.load %arg2[%c0_108, %183, %c0_109] : memref<1x120x1xf32, #tpu.memory_space<vmem>>, vector<1x64x1xf32>
    %185 = vector.shape_cast %184 : vector<1x64x1xf32> to vector<64x1xf32>
    %c0_110 = arith.constant 0 : index
    %c36 = arith.constant 36 : index
    %186 = vector.load %arg7[%c0_110, %c36] : memref<64x55xf32, #tpu.memory_space<vmem>>, vector<64x1xf32>
    tpu.vector_store %arg7[%c0_110, %c36], %185 {strides = array<i32>} : memref<64x55xf32, #tpu.memory_space<vmem>>, vector<64x1xf32>,
    %c37_i32 = arith.constant 37 : i32
    %187 = arith.addi %1, %c37_i32 : i32
    %c0_111 = arith.constant 0 : index
    %188 = arith.index_cast %187 : i32 to index
    %c0_112 = arith.constant 0 : index
    %189 = vector.load %arg2[%c0_111, %188, %c0_112] : memref<1x120x1xf32, #tpu.memory_space<vmem>>, vector<1x64x1xf32>
    %190 = vector.shape_cast %189 : vector<1x64x1xf32> to vector<64x1xf32>
    %c0_113 = arith.constant 0 : index
    %c37 = arith.constant 37 : index
    %191 = vector.load %arg7[%c0_113, %c37] : memref<64x55xf32, #tpu.memory_space<vmem>>, vector<64x1xf32>
    tpu.vector_store %arg7[%c0_113, %c37], %190 {strides = array<i32>} : memref<64x55xf32, #tpu.memory_space<vmem>>, vector<64x1xf32>,
    %c38_i32 = arith.constant 38 : i32
    %192 = arith.addi %1, %c38_i32 : i32
    %c0_114 = arith.constant 0 : index
    %193 = arith.index_cast %192 : i32 to index
    %c0_115 = arith.constant 0 : index
    %194 = vector.load %arg2[%c0_114, %193, %c0_115] : memref<1x120x1xf32, #tpu.memory_space<vmem>>, vector<1x64x1xf32>
    %195 = vector.shape_cast %194 : vector<1x64x1xf32> to vector<64x1xf32>
    %c0_116 = arith.constant 0 : index
    %c38 = arith.constant 38 : index
    %196 = vector.load %arg7[%c0_116, %c38] : memref<64x55xf32, #tpu.memory_space<vmem>>, vector<64x1xf32>
    tpu.vector_store %arg7[%c0_116, %c38], %195 {strides = array<i32>} : memref<64x55xf32, #tpu.memory_space<vmem>>, vector<64x1xf32>,
    %c39_i32 = arith.constant 39 : i32
    %197 = arith.addi %1, %c39_i32 : i32
    %c0_117 = arith.constant 0 : index
    %198 = arith.index_cast %197 : i32 to index
    %c0_118 = arith.constant 0 : index
    %199 = vector.load %arg2[%c0_117, %198, %c0_118] : memref<1x120x1xf32, #tpu.memory_space<vmem>>, vector<1x64x1xf32>
    %200 = vector.shape_cast %199 : vector<1x64x1xf32> to vector<64x1xf32>
    %c0_119 = arith.constant 0 : index
    %c39 = arith.constant 39 : index
    %201 = vector.load %arg7[%c0_119, %c39] : memref<64x55xf32, #tpu.memory_space<vmem>>, vector<64x1xf32>
    tpu.vector_store %arg7[%c0_119, %c39], %200 {strides = array<i32>} : memref<64x55xf32, #tpu.memory_space<vmem>>, vector<64x1xf32>,
    %c40_i32 = arith.constant 40 : i32
    %202 = arith.addi %1, %c40_i32 : i32
    %c0_120 = arith.constant 0 : index
    %203 = arith.index_cast %202 : i32 to index
    %c0_121 = arith.constant 0 : index
    %204 = vector.load %arg2[%c0_120, %203, %c0_121] : memref<1x120x1xf32, #tpu.memory_space<vmem>>, vector<1x64x1xf32>
    %205 = vector.shape_cast %204 : vector<1x64x1xf32> to vector<64x1xf32>
    %c0_122 = arith.constant 0 : index
    %c40 = arith.constant 40 : index
    %206 = vector.load %arg7[%c0_122, %c40] : memref<64x55xf32, #tpu.memory_space<vmem>>, vector<64x1xf32>
    tpu.vector_store %arg7[%c0_122, %c40], %205 {strides = array<i32>} : memref<64x55xf32, #tpu.memory_space<vmem>>, vector<64x1xf32>,
    %c41_i32 = arith.constant 41 : i32
    %207 = arith.addi %1, %c41_i32 : i32
    %c0_123 = arith.constant 0 : index
    %208 = arith.index_cast %207 : i32 to index
    %c0_124 = arith.constant 0 : index
    %209 = vector.load %arg2[%c0_123, %208, %c0_124] : memref<1x120x1xf32, #tpu.memory_space<vmem>>, vector<1x64x1xf32>
    %210 = vector.shape_cast %209 : vector<1x64x1xf32> to vector<64x1xf32>
    %c0_125 = arith.constant 0 : index
    %c41 = arith.constant 41 : index
    %211 = vector.load %arg7[%c0_125, %c41] : memref<64x55xf32, #tpu.memory_space<vmem>>, vector<64x1xf32>
    tpu.vector_store %arg7[%c0_125, %c41], %210 {strides = array<i32>} : memref<64x55xf32, #tpu.memory_space<vmem>>, vector<64x1xf32>,
    %c42_i32 = arith.constant 42 : i32
    %212 = arith.addi %1, %c42_i32 : i32
    %c0_126 = arith.constant 0 : index
    %213 = arith.index_cast %212 : i32 to index
    %c0_127 = arith.constant 0 : index
    %214 = vector.load %arg2[%c0_126, %213, %c0_127] : memref<1x120x1xf32, #tpu.memory_space<vmem>>, vector<1x64x1xf32>
    %215 = vector.shape_cast %214 : vector<1x64x1xf32> to vector<64x1xf32>
    %c0_128 = arith.constant 0 : index
    %c42 = arith.constant 42 : index
    %216 = vector.load %arg7[%c0_128, %c42] : memref<64x55xf32, #tpu.memory_space<vmem>>, vector<64x1xf32>
    tpu.vector_store %arg7[%c0_128, %c42], %215 {strides = array<i32>} : memref<64x55xf32, #tpu.memory_space<vmem>>, vector<64x1xf32>,
    %c43_i32 = arith.constant 43 : i32
    %217 = arith.addi %1, %c43_i32 : i32
    %c0_129 = arith.constant 0 : index
    %218 = arith.index_cast %217 : i32 to index
    %c0_130 = arith.constant 0 : index
    %219 = vector.load %arg2[%c0_129, %218, %c0_130] : memref<1x120x1xf32, #tpu.memory_space<vmem>>, vector<1x64x1xf32>
    %220 = vector.shape_cast %219 : vector<1x64x1xf32> to vector<64x1xf32>
    %c0_131 = arith.constant 0 : index
    %c43 = arith.constant 43 : index
    %221 = vector.load %arg7[%c0_131, %c43] : memref<64x55xf32, #tpu.memory_space<vmem>>, vector<64x1xf32>
    tpu.vector_store %arg7[%c0_131, %c43], %220 {strides = array<i32>} : memref<64x55xf32, #tpu.memory_space<vmem>>, vector<64x1xf32>,
    %c44_i32 = arith.constant 44 : i32
    %222 = arith.addi %1, %c44_i32 : i32
    %c0_132 = arith.constant 0 : index
    %223 = arith.index_cast %222 : i32 to index
    %c0_133 = arith.constant 0 : index
    %224 = vector.load %arg2[%c0_132, %223, %c0_133] : memref<1x120x1xf32, #tpu.memory_space<vmem>>, vector<1x64x1xf32>
    %225 = vector.shape_cast %224 : vector<1x64x1xf32> to vector<64x1xf32>
    %c0_134 = arith.constant 0 : index
    %c44 = arith.constant 44 : index
    %226 = vector.load %arg7[%c0_134, %c44] : memref<64x55xf32, #tpu.memory_space<vmem>>, vector<64x1xf32>
    tpu.vector_store %arg7[%c0_134, %c44], %225 {strides = array<i32>} : memref<64x55xf32, #tpu.memory_space<vmem>>, vector<64x1xf32>,
    %c45_i32 = arith.constant 45 : i32
    %227 = arith.addi %1, %c45_i32 : i32
    %c0_135 = arith.constant 0 : index
    %228 = arith.index_cast %227 : i32 to index
    %c0_136 = arith.constant 0 : index
    %229 = vector.load %arg2[%c0_135, %228, %c0_136] : memref<1x120x1xf32, #tpu.memory_space<vmem>>, vector<1x64x1xf32>
    %230 = vector.shape_cast %229 : vector<1x64x1xf32> to vector<64x1xf32>
    %c0_137 = arith.constant 0 : index
    %c45 = arith.constant 45 : index
    %231 = vector.load %arg7[%c0_137, %c45] : memref<64x55xf32, #tpu.memory_space<vmem>>, vector<64x1xf32>
    tpu.vector_store %arg7[%c0_137, %c45], %230 {strides = array<i32>} : memref<64x55xf32, #tpu.memory_space<vmem>>, vector<64x1xf32>,
    %c46_i32 = arith.constant 46 : i32
    %232 = arith.addi %1, %c46_i32 : i32
    %c0_138 = arith.constant 0 : index
    %233 = arith.index_cast %232 : i32 to index
    %c0_139 = arith.constant 0 : index
    %234 = vector.load %arg2[%c0_138, %233, %c0_139] : memref<1x120x1xf32, #tpu.memory_space<vmem>>, vector<1x64x1xf32>
    %235 = vector.shape_cast %234 : vector<1x64x1xf32> to vector<64x1xf32>
    %c0_140 = arith.constant 0 : index
    %c46 = arith.constant 46 : index
    %236 = vector.load %arg7[%c0_140, %c46] : memref<64x55xf32, #tpu.memory_space<vmem>>, vector<64x1xf32>
    tpu.vector_store %arg7[%c0_140, %c46], %235 {strides = array<i32>} : memref<64x55xf32, #tpu.memory_space<vmem>>, vector<64x1xf32>,
    %c47_i32 = arith.constant 47 : i32
    %237 = arith.addi %1, %c47_i32 : i32
    %c0_141 = arith.constant 0 : index
    %238 = arith.index_cast %237 : i32 to index
    %c0_142 = arith.constant 0 : index
    %239 = vector.load %arg2[%c0_141, %238, %c0_142] : memref<1x120x1xf32, #tpu.memory_space<vmem>>, vector<1x64x1xf32>
    %240 = vector.shape_cast %239 : vector<1x64x1xf32> to vector<64x1xf32>
    %c0_143 = arith.constant 0 : index
    %c47 = arith.constant 47 : index
    %241 = vector.load %arg7[%c0_143, %c47] : memref<64x55xf32, #tpu.memory_space<vmem>>, vector<64x1xf32>
    tpu.vector_store %arg7[%c0_143, %c47], %240 {strides = array<i32>} : memref<64x55xf32, #tpu.memory_space<vmem>>, vector<64x1xf32>,
    %c48_i32 = arith.constant 48 : i32
    %242 = arith.addi %1, %c48_i32 : i32
    %c0_144 = arith.constant 0 : index
    %243 = arith.index_cast %242 : i32 to index
    %c0_145 = arith.constant 0 : index
    %244 = vector.load %arg2[%c0_144, %243, %c0_145] : memref<1x120x1xf32, #tpu.memory_space<vmem>>, vector<1x64x1xf32>
    %245 = vector.shape_cast %244 : vector<1x64x1xf32> to vector<64x1xf32>
    %c0_146 = arith.constant 0 : index
    %c48 = arith.constant 48 : index
    %246 = vector.load %arg7[%c0_146, %c48] : memref<64x55xf32, #tpu.memory_space<vmem>>, vector<64x1xf32>
    tpu.vector_store %arg7[%c0_146, %c48], %245 {strides = array<i32>} : memref<64x55xf32, #tpu.memory_space<vmem>>, vector<64x1xf32>,
    %c49_i32 = arith.constant 49 : i32
    %247 = arith.addi %1, %c49_i32 : i32
    %c0_147 = arith.constant 0 : index
    %248 = arith.index_cast %247 : i32 to index
    %c0_148 = arith.constant 0 : index
    %249 = vector.load %arg2[%c0_147, %248, %c0_148] : memref<1x120x1xf32, #tpu.memory_space<vmem>>, vector<1x64x1xf32>
    %250 = vector.shape_cast %249 : vector<1x64x1xf32> to vector<64x1xf32>
    %c0_149 = arith.constant 0 : index
    %c49 = arith.constant 49 : index
    %251 = vector.load %arg7[%c0_149, %c49] : memref<64x55xf32, #tpu.memory_space<vmem>>, vector<64x1xf32>
    tpu.vector_store %arg7[%c0_149, %c49], %250 {strides = array<i32>} : memref<64x55xf32, #tpu.memory_space<vmem>>, vector<64x1xf32>,
    %c50_i32 = arith.constant 50 : i32
    %252 = arith.addi %1, %c50_i32 : i32
    %c0_150 = arith.constant 0 : index
    %253 = arith.index_cast %252 : i32 to index
    %c0_151 = arith.constant 0 : index
    %254 = vector.load %arg2[%c0_150, %253, %c0_151] : memref<1x120x1xf32, #tpu.memory_space<vmem>>, vector<1x64x1xf32>
    %255 = vector.shape_cast %254 : vector<1x64x1xf32> to vector<64x1xf32>
    %c0_152 = arith.constant 0 : index
    %c50 = arith.constant 50 : index
    %256 = vector.load %arg7[%c0_152, %c50] : memref<64x55xf32, #tpu.memory_space<vmem>>, vector<64x1xf32>
    tpu.vector_store %arg7[%c0_152, %c50], %255 {strides = array<i32>} : memref<64x55xf32, #tpu.memory_space<vmem>>, vector<64x1xf32>,
    %c51_i32 = arith.constant 51 : i32
    %257 = arith.addi %1, %c51_i32 : i32
    %c0_153 = arith.constant 0 : index
    %258 = arith.index_cast %257 : i32 to index
    %c0_154 = arith.constant 0 : index
    %259 = vector.load %arg2[%c0_153, %258, %c0_154] : memref<1x120x1xf32, #tpu.memory_space<vmem>>, vector<1x64x1xf32>
    %260 = vector.shape_cast %259 : vector<1x64x1xf32> to vector<64x1xf32>
    %c0_155 = arith.constant 0 : index
    %c51 = arith.constant 51 : index
    %261 = vector.load %arg7[%c0_155, %c51] : memref<64x55xf32, #tpu.memory_space<vmem>>, vector<64x1xf32>
    tpu.vector_store %arg7[%c0_155, %c51], %260 {strides = array<i32>} : memref<64x55xf32, #tpu.memory_space<vmem>>, vector<64x1xf32>,
    %c52_i32 = arith.constant 52 : i32
    %262 = arith.addi %1, %c52_i32 : i32
    %c0_156 = arith.constant 0 : index
    %263 = arith.index_cast %262 : i32 to index
    %c0_157 = arith.constant 0 : index
    %264 = vector.load %arg2[%c0_156, %263, %c0_157] : memref<1x120x1xf32, #tpu.memory_space<vmem>>, vector<1x64x1xf32>
    %265 = vector.shape_cast %264 : vector<1x64x1xf32> to vector<64x1xf32>
    %c0_158 = arith.constant 0 : index
    %c52 = arith.constant 52 : index
    %266 = vector.load %arg7[%c0_158, %c52] : memref<64x55xf32, #tpu.memory_space<vmem>>, vector<64x1xf32>
    tpu.vector_store %arg7[%c0_158, %c52], %265 {strides = array<i32>} : memref<64x55xf32, #tpu.memory_space<vmem>>, vector<64x1xf32>,
    %c53_i32 = arith.constant 53 : i32
    %267 = arith.addi %1, %c53_i32 : i32
    %c0_159 = arith.constant 0 : index
    %268 = arith.index_cast %267 : i32 to index
    %c0_160 = arith.constant 0 : index
    %269 = vector.load %arg2[%c0_159, %268, %c0_160] : memref<1x120x1xf32, #tpu.memory_space<vmem>>, vector<1x64x1xf32>
    %270 = vector.shape_cast %269 : vector<1x64x1xf32> to vector<64x1xf32>
    %c0_161 = arith.constant 0 : index
    %c53 = arith.constant 53 : index
    %271 = vector.load %arg7[%c0_161, %c53] : memref<64x55xf32, #tpu.memory_space<vmem>>, vector<64x1xf32>
    tpu.vector_store %arg7[%c0_161, %c53], %270 {strides = array<i32>} : memref<64x55xf32, #tpu.memory_space<vmem>>, vector<64x1xf32>,
    %c54_i32 = arith.constant 54 : i32
    %272 = arith.addi %1, %c54_i32 : i32
    %c0_162 = arith.constant 0 : index
    %273 = arith.index_cast %272 : i32 to index
    %c0_163 = arith.constant 0 : index
    %274 = vector.load %arg2[%c0_162, %273, %c0_163] : memref<1x120x1xf32, #tpu.memory_space<vmem>>, vector<1x64x1xf32>
    %275 = vector.shape_cast %274 : vector<1x64x1xf32> to vector<64x1xf32>
    %c0_164 = arith.constant 0 : index
    %c54 = arith.constant 54 : index
    %276 = vector.load %arg7[%c0_164, %c54] : memref<64x55xf32, #tpu.memory_space<vmem>>, vector<64x1xf32>
    tpu.vector_store %arg7[%c0_164, %c54], %275 {strides = array<i32>} : memref<64x55xf32, #tpu.memory_space<vmem>>, vector<64x1xf32>,
    %c0_165 = arith.constant 0 : index
    %c0_166 = arith.constant 0 : index
    %277 = vector.load %arg7[%c0_165, %c0_166] : memref<64x55xf32, #tpu.memory_space<vmem>>, vector<64x55xf32>
    %c0_167 = arith.constant 0 : index
    %c0_168 = arith.constant 0 : index
    %278 = vector.load %arg3[%c0_167, %c0_168] : memref<55x128xf32, #tpu.memory_space<vmem>>, vector<55x128xf32>
    %cst = arith.constant dense<0.000000e+00> : vector<64x128xf32>
    %279 = tpu.matmul %277, %278, %cst {dimension_numbers = #tpu.dot_dimension_numbers<[1], [0], [0], [1], [0, 0, 1, 1], [], []>} : vector<64x55xf32>, vector<55x128xf32>, vector<64x128xf32> -> vector<64x128xf32>
    %280 = tpu.iota {dimensions = array<i32: 0>} : vector<64x1xi32>
    %c64_i32_169 = arith.constant 64 : i32
    %281 = arith.muli %arg1, %c64_i32_169 : i32
    %c64_i32_170 = arith.constant 64 : i32
    %282 = arith.subi %c64_i32_170, %281 : i32
    %283 = vector.broadcast %282 : i32 to vector<64x1xi32>
    %284 = arith.cmpi slt, %280, %283 : vector<64x1xi32>
    %cst_171 = arith.constant 0.000000e+00 : f32
    %285 = vector.shape_cast %284 : vector<64x1xi1> to vector<64x1xi1>
    %286 = vector.broadcast %285 : vector<64x1xi1> to vector<64x128xi1>
    %287 = vector.broadcast %cst_171 : f32 to vector<64x128xf32>
    %288 = arith.select %286, %279, %287 : vector<64x128xi1>, vector<64x128xf32>
    %c0_i32_172 = arith.constant 0 : i32
    %289 = arith.cmpi eq, %arg1, %c0_i32_172 : i32
    %290 = arith.extui %289 : i1 to i32
    %c0_i32_173 = arith.constant 0 : i32
    %291 = arith.cmpi ne, %290, %c0_i32_173 : i32
    scf.if %291 {
      %cst_191 = arith.constant 0.000000e+00 : f32
      %305 = vector.broadcast %cst_191 : f32 to vector<1x1x128xf32>
      %c0_192 = arith.constant 0 : index
      %c0_193 = arith.constant 0 : index
      %c0_194 = arith.constant 0 : index
      %306 = vector.load %arg5[%c0_192, %c0_193, %c0_194] : memref<1x1x128xf32, #tpu.memory_space<vmem>>, vector<1x1x128xf32>
      tpu.vector_store %arg5[%c0_192, %c0_193, %c0_194], %305 {strides = array<i32>} : memref<1x1x128xf32, #tpu.memory_space<vmem>>, vector<1x1x128xf32>,
      %cst_195 = arith.constant 0.000000e+00 : f32
      %307 = vector.broadcast %cst_195 : f32 to vector<1x1x128xf32>
      %c0_196 = arith.constant 0 : index
      %c0_197 = arith.constant 0 : index
      %c0_198 = arith.constant 0 : index
      %308 = vector.load %arg6[%c0_196, %c0_197, %c0_198] : memref<1x1x128xf32, #tpu.memory_space<vmem>>, vector<1x1x128xf32>
      tpu.vector_store %arg6[%c0_196, %c0_197, %c0_198], %307 {strides = array<i32>} : memref<1x1x128xf32, #tpu.memory_space<vmem>>, vector<1x1x128xf32>,
    } else {
    }
    %c0_174 = arith.constant 0 : index
    %c0_175 = arith.constant 0 : index
    %c0_176 = arith.constant 0 : index
    %292 = vector.load %arg5[%c0_174, %c0_175, %c0_176] : memref<1x1x128xf32, #tpu.memory_space<vmem>>, vector<1x1x128xf32>
    %cst_177 = arith.constant dense<0.000000e+00> : vector<128xf32>
    %293 = vector.multi_reduction <add>, %288, %cst_177 [0] : vector<64x128xf32> to vector<128xf32>
    %294 = vector.shape_cast %293 : vector<128xf32> to vector<1x1x128xf32>
    %295 = arith.addf %292, %294 : vector<1x1x128xf32>
    %c0_178 = arith.constant 0 : index
    %c0_179 = arith.constant 0 : index
    %c0_180 = arith.constant 0 : index
    %296 = vector.load %arg5[%c0_178, %c0_179, %c0_180] : memref<1x1x128xf32, #tpu.memory_space<vmem>>, vector<1x1x128xf32>
    tpu.vector_store %arg5[%c0_178, %c0_179, %c0_180], %295 {strides = array<i32>} : memref<1x1x128xf32, #tpu.memory_space<vmem>>, vector<1x1x128xf32>,
    %c0_181 = arith.constant 0 : index
    %c0_182 = arith.constant 0 : index
    %c0_183 = arith.constant 0 : index
    %297 = vector.load %arg6[%c0_181, %c0_182, %c0_183] : memref<1x1x128xf32, #tpu.memory_space<vmem>>, vector<1x1x128xf32>
    %298 = arith.mulf %288, %288 : vector<64x128xf32>
    %cst_184 = arith.constant dense<0.000000e+00> : vector<128xf32>
    %299 = vector.multi_reduction <add>, %298, %cst_184 [0] : vector<64x128xf32> to vector<128xf32>
    %300 = vector.shape_cast %299 : vector<128xf32> to vector<1x1x128xf32>
    %301 = arith.addf %297, %300 : vector<1x1x128xf32>
    %c0_185 = arith.constant 0 : index
    %c0_186 = arith.constant 0 : index
    %c0_187 = arith.constant 0 : index
    %302 = vector.load %arg6[%c0_185, %c0_186, %c0_187] : memref<1x1x128xf32, #tpu.memory_space<vmem>>, vector<1x1x128xf32>
    tpu.vector_store %arg6[%c0_185, %c0_186, %c0_187], %301 {strides = array<i32>} : memref<1x1x128xf32, #tpu.memory_space<vmem>>, vector<1x1x128xf32>,
    %303 = vector.shape_cast %279 : vector<64x128xf32> to vector<1x64x128xf32>
    %c0_188 = arith.constant 0 : index
    %c0_189 = arith.constant 0 : index
    %c0_190 = arith.constant 0 : index
    %304 = vector.load %arg4[%c0_188, %c0_189, %c0_190] : memref<1x64x128xf32, #tpu.memory_space<vmem>>, vector<1x64x128xf32>
    tpu.vector_store %arg4[%c0_188, %c0_189, %c0_190], %303 {strides = array<i32>} : memref<1x64x128xf32, #tpu.memory_space<vmem>>, vector<1x64x128xf32>,
    return
  }
  func.func @transform_0(%arg0: i32, %arg1: i32) -> (i32, i32, i32) {
    %c0_i32 = arith.constant 0 : i32
    %c0_i32_0 = arith.constant 0 : i32
    %c0_i32_1 = arith.constant 0 : i32
    return %arg0, %c0_i32, %c0_i32_0 : i32, i32, i32
  }
  func.func @transform_1(%arg0: i32, %arg1: i32) -> (i32, i32) {
    %c0_i32 = arith.constant 0 : i32
    %c0_i32_0 = arith.constant 0 : i32
    %c0_i32_1 = arith.constant 0 : i32
    return %c0_i32, %c0_i32_0 : i32, i32
  }
  func.func @transform_2(%arg0: i32, %arg1: i32) -> (i32, i32, i32) {
    %c0_i32 = arith.constant 0 : i32
    %c0_i32_0 = arith.constant 0 : i32
    return %arg0, %arg1, %c0_i32 : i32, i32, i32
  }
  func.func @transform_3(%arg0: i32, %arg1: i32) -> (i32, i32, i32) {
    %c0_i32 = arith.constant 0 : i32
    %c0_i32_0 = arith.constant 0 : i32
    %c0_i32_1 = arith.constant 0 : i32
    return %arg0, %c0_i32, %c0_i32_0 : i32, i32, i32
  }
  func.func @transform_4(%arg0: i32, %arg1: i32) -> (i32, i32, i32) {
    %c0_i32 = arith.constant 0 : i32
    %c0_i32_0 = arith.constant 0 : i32
    %c0_i32_1 = arith.constant 0 : i32
    return %arg0, %c0_i32, %c0_i32_0 : i32, i32, i32
  }
}

</mosaic_0001>

<llo_original>
// kernel: _cbl_block_impl.3
$region0: #{_cbl_block_impl.3}
  #allocation0 [shape = 'u32[]', space=smem, size = 0x4, offset = 0x4, fixed_abs, tag = 'smem constant byte address 0x4 - core index']
  #allocation1 [shape = 'u32[144,128]{1,0:T(1,128)}', space=vmem, size = 0x12000, scoped, tag = 'internal scratch']
  %s0 = inlined_call_operand.vmem [shape: f32[128,128], index: 0, kind: input, shape index: {}]
  %s1 = inlined_call_operand.vmem [shape: f32[1,128], index: 1, kind: input, shape index: {}]
  %s2 = inlined_call_operand.vmem [shape: f32[1,128], index: 2, kind: input, shape index: {}]
  %s3 = inlined_call_operand.vmem [shape: f32[128,128], index: 3, kind: output, shape index: {}]
  %s4 = sld [smem:[#allocation0]]
  $region45: #{_cbl_block_impl.3} parent=0
    _
  %s6 = ssub.s32 1, %s4
  %s7 = scalar_select 0, %s6, %s4
  loop: start=0, step=1, limit=4
  $region2: #{_cbl_block_impl.3} parent=0 // loop_pre_header
    _
  $region3: #{_cbl_block_impl.3} parent=0 // loop_header
    %s9 = sphi 0, %s13
    %p10 = scmp.ge.s32.totalorder %s9, 4
    %s19 = sphi 0, %s21
    %s22 = sphi 0, %s19
    %s23 = sphi 0, %s22
    %s39 = sphi 0, %s23
    %s43 = sphi 0, %s43
    %s45 = sphi 0, %s43
    %s46 = sphi 0, %s45
    %s60 = sphi 0, %s46
    %s64 = sphi 0, %s64
    %s66 = sphi 0, %s64
    %s67 = sphi 0, %s66
    %s81 = sphi 0, %s67
    %s87 = sphi 0, %s89
    %s90 = sphi 0, %s87
    %s91 = sphi 0, %s90
    %s107 = sphi 0, %s91
  $region4: #{_cbl_block_impl.3} parent=0 // loop_header_branch
    %12 = sbr.rel (%p10) target = $region8
  $region5: #{_cbl_block_impl.3} parent=0 // loop_body
    %s14 = ssub.s32 %s9, 1
    %s15 = ssub.s32 %s9, 2
    %s16 = sadd.s32 %s9, 1
    %s17 = ssub.s32 %s9, %s16
    %p18 = scmp.eq.s32.totalorder %s17, 0
    %s20 = sadd.s32 %s19, 1
    %s21 = scalar_select %p18, %s19, %s20
    %p24 = pneg %p18
    %p25 = scmp.eq.s32.totalorder %s9, 1
    %p26 = por %p24, %p25
    %p27 = scmp.ne.s32.totalorder %s19, %s22
    %p28 = scmp.eq.s32.totalorder %s9, 0
    %p29 = por %p27, %p28
    %p30 = scmp.ne.s32.totalorder %s19, %s22
    %p31 = scmp.eq.s32.totalorder %s14, 1
    %p32 = por %p30, %p31
    %p33 = scmp.ne.s32.totalorder %s22, %s23
    %p34 = scmp.eq.s32.totalorder %s14, 0
    %p35 = por %p33, %p34
    %p36 = scmp.ne.s32.totalorder %s22, %s23
    %p37 = scmp.eq.s32.totalorder %s15, 1
    %p38 = por %p36, %p37
    %p40 = scmp.ne.s32.totalorder %s23, %s39
    %p41 = scmp.eq.s32.totalorder %s15, 0
    %p42 = por %p40, %p41
    %s44 = sadd.s32 %s43, 1
    %p47 = scmp.eq.s32.totalorder %s9, 1
    %p48 = scmp.ne.s32.totalorder %s43, %s45
    %p49 = scmp.eq.s32.totalorder %s9, 0
    %p50 = por %p48, %p49
    %p51 = scmp.ne.s32.totalorder %s43, %s45
    %p52 = scmp.eq.s32.totalorder %s14, 1
    %p53 = por %p51, %p52
    %p54 = scmp.ne.s32.totalorder %s45, %s46
    %p55 = scmp.eq.s32.totalorder %s14, 0
    %p56 = por %p54, %p55
    %p57 = scmp.ne.s32.totalorder %s45, %s46
    %p58 = scmp.eq.s32.totalorder %s15, 1
    %p59 = por %p57, %p58
    %p61 = scmp.ne.s32.totalorder %s46, %s60
    %p62 = scmp.eq.s32.totalorder %s15, 0
    %p63 = por %p61, %p62
    %s65 = sadd.s32 %s64, 1
    %p68 = scmp.eq.s32.totalorder %s9, 1
    %p69 = scmp.ne.s32.totalorder %s64, %s66
    %p70 = scmp.eq.s32.totalorder %s9, 0
    %p71 = por %p69, %p70
    %p72 = scmp.ne.s32.totalorder %s64, %s66
    %p73 = scmp.eq.s32.totalorder %s14, 1
    %p74 = por %p72, %p73
    %p75 = scmp.ne.s32.totalorder %s66, %s67
    %p76 = scmp.eq.s32.totalorder %s14, 0
    %p77 = por %p75, %p76
    %p78 = scmp.ne.s32.totalorder %s66, %s67
    %p79 = scmp.eq.s32.totalorder %s15, 1
    %p80 = por %p78, %p79
    %p82 = scmp.ne.s32.totalorder %s67, %s81
    %p83 = scmp.eq.s32.totalorder %s15, 0
    %p84 = por %p82, %p83
    %s85 = ssub.s32 %s9, %s16
    %p86 = scmp.eq.s32.totalorder %s85, 0
    %s88 = sadd.s32 %s87, 1
    %s89 = scalar_select %p86, %s87, %s88
    %p92 = pneg %p86
    %p93 = scmp.eq.s32.totalorder %s9, 1
    %p94 = por %p92, %p93
    %p95 = scmp.ne.s32.totalorder %s87, %s90
    %p96 = scmp.eq.s32.totalorder %s9, 0
    %p97 = por %p95, %p96
    %p98 = scmp.ne.s32.totalorder %s87, %s90
    %p99 = scmp.eq.s32.totalorder %s14, 1
    %p100 = por %p98, %p99
    %p101 = scmp.ne.s32.totalorder %s90, %s91
    %p102 = scmp.eq.s32.totalorder %s14, 0
    %p103 = por %p101, %p102
    %p104 = scmp.ne.s32.totalorder %s90, %s91
    %p105 = scmp.eq.s32.totalorder %s15, 1
    %p106 = por %p104, %p105
    %p108 = scmp.ne.s32.totalorder %s91, %s107
    %p109 = scmp.eq.s32.totalorder %s15, 0
    %p110 = por %p108, %p109
    %p111 = scmp.le.s32.totalorder 1, %s9
    %p112 = scmp.lt.s32.totalorder %s9, 3
    %p113 = pnand %p111, %p112
    %p114 = pneg %p113
    // Predicated region
    $region9: #{_cbl_block_impl.3} parent=5 // pred_check
      _
    $region10: #{_cbl_block_impl.3} parent=5 // pred_check_branch
      %116 = sbr.rel (%p113) target = $region12
    $region11: #{_cbl_block_impl.3} parent=5 // pred_region
      %s117 = ssub.s32 %s9, 1
      // Predicated region
      $region13: #{_cbl_block_impl.3} parent=11 // pred_check
        %p118 = pneg %p56
      $region14: #{_cbl_block_impl.3} parent=11 // pred_check_branch
        %120 = sbr.rel (%p118) target = $region16
      $region15: #{_cbl_block_impl.3} parent=11 // pred_region
        _
      $region16: #{_cbl_block_impl.3} parent=11 // pred_fallthru
        _
      // Predicated region
      $region17: #{_cbl_block_impl.3} parent=11 // pred_check
        %p121 = pneg %p77
      $region18: #{_cbl_block_impl.3} parent=11 // pred_check_branch
        %123 = sbr.rel (%p121) target = $region20
      $region19: #{_cbl_block_impl.3} parent=11 // pred_region
        _
      $region20: #{_cbl_block_impl.3} parent=11 // pred_fallthru
        _
    $region12: #{_cbl_block_impl.3} parent=5 // pred_fallthru
      _
    %p124 = scmp.lt.s32.totalorder %s9, 2
    // Predicated region
    $region21: #{_cbl_block_impl.3} parent=5 // pred_check
      %p125 = pneg %p124
    $region22: #{_cbl_block_impl.3} parent=5 // pred_check_branch
      %127 = sbr.rel (%p125) target = $region24
    $region23: #{_cbl_block_impl.3} parent=5 // pred_region
      // Predicated region
      $region25: #{_cbl_block_impl.3} parent=23 // pred_check
        %p128 = pneg %p29
      $region26: #{_cbl_block_impl.3} parent=23 // pred_check_branch
        %130 = sbr.rel (%p128) target = $region28
      $region27: #{_cbl_block_impl.3} parent=23 // pred_region
        %s131 = smul.u32 8, %s9
        %p132 = scmp.lt.s32.totalorder %s131, 15
        %s133 = scalar_select %p132, %s131, 15
        %s134 = smul.addr %s133, 8
        %s135 = scalar_lea.vmem %s0, %s134
        %s136 = smul.u32 8, %s9
      $region28: #{_cbl_block_impl.3} parent=23 // pred_fallthru
        _
    $region24: #{_cbl_block_impl.3} parent=5 // pred_fallthru
      _
    %p137 = scmp.le.s32.totalorder 1, %s9
    %p138 = scmp.lt.s32.totalorder %s9, 3
    %p139 = pnand %p137, %p138
    %p140 = pneg %p139
    // Predicated region
    $region29: #{_cbl_block_impl.3} parent=5 // pred_check
      _
    $region30: #{_cbl_block_impl.3} parent=5 // pred_check_branch
      %142 = sbr.rel (%p139) target = $region32
    $region31: #{_cbl_block_impl.3} parent=5 // pred_region
      %s143 = ssub.s32 %s9, 1
      %s144 = smul.u32 8, %s14
      %p145 = scmp.lt.s32.totalorder %s144, 15
      %s146 = scalar_select %p145, %s144, 15
      %s147 = smul.addr %s146, 8
      %s148 = scalar_lea.vmem %s0, %s147
      %p149 = pneg %p35
      %p150 = pneg %p32
      %p151 = pneg %p56
      %p152 = pneg %p53
      %p153 = pneg %p77
      %p154 = pneg %p74
      %p155 = pneg %p103
      %p156 = pneg %p100
      %s157 = smul.u32 8, %s14
      %p158 = scmp.lt.s32.totalorder %s157, 15
      %s159 = scalar_select %p158, %s157, 15
      %s160 = smul.addr %s159, 8
      %s161 = scalar_lea.vmem %s3, %s160
      %s162 = smul.u32 8, %s14
      %p163 = scmp.lt.s32.totalorder %s162, 15
      %s164 = scalar_select %p163, %s162, 15
      %s165 = smul.addr %s164, 8
      %s166 = scalar_lea.vmem %s0, %s165
      %s167 = smul.u32 8, %s14
      %s168 = smul.u32 8, %s14
      %p169 = scmp.lt.s32.totalorder %s168, 15
      %s170 = scalar_select %p169, %s168, 15
      %s171 = smul.addr %s170, 8
      %s172 = scalar_lea.vmem %s3, %s171
      %s173 = smul.u32 8, %s14
      %v174 = vld [vmem:[%s166] sm:$0xff]
      %v175 = vld [vmem:[%s166 + $0x8] sm:$0xff]
      %v176 = vld [vmem:[%s166 + $0x10] sm:$0xff]
      %v177 = vld [vmem:[%s166 + $0x18] sm:$0xff]
      %v178 = vld [vmem:[%s166 + $0x20] sm:$0xff]
      %v179 = vld [vmem:[%s166 + $0x28] sm:$0xff]
      %v180 = vld [vmem:[%s166 + $0x30] sm:$0xff]
      %v181 = vld [vmem:[%s166 + $0x38] sm:$0xff]
      %v182 = vld [vmem:[%s1] sm:$0x1]
      %v184 = vlaneseq
      %v185 = vshrl.u32 %v184, 7
      %v186 = vsub.s32 0, %v185
      %v187 = vrot.slane %v182, %v186
      %v189 = vmul.f32 %v174, %v187
      %v190 = vmul.f32 %v175, %v187
      %v191 = vmul.f32 %v176, %v187
      %v192 = vmul.f32 %v177, %v187
      %v193 = vmul.f32 %v178, %v187
      %v194 = vmul.f32 %v179, %v187
      %v195 = vmul.f32 %v180, %v187
      %v196 = vmul.f32 %v181, %v187
      %v197 = vld [vmem:[%s2] sm:$0x1]
      %v199 = vlaneseq
      %v200 = vshrl.u32 %v199, 7
      %v201 = vsub.s32 0, %v200
      %v202 = vrot.slane %v197, %v201
      %v204 = vadd.f32 %v189, %v202
      %v205 = vadd.f32 %v190, %v202
      %v206 = vadd.f32 %v191, %v202
      %v207 = vadd.f32 %v192, %v202
      %v208 = vadd.f32 %v193, %v202
      %v209 = vadd.f32 %v194, %v202
      %v210 = vadd.f32 %v195, %v202
      %v211 = vadd.f32 %v196, %v202
      %vm212 = vcmp.gt.f32.partialorder %v204, 0.0
      %vm213 = vcmp.gt.f32.partialorder %v205, 0.0
      %vm214 = vcmp.gt.f32.partialorder %v206, 0.0
      %vm215 = vcmp.gt.f32.partialorder %v207, 0.0
      %vm216 = vcmp.gt.f32.partialorder %v208, 0.0
      %vm217 = vcmp.gt.f32.partialorder %v209, 0.0
      %vm218 = vcmp.gt.f32.partialorder %v210, 0.0
      %vm219 = vcmp.gt.f32.partialorder %v211, 0.0
      %v220 = vmul.f32 %v204, 0.1
      %v221 = vmul.f32 %v205, 0.1
      %v222 = vmul.f32 %v206, 0.1
      %v223 = vmul.f32 %v207, 0.1
      %v224 = vmul.f32 %v208, 0.1
      %v225 = vmul.f32 %v209, 0.1
      %v226 = vmul.f32 %v210, 0.1
      %v227 = vmul.f32 %v211, 0.1
      %v228 = vsel %vm212, %v204, %v220
      %v229 = vsel %vm213, %v205, %v221
      %v230 = vsel %vm214, %v206, %v222
      %v231 = vsel %vm215, %v207, %v223
      %v232 = vsel %vm216, %v208, %v224
      %v233 = vsel %vm217, %v209, %v225
      %v234 = vsel %vm218, %v210, %v226
      %v235 = vsel %vm219, %v211, %v227
      %236 = vst [vmem:[%s172] sm:$0xff] %v228
      %237 = vst [vmem:[%s172 + $0x8] sm:$0xff] %v229
      %238 = vst [vmem:[%s172 + $0x10] sm:$0xff] %v230
      %239 = vst [vmem:[%s172 + $0x18] sm:$0xff] %v231
      %240 = vst [vmem:[%s172 + $0x20] sm:$0xff] %v232
      %241 = vst [vmem:[%s172 + $0x28] sm:$0xff] %v233
      %242 = vst [vmem:[%s172 + $0x30] sm:$0xff] %v234
      %243 = vst [vmem:[%s172 + $0x38] sm:$0xff] %v235
      %s244 = smul.u32 8, %s14
      %p245 = scmp.lt.s32.totalorder %s244, 15
      %s246 = scalar_select %p245, %s244, 15
      %s247 = smul.addr %s246, 8
      %s248 = scalar_lea.vmem %s3, %s247
      // Predicated region
      $region33: #{_cbl_block_impl.3} parent=31 // pred_check
        %p249 = pneg %p100
      $region34: #{_cbl_block_impl.3} parent=31 // pred_check_branch
        %251 = sbr.rel (%p249) target = $region36
      $region35: #{_cbl_block_impl.3} parent=31 // pred_region
        %s252 = smul.u32 8, %s14
      $region36: #{_cbl_block_impl.3} parent=31 // pred_fallthru
        _
    $region32: #{_cbl_block_impl.3} parent=5 // pred_fallthru
      _
    %p253 = scmp.le.s32.totalorder 2, %s9
    // Predicated region
    $region37: #{_cbl_block_impl.3} parent=5 // pred_check
      %p254 = pneg %p253
    $region38: #{_cbl_block_impl.3} parent=5 // pred_check_branch
      %256 = sbr.rel (%p254) target = $region40
    $region39: #{_cbl_block_impl.3} parent=5 // pred_region
      %s257 = ssub.s32 %s9, 2
      // Predicated region
      $region41: #{_cbl_block_impl.3} parent=39 // pred_check
        %p258 = pneg %p106
      $region42: #{_cbl_block_impl.3} parent=39 // pred_check_branch
        %260 = sbr.rel (%p258) target = $region44
      $region43: #{_cbl_block_impl.3} parent=39 // pred_region
        %s261 = smul.u32 8, %s15
        %p262 = scmp.lt.s32.totalorder %s261, 15
        %s263 = scalar_select %p262, %s261, 15
        %s264 = smul.addr %s263, 8
        %s265 = scalar_lea.vmem %s3, %s264
      $region44: #{_cbl_block_impl.3} parent=39 // pred_fallthru
        _
    $region40: #{_cbl_block_impl.3} parent=5 // pred_fallthru
      _
  $region6: #{_cbl_block_impl.3} parent=0 // loop_footer
    %s13 = sadd.s32 1, %s9
  $region7: #{_cbl_block_impl.3} parent=0 // loop_footer_branch
    %8 = sbr.rel target = $region3
  $region8: #{_cbl_block_impl.3} parent=0 // loop_exit
    _

// kernel: _cbl_block_impl.2
$region0: #{_cbl_block_impl.2}
  #allocation0 [shape = 'u32[]', space=smem, size = 0x4, offset = 0x4, fixed_abs, tag = 'smem constant byte address 0x4 - core index']
  #allocation1 [shape = 'u32[144,128]{1,0:T(1,128)}', space=vmem, size = 0x12000, scoped, tag = 'internal scratch']
  #allocation2 [shape = 'f32[64,55]{1,0:T(8,128)}', space=vmem, size = 0x8000, scoped, tag = 'scratch operand']
  %s0 = inlined_call_operand.vmem [shape: f32[2,120,1], index: 0, kind: input, shape index: {}]
  %s1 = inlined_call_operand.vmem [shape: f32[55,128], index: 1, kind: input, shape index: {}]
  %s2 = inlined_call_operand.vmem [shape: f32[2,64,128], index: 2, kind: output, shape index: {0}]
  %s3 = inlined_call_operand.vmem [shape: f32[2,1,128], index: 3, kind: output, shape index: {1}]
  %s4 = inlined_call_operand.vmem [shape: f32[2,1,128], index: 4, kind: output, shape index: {2}]
  %5 = xla_tuple %s2, %s3, %s4
  %s6 = sld [smem:[#allocation0]]
  $region61: #{_cbl_block_impl.2} parent=0
    _
  %s8 = ssub.s32 1, %s6
  %s9 = scalar_select 0, %s8, %s6
  loop: start=0, step=1, limit=4
  $region2: #{_cbl_block_impl.2} parent=0 // loop_pre_header
    _
  $region3: #{_cbl_block_impl.2} parent=0 // loop_header
    %s11 = sphi 0, %s15
    %p12 = scmp.ge.s32.totalorder %s11, 4
    %s18 = sphi 0, %s30
    %s19 = sphi 0, %s26
    %s20 = sphi 0, %s18
    %s21 = sphi 0, %s19
    %s22 = sphi 0, %s20
    %s23 = sphi 0, %s21
    %s33 = sphi 0, %s35
    %s36 = sphi 0, %s33
    %s37 = sphi 0, %s36
    %s53 = sphi 0, %s37
    %s57 = sphi 0, %s57
    %s59 = sphi 0, %s57
    %s60 = sphi 0, %s59
    %s74 = sphi 0, %s60
    %s82 = sphi 0, %s84
    %s85 = sphi 0, %s82
    %s86 = sphi 0, %s85
    %s102 = sphi 0, %s86
    %s108 = sphi 0, %s110
    %s111 = sphi 0, %s108
    %s112 = sphi 0, %s111
    %s128 = sphi 0, %s112
    %s134 = sphi 0, %s136
    %s137 = sphi 0, %s134
    %s138 = sphi 0, %s137
    %s154 = sphi 0, %s138
  $region4: #{_cbl_block_impl.2} parent=0 // loop_header_branch
    %14 = sbr.rel (%p12) target = $region8
  $region5: #{_cbl_block_impl.2} parent=0 // loop_body
    %s16 = ssub.s32 %s11, 1
    %s17 = ssub.s32 %s11, 2
    %s24 = sadd.s32 1, %s19
    %p25 = scmp.ge.s32.totalorder %s24, 1
    %s26 = scalar_select %p25, 0, %s24
    %s27 = sadd.s32 1, %s18
    %s28 = scalar_select %p25, %s27, %s18
    %p29 = scmp.ge.s32.totalorder %s28, 2
    %s30 = scalar_select %p29, 0, %s28
    %s31 = ssub.s32 %s18, %s30
    %p32 = scmp.eq.s32.totalorder %s31, 0
    %s34 = sadd.s32 %s33, 1
    %s35 = scalar_select %p32, %s33, %s34
    %p38 = pneg %p32
    %p39 = scmp.eq.s32.totalorder %s11, 1
    %p40 = por %p38, %p39
    %p41 = scmp.ne.s32.totalorder %s33, %s36
    %p42 = scmp.eq.s32.totalorder %s11, 0
    %p43 = por %p41, %p42
    %p44 = scmp.ne.s32.totalorder %s33, %s36
    %p45 = scmp.eq.s32.totalorder %s16, 1
    %p46 = por %p44, %p45
    %p47 = scmp.ne.s32.totalorder %s36, %s37
    %p48 = scmp.eq.s32.totalorder %s16, 0
    %p49 = por %p47, %p48
    %p50 = scmp.ne.s32.totalorder %s36, %s37
    %p51 = scmp.eq.s32.totalorder %s17, 1
    %p52 = por %p50, %p51
    %p54 = scmp.ne.s32.totalorder %s37, %s53
    %p55 = scmp.eq.s32.totalorder %s17, 0
    %p56 = por %p54, %p55
    %s58 = sadd.s32 %s57, 1
    %p61 = scmp.eq.s32.totalorder %s11, 1
    %p62 = scmp.ne.s32.totalorder %s57, %s59
    %p63 = scmp.eq.s32.totalorder %s11, 0
    %p64 = por %p62, %p63
    %p65 = scmp.ne.s32.totalorder %s57, %s59
    %p66 = scmp.eq.s32.totalorder %s16, 1
    %p67 = por %p65, %p66
    %p68 = scmp.ne.s32.totalorder %s59, %s60
    %p69 = scmp.eq.s32.totalorder %s16, 0
    %p70 = por %p68, %p69
    %p71 = scmp.ne.s32.totalorder %s59, %s60
    %p72 = scmp.eq.s32.totalorder %s17, 1
    %p73 = por %p71, %p72
    %p75 = scmp.ne.s32.totalorder %s60, %s74
    %p76 = scmp.eq.s32.totalorder %s17, 0
    %p77 = por %p75, %p76
    %s78 = ssub.s32 %s18, %s30
    %s79 = ssub.s32 %s19, %s26
    %s80 = sor.u32 %s78, %s79
    %p81 = scmp.eq.s32.totalorder %s80, 0
    %s83 = sadd.s32 %s82, 1
    %s84 = scalar_select %p81, %s82, %s83
    %p87 = pneg %p81
    %p88 = scmp.eq.s32.totalorder %s11, 1
    %p89 = por %p87, %p88
    %p90 = scmp.ne.s32.totalorder %s82, %s85
    %p91 = scmp.eq.s32.totalorder %s11, 0
    %p92 = por %p90, %p91
    %p93 = scmp.ne.s32.totalorder %s82, %s85
    %p94 = scmp.eq.s32.totalorder %s16, 1
    %p95 = por %p93, %p94
    %p96 = scmp.ne.s32.totalorder %s85, %s86
    %p97 = scmp.eq.s32.totalorder %s16, 0
    %p98 = por %p96, %p97
    %p99 = scmp.ne.s32.totalorder %s85, %s86
    %p100 = scmp.eq.s32.totalorder %s17, 1
    %p101 = por %p99, %p100
    %p103 = scmp.ne.s32.totalorder %s86, %s102
    %p104 = scmp.eq.s32.totalorder %s17, 0
    %p105 = por %p103, %p104
    %s106 = ssub.s32 %s18, %s30
    %p107 = scmp.eq.s32.totalorder %s106, 0
    %s109 = sadd.s32 %s108, 1
    %s110 = scalar_select %p107, %s108, %s109
    %p113 = pneg %p107
    %p114 = scmp.eq.s32.totalorder %s11, 1
    %p115 = por %p113, %p114
    %p116 = scmp.ne.s32.totalorder %s108, %s111
    %p117 = scmp.eq.s32.totalorder %s11, 0
    %p118 = por %p116, %p117
    %p119 = scmp.ne.s32.totalorder %s108, %s111
    %p120 = scmp.eq.s32.totalorder %s16, 1
    %p121 = por %p119, %p120
    %p122 = scmp.ne.s32.totalorder %s111, %s112
    %p123 = scmp.eq.s32.totalorder %s16, 0
    %p124 = por %p122, %p123
    %p125 = scmp.ne.s32.totalorder %s111, %s112
    %p126 = scmp.eq.s32.totalorder %s17, 1
    %p127 = por %p125, %p126
    %p129 = scmp.ne.s32.totalorder %s112, %s128
    %p130 = scmp.eq.s32.totalorder %s17, 0
    %p131 = por %p129, %p130
    %s132 = ssub.s32 %s18, %s30
    %p133 = scmp.eq.s32.totalorder %s132, 0
    %s135 = sadd.s32 %s134, 1
    %s136 = scalar_select %p133, %s134, %s135
    %p139 = pneg %p133
    %p140 = scmp.eq.s32.totalorder %s11, 1
    %p141 = por %p139, %p140
    %p142 = scmp.ne.s32.totalorder %s134, %s137
    %p143 = scmp.eq.s32.totalorder %s11, 0
    %p144 = por %p142, %p143
    %p145 = scmp.ne.s32.totalorder %s134, %s137
    %p146 = scmp.eq.s32.totalorder %s16, 1
    %p147 = por %p145, %p146
    %p148 = scmp.ne.s32.totalorder %s137, %s138
    %p149 = scmp.eq.s32.totalorder %s16, 0
    %p150 = por %p148, %p149
    %p151 = scmp.ne.s32.totalorder %s137, %s138
    %p152 = scmp.eq.s32.totalorder %s17, 1
    %p153 = por %p151, %p152
    %p155 = scmp.ne.s32.totalorder %s138, %s154
    %p156 = scmp.eq.s32.totalorder %s17, 0
    %p157 = por %p155, %p156
    %p158 = scmp.le.s32.totalorder 1, %s11
    %p159 = scmp.lt.s32.totalorder %s11, 3
    %p160 = pnand %p158, %p159
    %p161 = pneg %p160
    // Predicated region
    $region9: #{_cbl_block_impl.2} parent=5 // pred_check
      _
    $region10: #{_cbl_block_impl.2} parent=5 // pred_check_branch
      %163 = sbr.rel (%p160) target = $region12
    $region11: #{_cbl_block_impl.2} parent=5 // pred_region
      %s164 = ssub.s32 %s11, 1
      // Predicated region
      $region13: #{_cbl_block_impl.2} parent=11 // pred_check
        %p165 = pneg %p70
      $region14: #{_cbl_block_impl.2} parent=11 // pred_check_branch
        %167 = sbr.rel (%p165) target = $region16
      $region15: #{_cbl_block_impl.2} parent=11 // pred_region
        _
      $region16: #{_cbl_block_impl.2} parent=11 // pred_fallthru
        _
    $region12: #{_cbl_block_impl.2} parent=5 // pred_fallthru
      _
    %p168 = scmp.lt.s32.totalorder %s11, 2
    // Predicated region
    $region17: #{_cbl_block_impl.2} parent=5 // pred_check
      %p169 = pneg %p168
    $region18: #{_cbl_block_impl.2} parent=5 // pred_check_branch
      %171 = sbr.rel (%p169) target = $region20
    $region19: #{_cbl_block_impl.2} parent=5 // pred_region
      // Predicated region
      $region21: #{_cbl_block_impl.2} parent=19 // pred_check
        %p172 = pneg %p43
      $region22: #{_cbl_block_impl.2} parent=19 // pred_check_branch
        %174 = sbr.rel (%p172) target = $region24
      $region23: #{_cbl_block_impl.2} parent=19 // pred_region
        %p175 = scmp.lt.s32.totalorder %s18, 1
        %s176 = scalar_select %p175, %s18, 1
        %s177 = smul.addr %s176, 15
        %s178 = smul.addr %s177, 8
        %s179 = scalar_lea.vmem %s0, %s178
      $region24: #{_cbl_block_impl.2} parent=19 // pred_fallthru
        _
    $region20: #{_cbl_block_impl.2} parent=5 // pred_fallthru
      _
    %p180 = scmp.le.s32.totalorder 1, %s11
    %p181 = scmp.lt.s32.totalorder %s11, 3
    %p182 = pnand %p180, %p181
    %p183 = pneg %p182
    // Predicated region
    $region25: #{_cbl_block_impl.2} parent=5 // pred_check
      _
    $region26: #{_cbl_block_impl.2} parent=5 // pred_check_branch
      %185 = sbr.rel (%p182) target = $region28
    $region27: #{_cbl_block_impl.2} parent=5 // pred_region
      %s186 = ssub.s32 %s11, 1
      %p187 = scmp.lt.s32.totalorder %s20, 1
      %s188 = scalar_select %p187, %s20, 1
      %s189 = smul.addr %s188, 15
      %s190 = smul.addr %s189, 8
      %s191 = scalar_lea.vmem %s0, %s190
      %p192 = pneg %p49
      %p193 = pneg %p46
      %p194 = pneg %p70
      %p195 = pneg %p67
      %p196 = pneg %p98
      %p197 = pneg %p95
      %s198 = smul.u32 8, %s21
      %p199 = scmp.lt.s32.totalorder %s20, 1
      %s200 = scalar_select %p199, %s20, 1
      %p201 = scmp.lt.s32.totalorder %s198, 7
      %s202 = scalar_select %p201, %s198, 7
      %s203 = smul.addr %s200, 8
      %s204 = sadd.s32 %s202, %s203
      %s205 = smul.addr %s204, 8
      %s206 = scalar_lea.vmem %s2, %s205
      %p207 = pneg %p124
      %p208 = pneg %p121
      %p209 = scmp.lt.s32.totalorder %s20, 1
      %s210 = scalar_select %p209, %s20, 1
      %s211 = scalar_lea.vmem %s3, %s210
      %p212 = pneg %p150
      %p213 = pneg %p147
      %p214 = scmp.lt.s32.totalorder %s20, 1
      %s215 = scalar_select %p214, %s20, 1
      %s216 = scalar_lea.vmem %s4, %s215
      %p217 = scmp.lt.s32.totalorder %s20, 1
      %s218 = scalar_select %p217, %s20, 1
      %s219 = smul.addr %s218, 15
      %s220 = smul.addr %s219, 8
      %s221 = scalar_lea.vmem %s0, %s220
      %s222 = smul.u32 8, %s21
      %p223 = scmp.lt.s32.totalorder %s20, 1
      %s224 = scalar_select %p223, %s20, 1
      %p225 = scmp.lt.s32.totalorder %s222, 7
      %s226 = scalar_select %p225, %s222, 7
      %s227 = smul.addr %s224, 8
      %s228 = sadd.s32 %s226, %s227
      %s229 = smul.addr %s228, 8
      %s230 = scalar_lea.vmem %s2, %s229
      %s231 = smul.u32 8, %s21
      %p232 = scmp.lt.s32.totalorder %s20, 1
      %s233 = scalar_select %p232, %s20, 1
      %s234 = scalar_lea.vmem %s3, %s233
      %p235 = scmp.lt.s32.totalorder %s20, 1
      %s236 = scalar_select %p235, %s20, 1
      %s237 = scalar_lea.vmem %s4, %s236
      %s238 = smul.u32 %s21, 64
      %s239 = scalar_lea.vmem %s221, %s238
      %v240 = vld [vmem:[%s239] sm:$0xff]
      %v241 = vld [vmem:[%s239 + $0x8] sm:$0xff]
      %v242 = vld [vmem:[%s239 + $0x10] sm:$0xff]
      %v243 = vld [vmem:[%s239 + $0x18] sm:$0xff]
      %v244 = vld [vmem:[%s239 + $0x20] sm:$0xff]
      %v245 = vld [vmem:[%s239 + $0x28] sm:$0xff]
      %v246 = vld [vmem:[%s239 + $0x30] sm:$0xff]
      %v247 = vld [vmem:[%s239 + $0x38] sm:$0xff]
      %vm248 = vcmask 7168
      %249 = vst.msk [vmem:[#allocation2] sm:$0xff] %vm248, %v240
      %250 = vst.msk [vmem:[#allocation2 + $0x8] sm:$0xff] %vm248, %v241
      %251 = vst.msk [vmem:[#allocation2 + $0x10] sm:$0xff] %vm248, %v242
      %252 = vst.msk [vmem:[#allocation2 + $0x18] sm:$0xff] %vm248, %v243
      %253 = vst.msk [vmem:[#allocation2 + $0x20] sm:$0xff] %vm248, %v244
      %254 = vst.msk [vmem:[#allocation2 + $0x28] sm:$0xff] %vm248, %v245
      %255 = vst.msk [vmem:[#allocation2 + $0x30] sm:$0xff] %vm248, %v246
      %256 = vst.msk [vmem:[#allocation2 + $0x38] sm:$0xff] %vm248, %v247
      %s257 = sadd.s32 %s238, 1
      %s258 = scalar_lea.vmem %s221, %s257
      %v259 = vld [vmem:[%s258] sm:$0xff]
      %v260 = vld [vmem:[%s258 + $0x8] sm:$0xff]
      %v261 = vld [vmem:[%s258 + $0x10] sm:$0xff]
      %v262 = vld [vmem:[%s258 + $0x18] sm:$0xff]
      %v263 = vld [vmem:[%s258 + $0x20] sm:$0xff]
      %v264 = vld [vmem:[%s258 + $0x28] sm:$0xff]
      %v265 = vld [vmem:[%s258 + $0x30] sm:$0xff]
      %v266 = vld [vmem:[%s258 + $0x38] sm:$0xff]
      %275 = vrot.lane.b32.xlu0 %v259, 1
      %v276 = vpop.permute.xlu0 %275
      %277 = vrot.lane.b32.xlu0 %v260, 1
      %v278 = vpop.permute.xlu0 %277
      %279 = vrot.lane.b32.xlu0 %v261, 1
      %v280 = vpop.permute.xlu0 %279
      %281 = vrot.lane.b32.xlu0 %v262, 1
      %v282 = vpop.permute.xlu0 %281
      %283 = vrot.lane.b32.xlu0 %v263, 1
      %v284 = vpop.permute.xlu0 %283
      %285 = vrot.lane.b32.xlu0 %v264, 1
      %v286 = vpop.permute.xlu0 %285
      %287 = vrot.lane.b32.xlu0 %v265, 1
      %v288 = vpop.permute.xlu0 %287
      %289 = vrot.lane.b32.xlu0 %v266, 1
      %v290 = vpop.permute.xlu0 %289
      %vm299 = vcmask 15368
      %300 = vst.msk [vmem:[#allocation2] sm:$0xff] %vm299, %v276
      %301 = vst.msk [vmem:[#allocation2 + $0x8] sm:$0xff] %vm299, %v278
      %302 = vst.msk [vmem:[#allocation2 + $0x10] sm:$0xff] %vm299, %v280
      %303 = vst.msk [vmem:[#allocation2 + $0x18] sm:$0xff] %vm299, %v282
      %304 = vst.msk [vmem:[#allocation2 + $0x20] sm:$0xff] %vm299, %v284
      %305 = vst.msk [vmem:[#allocation2 + $0x28] sm:$0xff] %vm299, %v286
      %306 = vst.msk [vmem:[#allocation2 + $0x30] sm:$0xff] %vm299, %v288
      %307 = vst.msk [vmem:[#allocation2 + $0x38] sm:$0xff] %vm299, %v290
      %s308 = sadd.s32 %s238, 2
      %s309 = scalar_lea.vmem %s221, %s308
      %v310 = vld [vmem:[%s309] sm:$0xff]
      %v311 = vld [vmem:[%s309 + $0x8] sm:$0xff]
      %v312 = vld [vmem:[%s309 + $0x10] sm:$0xff]
      %v313 = vld [vmem:[%s309 + $0x18] sm:$0xff]
      %v314 = vld [vmem:[%s309 + $0x20] sm:$0xff]
      %v315 = vld [vmem:[%s309 + $0x28] sm:$0xff]
      %v316 = vld [vmem:[%s309 + $0x30] sm:$0xff]
      %v317 = vld [vmem:[%s309 + $0x38] sm:$0xff]
      %326 = vrot.lane.b32.xlu0 %v310, 2
      %v327 = vpop.permute.xlu0 %326
      %328 = vrot.lane.b32.xlu0 %v311, 2
      %v329 = vpop.permute.xlu0 %328
      %330 = vrot.lane.b32.xlu0 %v312, 2
      %v331 = vpop.permute.xlu0 %330
      %332 = vrot.lane.b32.xlu0 %v313, 2
      %v333 = vpop.permute.xlu0 %332
      %334 = vrot.lane.b32.xlu0 %v314, 2
      %v335 = vpop.permute.xlu0 %334
      %336 = vrot.lane.b32.xlu0 %v315, 2
      %v337 = vpop.permute.xlu0 %336
      %338 = vrot.lane.b32.xlu0 %v316, 2
      %v339 = vpop.permute.xlu0 %338
      %340 = vrot.lane.b32.xlu0 %v317, 2
      %v341 = vpop.permute.xlu0 %340
      %vm350 = vcmask 23568
      %351 = vst.msk [vmem:[#allocation2] sm:$0xff] %vm350, %v327
      %352 = vst.msk [vmem:[#allocation2 + $0x8] sm:$0xff] %vm350, %v329
      %353 = vst.msk [vmem:[#allocation2 + $0x10] sm:$0xff] %vm350, %v331
      %354 = vst.msk [vmem:[#allocation2 + $0x18] sm:$0xff] %vm350, %v333
      %355 = vst.msk [vmem:[#allocation2 + $0x20] sm:$0xff] %vm350, %v335
      %356 = vst.msk [vmem:[#allocation2 + $0x28] sm:$0xff] %vm350, %v337
      %357 = vst.msk [vmem:[#allocation2 + $0x30] sm:$0xff] %vm350, %v339
      %358 = vst.msk [vmem:[#allocation2 + $0x38] sm:$0xff] %vm350, %v341
      %s359 = sadd.s32 %s238, 3
      %s360 = scalar_lea.vmem %s221, %s359
      %v361 = vld [vmem:[%s360] sm:$0xff]
      %v362 = vld [vmem:[%s360 + $0x8] sm:$0xff]
      %v363 = vld [vmem:[%s360 + $0x10] sm:$0xff]
      %v364 = vld [vmem:[%s360 + $0x18] sm:$0xff]
      %v365 = vld [vmem:[%s360 + $0x20] sm:$0xff]
      %v366 = vld [vmem:[%s360 + $0x28] sm:$0xff]
      %v367 = vld [vmem:[%s360 + $0x30] sm:$0xff]
      %v368 = vld [vmem:[%s360 + $0x38] sm:$0xff]
      %377 = vrot.lane.b32.xlu0 %v361, 3
      %v378 = vpop.permute.xlu0 %377
      %379 = vrot.lane.b32.xlu0 %v362, 3
      %v380 = vpop.permute.xlu0 %379
      %381 = vrot.lane.b32.xlu0 %v363, 3
      %v382 = vpop.permute.xlu0 %381
      %383 = vrot.lane.b32.xlu0 %v364, 3
      %v384 = vpop.permute.xlu0 %383
      %385 = vrot.lane.b32.xlu0 %v365, 3
      %v386 = vpop.permute.xlu0 %385
      %387 = vrot.lane.b32.xlu0 %v366, 3
      %v388 = vpop.permute.xlu0 %387
      %389 = vrot.lane.b32.xlu0 %v367, 3
      %v390 = vpop.permute.xlu0 %389
      %391 = vrot.lane.b32.xlu0 %v368, 3
      %v392 = vpop.permute.xlu0 %391
      %vm401 = vcmask 31768
      %402 = vst.msk [vmem:[#allocation2] sm:$0xff] %vm401, %v378
      %403 = vst.msk [vmem:[#allocation2 + $0x8] sm:$0xff] %vm401, %v380
      %404 = vst.msk [vmem:[#allocation2 + $0x10] sm:$0xff] %vm401, %v382
      %405 = vst.msk [vmem:[#allocation2 + $0x18] sm:$0xff] %vm401, %v384
      %406 = vst.msk [vmem:[#allocation2 + $0x20] sm:$0xff] %vm401, %v386
      %407 = vst.msk [vmem:[#allocation2 + $0x28] sm:$0xff] %vm401, %v388
      %408 = vst.msk [vmem:[#allocation2 + $0x30] sm:$0xff] %vm401, %v390
      %409 = vst.msk [vmem:[#allocation2 + $0x38] sm:$0xff] %vm401, %v392
      %s410 = sadd.s32 %s238, 4
      %s411 = scalar_lea.vmem %s221, %s410
      %v412 = vld [vmem:[%s411] sm:$0xff]
      %v413 = vld [vmem:[%s411 + $0x8] sm:$0xff]
      %v414 = vld [vmem:[%s411 + $0x10] sm:$0xff]
      %v415 = vld [vmem:[%s411 + $0x18] sm:$0xff]
      %v416 = vld [vmem:[%s411 + $0x20] sm:$0xff]
      %v417 = vld [vmem:[%s411 + $0x28] sm:$0xff]
      %v418 = vld [vmem:[%s411 + $0x30] sm:$0xff]
      %v419 = vld [vmem:[%s411 + $0x38] sm:$0xff]
      %428 = vrot.lane.b32.xlu0 %v412, 4
      %v429 = vpop.permute.xlu0 %428
      %430 = vrot.lane.b32.xlu0 %v413, 4
      %v431 = vpop.permute.xlu0 %430
      %432 = vrot.lane.b32.xlu0 %v414, 4
      %v433 = vpop.permute.xlu0 %432
      %434 = vrot.lane.b32.xlu0 %v415, 4
      %v435 = vpop.permute.xlu0 %434
      %436 = vrot.lane.b32.xlu0 %v416, 4
      %v437 = vpop.permute.xlu0 %436
      %438 = vrot.lane.b32.xlu0 %v417, 4
      %v439 = vpop.permute.xlu0 %438
      %440 = vrot.lane.b32.xlu0 %v418, 4
      %v441 = vpop.permute.xlu0 %440
      %442 = vrot.lane.b32.xlu0 %v419, 4
      %v443 = vpop.permute.xlu0 %442
      %vm452 = vcmask 39968
      %453 = vst.msk [vmem:[#allocation2] sm:$0xff] %vm452, %v429
      %454 = vst.msk [vmem:[#allocation2 + $0x8] sm:$0xff] %vm452, %v431
      %455 = vst.msk [vmem:[#allocation2 + $0x10] sm:$0xff] %vm452, %v433
      %456 = vst.msk [vmem:[#allocation2 + $0x18] sm:$0xff] %vm452, %v435
      %457 = vst.msk [vmem:[#allocation2 + $0x20] sm:$0xff] %vm452, %v437
      %458 = vst.msk [vmem:[#allocation2 + $0x28] sm:$0xff] %vm452, %v439
      %459 = vst.msk [vmem:[#allocation2 + $0x30] sm:$0xff] %vm452, %v441
      %460 = vst.msk [vmem:[#allocation2 + $0x38] sm:$0xff] %vm452, %v443
      %s461 = sadd.s32 %s238, 5
      %s462 = scalar_lea.vmem %s221, %s461
      %v463 = vld [vmem:[%s462] sm:$0xff]
      %v464 = vld [vmem:[%s462 + $0x8] sm:$0xff]
      %v465 = vld [vmem:[%s462 + $0x10] sm:$0xff]
      %v466 = vld [vmem:[%s462 + $0x18] sm:$0xff]
      %v467 = vld [vmem:[%s462 + $0x20] sm:$0xff]
      %v468 = vld [vmem:[%s462 + $0x28] sm:$0xff]
      %v469 = vld [vmem:[%s462 + $0x30] sm:$0xff]
      %v470 = vld [vmem:[%s462 + $0x38] sm:$0xff]
      %479 = vrot.lane.b32.xlu0 %v463, 5
      %v480 = vpop.permute.xlu0 %479
      %481 = vrot.lane.b32.xlu0 %v464, 5
      %v482 = vpop.permute.xlu0 %481
      %483 = vrot.lane.b32.xlu0 %v465, 5
      %v484 = vpop.permute.xlu0 %483
      %485 = vrot.lane.b32.xlu0 %v466, 5
      %v486 = vpop.permute.xlu0 %485
      %487 = vrot.lane.b32.xlu0 %v467, 5
      %v488 = vpop.permute.xlu0 %487
      %489 = vrot.lane.b32.xlu0 %v468, 5
      %v490 = vpop.permute.xlu0 %489
      %491 = vrot.lane.b32.xlu0 %v469, 5
      %v492 = vpop.permute.xlu0 %491
      %493 = vrot.lane.b32.xlu0 %v470, 5
      %v494 = vpop.permute.xlu0 %493
      %vm503 = vcmask 48168
      %504 = vst.msk [vmem:[#allocation2] sm:$0xff] %vm503, %v480
      %505 = vst.msk [vmem:[#allocation2 + $0x8] sm:$0xff] %vm503, %v482
      %506 = vst.msk [vmem:[#allocation2 + $0x10] sm:$0xff] %vm503, %v484
      %507 = vst.msk [vmem:[#allocation2 + $0x18] sm:$0xff] %vm503, %v486
      %508 = vst.msk [vmem:[#allocation2 + $0x20] sm:$0xff] %vm503, %v488
      %509 = vst.msk [vmem:[#allocation2 + $0x28] sm:$0xff] %vm503, %v490
      %510 = vst.msk [vmem:[#allocation2 + $0x30] sm:$0xff] %vm503, %v492
      %511 = vst.msk [vmem:[#allocation2 + $0x38] sm:$0xff] %vm503, %v494
      %s512 = sadd.s32 %s238, 6
      %s513 = scalar_lea.vmem %s221, %s512
      %v514 = vld [vmem:[%s513] sm:$0xff]
      %v515 = vld [vmem:[%s513 + $0x8] sm:$0xff]
      %v516 = vld [vmem:[%s513 + $0x10] sm:$0xff]
      %v517 = vld [vmem:[%s513 + $0x18] sm:$0xff]
      %v518 = vld [vmem:[%s513 + $0x20] sm:$0xff]
      %v519 = vld [vmem:[%s513 + $0x28] sm:$0xff]
      %v520 = vld [vmem:[%s513 + $0x30] sm:$0xff]
      %v521 = vld [vmem:[%s513 + $0x38] sm:$0xff]
      %530 = vrot.lane.b32.xlu0 %v514, 6
      %v531 = vpop.permute.xlu0 %530
      %532 = vrot.lane.b32.xlu0 %v515, 6
      %v533 = vpop.permute.xlu0 %532
      %534 = vrot.lane.b32.xlu0 %v516, 6
      %v535 = vpop.permute.xlu0 %534
      %536 = vrot.lane.b32.xlu0 %v517, 6
      %v537 = vpop.permute.xlu0 %536
      %538 = vrot.lane.b32.xlu0 %v518, 6
      %v539 = vpop.permute.xlu0 %538
      %540 = vrot.lane.b32.xlu0 %v519, 6
      %v541 = vpop.permute.xlu0 %540
      %542 = vrot.lane.b32.xlu0 %v520, 6
      %v543 = vpop.permute.xlu0 %542
      %544 = vrot.lane.b32.xlu0 %v521, 6
      %v545 = vpop.permute.xlu0 %544
      %vm554 = vcmask 56368
      %555 = vst.msk [vmem:[#allocation2] sm:$0xff] %vm554, %v531
      %556 = vst.msk [vmem:[#allocation2 + $0x8] sm:$0xff] %vm554, %v533
      %557 = vst.msk [vmem:[#allocation2 + $0x10] sm:$0xff] %vm554, %v535
      %558 = vst.msk [vmem:[#allocation2 + $0x18] sm:$0xff] %vm554, %v537
      %559 = vst.msk [vmem:[#allocation2 + $0x20] sm:$0xff] %vm554, %v539
      %560 = vst.msk [vmem:[#allocation2 + $0x28] sm:$0xff] %vm554, %v541
      %561 = vst.msk [vmem:[#allocation2 + $0x30] sm:$0xff] %vm554, %v543
      %562 = vst.msk [vmem:[#allocation2 + $0x38] sm:$0xff] %vm554, %v545
      %s563 = sadd.s32 %s238, 7
      %s564 = scalar_lea.vmem %s221, %s563
      %v565 = vld [vmem:[%s564] sm:$0xff]
      %v566 = vld [vmem:[%s564 + $0x8] sm:$0xff]
      %v567 = vld [vmem:[%s564 + $0x10] sm:$0xff]
      %v568 = vld [vmem:[%s564 + $0x18] sm:$0xff]
      %v569 = vld [vmem:[%s564 + $0x20] sm:$0xff]
      %v570 = vld [vmem:[%s564 + $0x28] sm:$0xff]
      %v571 = vld [vmem:[%s564 + $0x30] sm:$0xff]
      %v572 = vld [vmem:[%s564 + $0x38] sm:$0xff]
      %581 = vrot.lane.b32.xlu0 %v565, 7
      %v582 = vpop.permute.xlu0 %581
      %583 = vrot.lane.b32.xlu0 %v566, 7
      %v584 = vpop.permute.xlu0 %583
      %585 = vrot.lane.b32.xlu0 %v567, 7
      %v586 = vpop.permute.xlu0 %585
      %587 = vrot.lane.b32.xlu0 %v568, 7
      %v588 = vpop.permute.xlu0 %587
      %589 = vrot.lane.b32.xlu0 %v569, 7
      %v590 = vpop.permute.xlu0 %589
      %591 = vrot.lane.b32.xlu0 %v570, 7
      %v592 = vpop.permute.xlu0 %591
      %593 = vrot.lane.b32.xlu0 %v571, 7
      %v594 = vpop.permute.xlu0 %593
      %595 = vrot.lane.b32.xlu0 %v572, 7
      %v596 = vpop.permute.xlu0 %595
      %vm605 = vcmask 64568
      %606 = vst.msk [vmem:[#allocation2] sm:$0xff] %vm605, %v582
      %607 = vst.msk [vmem:[#allocation2 + $0x8] sm:$0xff] %vm605, %v584
      %608 = vst.msk [vmem:[#allocation2 + $0x10] sm:$0xff] %vm605, %v586
      %609 = vst.msk [vmem:[#allocation2 + $0x18] sm:$0xff] %vm605, %v588
      %610 = vst.msk [vmem:[#allocation2 + $0x20] sm:$0xff] %vm605, %v590
      %611 = vst.msk [vmem:[#allocation2 + $0x28] sm:$0xff] %vm605, %v592
      %612 = vst.msk [vmem:[#allocation2 + $0x30] sm:$0xff] %vm605, %v594
      %613 = vst.msk [vmem:[#allocation2 + $0x38] sm:$0xff] %vm605, %v596
      %s614 = sadd.s32 %s238, 8
      %s615 = scalar_lea.vmem %s221, %s614
      %v616 = vld [vmem:[%s615] sm:$0xff]
      %v617 = vld [vmem:[%s615 + $0x8] sm:$0xff]
      %v618 = vld [vmem:[%s615 + $0x10] sm:$0xff]
      %v619 = vld [vmem:[%s615 + $0x18] sm:$0xff]
      %v620 = vld [vmem:[%s615 + $0x20] sm:$0xff]
      %v621 = vld [vmem:[%s615 + $0x28] sm:$0xff]
      %v622 = vld [vmem:[%s615 + $0x30] sm:$0xff]
      %v623 = vld [vmem:[%s615 + $0x38] sm:$0xff]
      %632 = vrot.lane.b32.xlu0 %v616, 8
      %v633 = vpop.permute.xlu0 %632
      %634 = vrot.lane.b32.xlu0 %v617, 8
      %v635 = vpop.permute.xlu0 %634
      %636 = vrot.lane.b32.xlu0 %v618, 8
      %v637 = vpop.permute.xlu0 %636
      %638 = vrot.lane.b32.xlu0 %v619, 8
      %v639 = vpop.permute.xlu0 %638
      %640 = vrot.lane.b32.xlu0 %v620, 8
      %v641 = vpop.permute.xlu0 %640
      %642 = vrot.lane.b32.xlu0 %v621, 8
      %v643 = vpop.permute.xlu0 %642
      %644 = vrot.lane.b32.xlu0 %v622, 8
      %v645 = vpop.permute.xlu0 %644
      %646 = vrot.lane.b32.xlu0 %v623, 8
      %v647 = vpop.permute.xlu0 %646
      %vm656 = vcmask 72768
      %657 = vst.msk [vmem:[#allocation2] sm:$0xff] %vm656, %v633
      %658 = vst.msk [vmem:[#allocation2 + $0x8] sm:$0xff] %vm656, %v635
      %659 = vst.msk [vmem:[#allocation2 + $0x10] sm:$0xff] %vm656, %v637
      %660 = vst.msk [vmem:[#allocation2 + $0x18] sm:$0xff] %vm656, %v639
      %661 = vst.msk [vmem:[#allocation2 + $0x20] sm:$0xff] %vm656, %v641
      %662 = vst.msk [vmem:[#allocation2 + $0x28] sm:$0xff] %vm656, %v643
      %663 = vst.msk [vmem:[#allocation2 + $0x30] sm:$0xff] %vm656, %v645
      %664 = vst.msk [vmem:[#allocation2 + $0x38] sm:$0xff] %vm656, %v647
      %s665 = sadd.s32 %s238, 9
      %s666 = scalar_lea.vmem %s221, %s665
      %v667 = vld [vmem:[%s666] sm:$0xff]
      %v668 = vld [vmem:[%s666 + $0x8] sm:$0xff]
      %v669 = vld [vmem:[%s666 + $0x10] sm:$0xff]
      %v670 = vld [vmem:[%s666 + $0x18] sm:$0xff]
      %v671 = vld [vmem:[%s666 + $0x20] sm:$0xff]
      %v672 = vld [vmem:[%s666 + $0x28] sm:$0xff]
      %v673 = vld [vmem:[%s666 + $0x30] sm:$0xff]
      %v674 = vld [vmem:[%s666 + $0x38] sm:$0xff]
      %683 = vrot.lane.b32.xlu0 %v667, 9
      %v684 = vpop.permute.xlu0 %683
      %685 = vrot.lane.b32.xlu0 %v668, 9
      %v686 = vpop.permute.xlu0 %685
      %687 = vrot.lane.b32.xlu0 %v669, 9
      %v688 = vpop.permute.xlu0 %687
      %689 = vrot.lane.b32.xlu0 %v670, 9
      %v690 = vpop.permute.xlu0 %689
      %691 = vrot.lane.b32.xlu0 %v671, 9
      %v692 = vpop.permute.xlu0 %691
      %693 = vrot.lane.b32.xlu0 %v672, 9
      %v694 = vpop.permute.xlu0 %693
      %695 = vrot.lane.b32.xlu0 %v673, 9
      %v696 = vpop.permute.xlu0 %695
      %697 = vrot.lane.b32.xlu0 %v674, 9
      %v698 = vpop.permute.xlu0 %697
      %vm707 = vcmask 80968
      %708 = vst.msk [vmem:[#allocation2] sm:$0xff] %vm707, %v684
      %709 = vst.msk [vmem:[#allocation2 + $0x8] sm:$0xff] %vm707, %v686
      %710 = vst.msk [vmem:[#allocation2 + $0x10] sm:$0xff] %vm707, %v688
      %711 = vst.msk [vmem:[#allocation2 + $0x18] sm:$0xff] %vm707, %v690
      %712 = vst.msk [vmem:[#allocation2 + $0x20] sm:$0xff] %vm707, %v692
      %713 = vst.msk [vmem:[#allocation2 + $0x28] sm:$0xff] %vm707, %v694
      %714 = vst.msk [vmem:[#allocation2 + $0x30] sm:$0xff] %vm707, %v696
      %715 = vst.msk [vmem:[#allocation2 + $0x38] sm:$0xff] %vm707, %v698
      %s716 = sadd.s32 %s238, 10
      %s717 = scalar_lea.vmem %s221, %s716
      %v718 = vld [vmem:[%s717] sm:$0xff]
      %v719 = vld [vmem:[%s717 + $0x8] sm:$0xff]
      %v720 = vld [vmem:[%s717 + $0x10] sm:$0xff]
      %v721 = vld [vmem:[%s717 + $0x18] sm:$0xff]
      %v722 = vld [vmem:[%s717 + $0x20] sm:$0xff]
      %v723 = vld [vmem:[%s717 + $0x28] sm:$0xff]
      %v724 = vld [vmem:[%s717 + $0x30] sm:$0xff]
      %v725 = vld [vmem:[%s717 + $0x38] sm:$0xff]
      %734 = vrot.lane.b32.xlu0 %v718, 10
      %v735 = vpop.permute.xlu0 %734
      %736 = vrot.lane.b32.xlu0 %v719, 10
      %v737 = vpop.permute.xlu0 %736
      %738 = vrot.lane.b32.xlu0 %v720, 10
      %v739 = vpop.permute.xlu0 %738
      %740 = vrot.lane.b32.xlu0 %v721, 10
      %v741 = vpop.permute.xlu0 %740
      %742 = vrot.lane.b32.xlu0 %v722, 10
      %v743 = vpop.permute.xlu0 %742
      %744 = vrot.lane.b32.xlu0 %v723, 10
      %v745 = vpop.permute.xlu0 %744
      %746 = vrot.lane.b32.xlu0 %v724, 10
      %v747 = vpop.permute.xlu0 %746
      %748 = vrot.lane.b32.xlu0 %v725, 10
      %v749 = vpop.permute.xlu0 %748
      %vm758 = vcmask 89168
      %759 = vst.msk [vmem:[#allocation2] sm:$0xff] %vm758, %v735
      %760 = vst.msk [vmem:[#allocation2 + $0x8] sm:$0xff] %vm758, %v737
      %761 = vst.msk [vmem:[#allocation2 + $0x10] sm:$0xff] %vm758, %v739
      %762 = vst.msk [vmem:[#allocation2 + $0x18] sm:$0xff] %vm758, %v741
      %763 = vst.msk [vmem:[#allocation2 + $0x20] sm:$0xff] %vm758, %v743
      %764 = vst.msk [vmem:[#allocation2 + $0x28] sm:$0xff] %vm758, %v745
      %765 = vst.msk [vmem:[#allocation2 + $0x30] sm:$0xff] %vm758, %v747
      %766 = vst.msk [vmem:[#allocation2 + $0x38] sm:$0xff] %vm758, %v749
      %s767 = sadd.s32 %s238, 11
      %s768 = scalar_lea.vmem %s221, %s767
      %v769 = vld [vmem:[%s768] sm:$0xff]
      %v770 = vld [vmem:[%s768 + $0x8] sm:$0xff]
      %v771 = vld [vmem:[%s768 + $0x10] sm:$0xff]
      %v772 = vld [vmem:[%s768 + $0x18] sm:$0xff]
      %v773 = vld [vmem:[%s768 + $0x20] sm:$0xff]
      %v774 = vld [vmem:[%s768 + $0x28] sm:$0xff]
      %v775 = vld [vmem:[%s768 + $0x30] sm:$0xff]
      %v776 = vld [vmem:[%s768 + $0x38] sm:$0xff]
      %785 = vrot.lane.b32.xlu0 %v769, 11
      %v786 = vpop.permute.xlu0 %785
      %787 = vrot.lane.b32.xlu0 %v770, 11
      %v788 = vpop.permute.xlu0 %787
      %789 = vrot.lane.b32.xlu0 %v771, 11
      %v790 = vpop.permute.xlu0 %789
      %791 = vrot.lane.b32.xlu0 %v772, 11
      %v792 = vpop.permute.xlu0 %791
      %793 = vrot.lane.b32.xlu0 %v773, 11
      %v794 = vpop.permute.xlu0 %793
      %795 = vrot.lane.b32.xlu0 %v774, 11
      %v796 = vpop.permute.xlu0 %795
      %797 = vrot.lane.b32.xlu0 %v775, 11
      %v798 = vpop.permute.xlu0 %797
      %799 = vrot.lane.b32.xlu0 %v776, 11
      %v800 = vpop.permute.xlu0 %799
      %vm809 = vcmask 97368
      %810 = vst.msk [vmem:[#allocation2] sm:$0xff] %vm809, %v786
      %811 = vst.msk [vmem:[#allocation2 + $0x8] sm:$0xff] %vm809, %v788
      %812 = vst.msk [vmem:[#allocation2 + $0x10] sm:$0xff] %vm809, %v790
      %813 = vst.msk [vmem:[#allocation2 + $0x18] sm:$0xff] %vm809, %v792
      %814 = vst.msk [vmem:[#allocation2 + $0x20] sm:$0xff] %vm809, %v794
      %815 = vst.msk [vmem:[#allocation2 + $0x28] sm:$0xff] %vm809, %v796
      %816 = vst.msk [vmem:[#allocation2 + $0x30] sm:$0xff] %vm809, %v798
      %817 = vst.msk [vmem:[#allocation2 + $0x38] sm:$0xff] %vm809, %v800
      %s818 = sadd.s32 %s238, 12
      %s819 = scalar_lea.vmem %s221, %s818
      %v820 = vld [vmem:[%s819] sm:$0xff]
      %v821 = vld [vmem:[%s819 + $0x8] sm:$0xff]
      %v822 = vld [vmem:[%s819 + $0x10] sm:$0xff]
      %v823 = vld [vmem:[%s819 + $0x18] sm:$0xff]
      %v824 = vld [vmem:[%s819 + $0x20] sm:$0xff]
      %v825 = vld [vmem:[%s819 + $0x28] sm:$0xff]
      %v826 = vld [vmem:[%s819 + $0x30] sm:$0xff]
      %v827 = vld [vmem:[%s819 + $0x38] sm:$0xff]
      %836 = vrot.lane.b32.xlu0 %v820, 12
      %v837 = vpop.permute.xlu0 %836
      %838 = vrot.lane.b32.xlu0 %v821, 12
      %v839 = vpop.permute.xlu0 %838
      %840 = vrot.lane.b32.xlu0 %v822, 12
      %v841 = vpop.permute.xlu0 %840
      %842 = vrot.lane.b32.xlu0 %v823, 12
      %v843 = vpop.permute.xlu0 %842
      %844 = vrot.lane.b32.xlu0 %v824, 12
      %v845 = vpop.permute.xlu0 %844
      %846 = vrot.lane.b32.xlu0 %v825, 12
      %v847 = vpop.permute.xlu0 %846
      %848 = vrot.lane.b32.xlu0 %v826, 12
      %v849 = vpop.permute.xlu0 %848
      %850 = vrot.lane.b32.xlu0 %v827, 12
      %v851 = vpop.permute.xlu0 %850
      %vm860 = vcmask 105568
      %861 = vst.msk [vmem:[#allocation2] sm:$0xff] %vm860, %v837
      %862 = vst.msk [vmem:[#allocation2 + $0x8] sm:$0xff] %vm860, %v839
      %863 = vst.msk [vmem:[#allocation2 + $0x10] sm:$0xff] %vm860, %v841
      %864 = vst.msk [vmem:[#allocation2 + $0x18] sm:$0xff] %vm860, %v843
      %865 = vst.msk [vmem:[#allocation2 + $0x20] sm:$0xff] %vm860, %v845
      %866 = vst.msk [vmem:[#allocation2 + $0x28] sm:$0xff] %vm860, %v847
      %867 = vst.msk [vmem:[#allocation2 + $0x30] sm:$0xff] %vm860, %v849
      %868 = vst.msk [vmem:[#allocation2 + $0x38] sm:$0xff] %vm860, %v851
      %s869 = sadd.s32 %s238, 13
      %s870 = scalar_lea.vmem %s221, %s869
      %v871 = vld [vmem:[%s870] sm:$0xff]
      %v872 = vld [vmem:[%s870 + $0x8] sm:$0xff]
      %v873 = vld [vmem:[%s870 + $0x10] sm:$0xff]
      %v874 = vld [vmem:[%s870 + $0x18] sm:$0xff]
      %v875 = vld [vmem:[%s870 + $0x20] sm:$0xff]
      %v876 = vld [vmem:[%s870 + $0x28] sm:$0xff]
      %v877 = vld [vmem:[%s870 + $0x30] sm:$0xff]
      %v878 = vld [vmem:[%s870 + $0x38] sm:$0xff]
      %887 = vrot.lane.b32.xlu0 %v871, 13
      %v888 = vpop.permute.xlu0 %887
      %889 = vrot.lane.b32.xlu0 %v872, 13
      %v890 = vpop.permute.xlu0 %889
      %891 = vrot.lane.b32.xlu0 %v873, 13
      %v892 = vpop.permute.xlu0 %891
      %893 = vrot.lane.b32.xlu0 %v874, 13
      %v894 = vpop.permute.xlu0 %893
      %895 = vrot.lane.b32.xlu0 %v875, 13
      %v896 = vpop.permute.xlu0 %895
      %897 = vrot.lane.b32.xlu0 %v876, 13
      %v898 = vpop.permute.xlu0 %897
      %899 = vrot.lane.b32.xlu0 %v877, 13
      %v900 = vpop.permute.xlu0 %899
      %901 = vrot.lane.b32.xlu0 %v878, 13
      %v902 = vpop.permute.xlu0 %901
      %vm911 = vcmask 113768
      %912 = vst.msk [vmem:[#allocation2] sm:$0xff] %vm911, %v888
      %913 = vst.msk [vmem:[#allocation2 + $0x8] sm:$0xff] %vm911, %v890
      %914 = vst.msk [vmem:[#allocation2 + $0x10] sm:$0xff] %vm911, %v892
      %915 = vst.msk [vmem:[#allocation2 + $0x18] sm:$0xff] %vm911, %v894
      %916 = vst.msk [vmem:[#allocation2 + $0x20] sm:$0xff] %vm911, %v896
      %917 = vst.msk [vmem:[#allocation2 + $0x28] sm:$0xff] %vm911, %v898
      %918 = vst.msk [vmem:[#allocation2 + $0x30] sm:$0xff] %vm911, %v900
      %919 = vst.msk [vmem:[#allocation2 + $0x38] sm:$0xff] %vm911, %v902
      %s920 = sadd.s32 %s238, 14
      %s921 = scalar_lea.vmem %s221, %s920
      %v922 = vld [vmem:[%s921] sm:$0xff]
      %v923 = vld [vmem:[%s921 + $0x8] sm:$0xff]
      %v924 = vld [vmem:[%s921 + $0x10] sm:$0xff]
      %v925 = vld [vmem:[%s921 + $0x18] sm:$0xff]
      %v926 = vld [vmem:[%s921 + $0x20] sm:$0xff]
      %v927 = vld [vmem:[%s921 + $0x28] sm:$0xff]
      %v928 = vld [vmem:[%s921 + $0x30] sm:$0xff]
      %v929 = vld [vmem:[%s921 + $0x38] sm:$0xff]
      %938 = vrot.lane.b32.xlu0 %v922, 14
      %v939 = vpop.permute.xlu0 %938
      %940 = vrot.lane.b32.xlu0 %v923, 14
      %v941 = vpop.permute.xlu0 %940
      %942 = vrot.lane.b32.xlu0 %v924, 14
      %v943 = vpop.permute.xlu0 %942
      %944 = vrot.lane.b32.xlu0 %v925, 14
      %v945 = vpop.permute.xlu0 %944
      %946 = vrot.lane.b32.xlu0 %v926, 14
      %v947 = vpop.permute.xlu0 %946
      %948 = vrot.lane.b32.xlu0 %v927, 14
      %v949 = vpop.permute.xlu0 %948
      %950 = vrot.lane.b32.xlu0 %v928, 14
      %v951 = vpop.permute.xlu0 %950
      %952 = vrot.lane.b32.xlu0 %v929, 14
      %v953 = vpop.permute.xlu0 %952
      %vm962 = vcmask 121968
      %963 = vst.msk [vmem:[#allocation2] sm:$0xff] %vm962, %v939
      %964 = vst.msk [vmem:[#allocation2 + $0x8] sm:$0xff] %vm962, %v941
      %965 = vst.msk [vmem:[#allocation2 + $0x10] sm:$0xff] %vm962, %v943
      %966 = vst.msk [vmem:[#allocation2 + $0x18] sm:$0xff] %vm962, %v945
      %967 = vst.msk [vmem:[#allocation2 + $0x20] sm:$0xff] %vm962, %v947
      %968 = vst.msk [vmem:[#allocation2 + $0x28] sm:$0xff] %vm962, %v949
      %969 = vst.msk [vmem:[#allocation2 + $0x30] sm:$0xff] %vm962, %v951
      %970 = vst.msk [vmem:[#allocation2 + $0x38] sm:$0xff] %vm962, %v953
      %s971 = sadd.s32 %s238, 15
      %s972 = scalar_lea.vmem %s221, %s971
      %v973 = vld [vmem:[%s972] sm:$0xff]
      %v974 = vld [vmem:[%s972 + $0x8] sm:$0xff]
      %v975 = vld [vmem:[%s972 + $0x10] sm:$0xff]
      %v976 = vld [vmem:[%s972 + $0x18] sm:$0xff]
      %v977 = vld [vmem:[%s972 + $0x20] sm:$0xff]
      %v978 = vld [vmem:[%s972 + $0x28] sm:$0xff]
      %v979 = vld [vmem:[%s972 + $0x30] sm:$0xff]
      %v980 = vld [vmem:[%s972 + $0x38] sm:$0xff]
      %989 = vrot.lane.b32.xlu0 %v973, 15
      %v990 = vpop.permute.xlu0 %989
      %991 = vrot.lane.b32.xlu0 %v974, 15
      %v992 = vpop.permute.xlu0 %991
      %993 = vrot.lane.b32.xlu0 %v975, 15
      %v994 = vpop.permute.xlu0 %993
      %995 = vrot.lane.b32.xlu0 %v976, 15
      %v996 = vpop.permute.xlu0 %995
      %997 = vrot.lane.b32.xlu0 %v977, 15
      %v998 = vpop.permute.xlu0 %997
      %999 = vrot.lane.b32.xlu0 %v978, 15
      %v1000 = vpop.permute.xlu0 %999
      %1001 = vrot.lane.b32.xlu0 %v979, 15
      %v1002 = vpop.permute.xlu0 %1001
      %1003 = vrot.lane.b32.xlu0 %v980, 15
      %v1004 = vpop.permute.xlu0 %1003
      %vm1013 = vcmask 130168
      %1014 = vst.msk [vmem:[#allocation2] sm:$0xff] %vm1013, %v990
      %1015 = vst.msk [vmem:[#allocation2 + $0x8] sm:$0xff] %vm1013, %v992
      %1016 = vst.msk [vmem:[#allocation2 + $0x10] sm:$0xff] %vm1013, %v994
      %1017 = vst.msk [vmem:[#allocation2 + $0x18] sm:$0xff] %vm1013, %v996
      %1018 = vst.msk [vmem:[#allocation2 + $0x20] sm:$0xff] %vm1013, %v998
      %1019 = vst.msk [vmem:[#allocation2 + $0x28] sm:$0xff] %vm1013, %v1000
      %1020 = vst.msk [vmem:[#allocation2 + $0x30] sm:$0xff] %vm1013, %v1002
      %1021 = vst.msk [vmem:[#allocation2 + $0x38] sm:$0xff] %vm1013, %v1004
      %s1022 = sadd.s32 %s238, 16
      %s1023 = scalar_lea.vmem %s221, %s1022
      %v1024 = vld [vmem:[%s1023] sm:$0xff]
      %v1025 = vld [vmem:[%s1023 + $0x8] sm:$0xff]
      %v1026 = vld [vmem:[%s1023 + $0x10] sm:$0xff]
      %v1027 = vld [vmem:[%s1023 + $0x18] sm:$0xff]
      %v1028 = vld [vmem:[%s1023 + $0x20] sm:$0xff]
      %v1029 = vld [vmem:[%s1023 + $0x28] sm:$0xff]
      %v1030 = vld [vmem:[%s1023 + $0x30] sm:$0xff]
      %v1031 = vld [vmem:[%s1023 + $0x38] sm:$0xff]
      %1040 = vrot.lane.b32.xlu0 %v1024, 16
      %v1041 = vpop.permute.xlu0 %1040
      %1042 = vrot.lane.b32.xlu0 %v1025, 16
      %v1043 = vpop.permute.xlu0 %1042
      %1044 = vrot.lane.b32.xlu0 %v1026, 16
      %v1045 = vpop.permute.xlu0 %1044
      %1046 = vrot.lane.b32.xlu0 %v1027, 16
      %v1047 = vpop.permute.xlu0 %1046
      %1048 = vrot.lane.b32.xlu0 %v1028, 16
      %v1049 = vpop.permute.xlu0 %1048
      %1050 = vrot.lane.b32.xlu0 %v1029, 16
      %v1051 = vpop.permute.xlu0 %1050
      %1052 = vrot.lane.b32.xlu0 %v1030, 16
      %v1053 = vpop.permute.xlu0 %1052
      %1054 = vrot.lane.b32.xlu0 %v1031, 16
      %v1055 = vpop.permute.xlu0 %1054
      %vm1064 = vcmask 138368
      %1065 = vst.msk [vmem:[#allocation2] sm:$0xff] %vm1064, %v1041
      %1066 = vst.msk [vmem:[#allocation2 + $0x8] sm:$0xff] %vm1064, %v1043
      %1067 = vst.msk [vmem:[#allocation2 + $0x10] sm:$0xff] %vm1064, %v1045
      %1068 = vst.msk [vmem:[#allocation2 + $0x18] sm:$0xff] %vm1064, %v1047
      %1069 = vst.msk [vmem:[#allocation2 + $0x20] sm:$0xff] %vm1064, %v1049
      %1070 = vst.msk [vmem:[#allocation2 + $0x28] sm:$0xff] %vm1064, %v1051
      %1071 = vst.msk [vmem:[#allocation2 + $0x30] sm:$0xff] %vm1064, %v1053
      %1072 = vst.msk [vmem:[#allocation2 + $0x38] sm:$0xff] %vm1064, %v1055
      %s1073 = sadd.s32 %s238, 17
      %s1074 = scalar_lea.vmem %s221, %s1073
      %v1075 = vld [vmem:[%s1074] sm:$0xff]
      %v1076 = vld [vmem:[%s1074 + $0x8] sm:$0xff]
      %v1077 = vld [vmem:[%s1074 + $0x10] sm:$0xff]
      %v1078 = vld [vmem:[%s1074 + $0x18] sm:$0xff]
      %v1079 = vld [vmem:[%s1074 + $0x20] sm:$0xff]
      %v1080 = vld [vmem:[%s1074 + $0x28] sm:$0xff]
      %v1081 = vld [vmem:[%s1074 + $0x30] sm:$0xff]
      %v1082 = vld [vmem:[%s1074 + $0x38] sm:$0xff]
      %1091 = vrot.lane.b32.xlu0 %v1075, 17
      %v1092 = vpop.permute.xlu0 %1091
      %1093 = vrot.lane.b32.xlu0 %v1076, 17
      %v1094 = vpop.permute.xlu0 %1093
      %1095 = vrot.lane.b32.xlu0 %v1077, 17
      %v1096 = vpop.permute.xlu0 %1095
      %1097 = vrot.lane.b32.xlu0 %v1078, 17
      %v1098 = vpop.permute.xlu0 %1097
      %1099 = vrot.lane.b32.xlu0 %v1079, 17
      %v1100 = vpop.permute.xlu0 %1099
      %1101 = vrot.lane.b32.xlu0 %v1080, 17
      %v1102 = vpop.permute.xlu0 %1101
      %1103 = vrot.lane.b32.xlu0 %v1081, 17
      %v1104 = vpop.permute.xlu0 %1103
      %1105 = vrot.lane.b32.xlu0 %v1082, 17
      %v1106 = vpop.permute.xlu0 %1105
      %vm1115 = vcmask 146568
      %1116 = vst.msk [vmem:[#allocation2] sm:$0xff] %vm1115, %v1092
      %1117 = vst.msk [vmem:[#allocation2 + $0x8] sm:$0xff] %vm1115, %v1094
      %1118 = vst.msk [vmem:[#allocation2 + $0x10] sm:$0xff] %vm1115, %v1096
      %1119 = vst.msk [vmem:[#allocation2 + $0x18] sm:$0xff] %vm1115, %v1098
      %1120 = vst.msk [vmem:[#allocation2 + $0x20] sm:$0xff] %vm1115, %v1100
      %1121 = vst.msk [vmem:[#allocation2 + $0x28] sm:$0xff] %vm1115, %v1102
      %1122 = vst.msk [vmem:[#allocation2 + $0x30] sm:$0xff] %vm1115, %v1104
      %1123 = vst.msk [vmem:[#allocation2 + $0x38] sm:$0xff] %vm1115, %v1106
      %s1124 = sadd.s32 %s238, 18
      %s1125 = scalar_lea.vmem %s221, %s1124
      %v1126 = vld [vmem:[%s1125] sm:$0xff]
      %v1127 = vld [vmem:[%s1125 + $0x8] sm:$0xff]
      %v1128 = vld [vmem:[%s1125 + $0x10] sm:$0xff]
      %v1129 = vld [vmem:[%s1125 + $0x18] sm:$0xff]
      %v1130 = vld [vmem:[%s1125 + $0x20] sm:$0xff]
      %v1131 = vld [vmem:[%s1125 + $0x28] sm:$0xff]
      %v1132 = vld [vmem:[%s1125 + $0x30] sm:$0xff]
      %v1133 = vld [vmem:[%s1125 + $0x38] sm:$0xff]
      %1142 = vrot.lane.b32.xlu0 %v1126, 18
      %v1143 = vpop.permute.xlu0 %1142
      %1144 = vrot.lane.b32.xlu0 %v1127, 18
      %v1145 = vpop.permute.xlu0 %1144
      %1146 = vrot.lane.b32.xlu0 %v1128, 18
      %v1147 = vpop.permute.xlu0 %1146
      %1148 = vrot.lane.b32.xlu0 %v1129, 18
      %v1149 = vpop.permute.xlu0 %1148
      %1150 = vrot.lane.b32.xlu0 %v1130, 18
      %v1151 = vpop.permute.xlu0 %1150
      %1152 = vrot.lane.b32.xlu0 %v1131, 18
      %v1153 = vpop.permute.xlu0 %1152
      %1154 = vrot.lane.b32.xlu0 %v1132, 18
      %v1155 = vpop.permute.xlu0 %1154
      %1156 = vrot.lane.b32.xlu0 %v1133, 18
      %v1157 = vpop.permute.xlu0 %1156
      %vm1166 = vcmask 154768
      %1167 = vst.msk [vmem:[#allocation2] sm:$0xff] %vm1166, %v1143
      %1168 = vst.msk [vmem:[#allocation2 + $0x8] sm:$0xff] %vm1166, %v1145
      %1169 = vst.msk [vmem:[#allocation2 + $0x10] sm:$0xff] %vm1166, %v1147
      %1170 = vst.msk [vmem:[#allocation2 + $0x18] sm:$0xff] %vm1166, %v1149
      %1171 = vst.msk [vmem:[#allocation2 + $0x20] sm:$0xff] %vm1166, %v1151
      %1172 = vst.msk [vmem:[#allocation2 + $0x28] sm:$0xff] %vm1166, %v1153
      %1173 = vst.msk [vmem:[#allocation2 + $0x30] sm:$0xff] %vm1166, %v1155
      %1174 = vst.msk [vmem:[#allocation2 + $0x38] sm:$0xff] %vm1166, %v1157
      %s1175 = sadd.s32 %s238, 19
      %s1176 = scalar_lea.vmem %s221, %s1175
      %v1177 = vld [vmem:[%s1176] sm:$0xff]
      %v1178 = vld [vmem:[%s1176 + $0x8] sm:$0xff]
      %v1179 = vld [vmem:[%s1176 + $0x10] sm:$0xff]
      %v1180 = vld [vmem:[%s1176 + $0x18] sm:$0xff]
      %v1181 = vld [vmem:[%s1176 + $0x20] sm:$0xff]
      %v1182 = vld [vmem:[%s1176 + $0x28] sm:$0xff]
      %v1183 = vld [vmem:[%s1176 + $0x30] sm:$0xff]
      %v1184 = vld [vmem:[%s1176 + $0x38] sm:$0xff]
      %1193 = vrot.lane.b32.xlu0 %v1177, 19
      %v1194 = vpop.permute.xlu0 %1193
      %1195 = vrot.lane.b32.xlu0 %v1178, 19
      %v1196 = vpop.permute.xlu0 %1195
      %1197 = vrot.lane.b32.xlu0 %v1179, 19
      %v1198 = vpop.permute.xlu0 %1197
      %1199 = vrot.lane.b32.xlu0 %v1180, 19
      %v1200 = vpop.permute.xlu0 %1199
      %1201 = vrot.lane.b32.xlu0 %v1181, 19
      %v1202 = vpop.permute.xlu0 %1201
      %1203 = vrot.lane.b32.xlu0 %v1182, 19
      %v1204 = vpop.permute.xlu0 %1203
      %1205 = vrot.lane.b32.xlu0 %v1183, 19
      %v1206 = vpop.permute.xlu0 %1205
      %1207 = vrot.lane.b32.xlu0 %v1184, 19
      %v1208 = vpop.permute.xlu0 %1207
      %vm1217 = vcmask 162968
      %1218 = vst.msk [vmem:[#allocation2] sm:$0xff] %vm1217, %v1194
      %1219 = vst.msk [vmem:[#allocation2 + $0x8] sm:$0xff] %vm1217, %v1196
      %1220 = vst.msk [vmem:[#allocation2 + $0x10] sm:$0xff] %vm1217, %v1198
      %1221 = vst.msk [vmem:[#allocation2 + $0x18] sm:$0xff] %vm1217, %v1200
      %1222 = vst.msk [vmem:[#allocation2 + $0x20] sm:$0xff] %vm1217, %v1202
      %1223 = vst.msk [vmem:[#allocation2 + $0x28] sm:$0xff] %vm1217, %v1204
      %1224 = vst.msk [vmem:[#allocation2 + $0x30] sm:$0xff] %vm1217, %v1206
      %1225 = vst.msk [vmem:[#allocation2 + $0x38] sm:$0xff] %vm1217, %v1208
      %s1226 = sadd.s32 %s238, 20
      %s1227 = scalar_lea.vmem %s221, %s1226
      %v1228 = vld [vmem:[%s1227] sm:$0xff]
      %v1229 = vld [vmem:[%s1227 + $0x8] sm:$0xff]
      %v1230 = vld [vmem:[%s1227 + $0x10] sm:$0xff]
      %v1231 = vld [vmem:[%s1227 + $0x18] sm:$0xff]
      %v1232 = vld [vmem:[%s1227 + $0x20] sm:$0xff]
      %v1233 = vld [vmem:[%s1227 + $0x28] sm:$0xff]
      %v1234 = vld [vmem:[%s1227 + $0x30] sm:$0xff]
      %v1235 = vld [vmem:[%s1227 + $0x38] sm:$0xff]
      %1244 = vrot.lane.b32.xlu0 %v1228, 20
      %v1245 = vpop.permute.xlu0 %1244
      %1246 = vrot.lane.b32.xlu0 %v1229, 20
      %v1247 = vpop.permute.xlu0 %1246
      %1248 = vrot.lane.b32.xlu0 %v1230, 20
      %v1249 = vpop.permute.xlu0 %1248
      %1250 = vrot.lane.b32.xlu0 %v1231, 20
      %v1251 = vpop.permute.xlu0 %1250
      %1252 = vrot.lane.b32.xlu0 %v1232, 20
      %v1253 = vpop.permute.xlu0 %1252
      %1254 = vrot.lane.b32.xlu0 %v1233, 20
      %v1255 = vpop.permute.xlu0 %1254
      %1256 = vrot.lane.b32.xlu0 %v1234, 20
      %v1257 = vpop.permute.xlu0 %1256
      %1258 = vrot.lane.b32.xlu0 %v1235, 20
      %v1259 = vpop.permute.xlu0 %1258
      %vm1268 = vcmask 171168
      %1269 = vst.msk [vmem:[#allocation2] sm:$0xff] %vm1268, %v1245
      %1270 = vst.msk [vmem:[#allocation2 + $0x8] sm:$0xff] %vm1268, %v1247
      %1271 = vst.msk [vmem:[#allocation2 + $0x10] sm:$0xff] %vm1268, %v1249
      %1272 = vst.msk [vmem:[#allocation2 + $0x18] sm:$0xff] %vm1268, %v1251
      %1273 = vst.msk [vmem:[#allocation2 + $0x20] sm:$0xff] %vm1268, %v1253
      %1274 = vst.msk [vmem:[#allocation2 + $0x28] sm:$0xff] %vm1268, %v1255
      %1275 = vst.msk [vmem:[#allocation2 + $0x30] sm:$0xff] %vm1268, %v1257
      %1276 = vst.msk [vmem:[#allocation2 + $0x38] sm:$0xff] %vm1268, %v1259
      %s1277 = sadd.s32 %s238, 21
      %s1278 = scalar_lea.vmem %s221, %s1277
      %v1279 = vld [vmem:[%s1278] sm:$0xff]
      %v1280 = vld [vmem:[%s1278 + $0x8] sm:$0xff]
      %v1281 = vld [vmem:[%s1278 + $0x10] sm:$0xff]
      %v1282 = vld [vmem:[%s1278 + $0x18] sm:$0xff]
      %v1283 = vld [vmem:[%s1278 + $0x20] sm:$0xff]
      %v1284 = vld [vmem:[%s1278 + $0x28] sm:$0xff]
      %v1285 = vld [vmem:[%s1278 + $0x30] sm:$0xff]
      %v1286 = vld [vmem:[%s1278 + $0x38] sm:$0xff]
      %1295 = vrot.lane.b32.xlu0 %v1279, 21
      %v1296 = vpop.permute.xlu0 %1295
      %1297 = vrot.lane.b32.xlu0 %v1280, 21
      %v1298 = vpop.permute.xlu0 %1297
      %1299 = vrot.lane.b32.xlu0 %v1281, 21
      %v1300 = vpop.permute.xlu0 %1299
      %1301 = vrot.lane.b32.xlu0 %v1282, 21
      %v1302 = vpop.permute.xlu0 %1301
      %1303 = vrot.lane.b32.xlu0 %v1283, 21
      %v1304 = vpop.permute.xlu0 %1303
      %1305 = vrot.lane.b32.xlu0 %v1284, 21
      %v1306 = vpop.permute.xlu0 %1305
      %1307 = vrot.lane.b32.xlu0 %v1285, 21
      %v1308 = vpop.permute.xlu0 %1307
      %1309 = vrot.lane.b32.xlu0 %v1286, 21
      %v1310 = vpop.permute.xlu0 %1309
      %vm1319 = vcmask 179368
      %1320 = vst.msk [vmem:[#allocation2] sm:$0xff] %vm1319, %v1296
      %1321 = vst.msk [vmem:[#allocation2 + $0x8] sm:$0xff] %vm1319, %v1298
      %1322 = vst.msk [vmem:[#allocation2 + $0x10] sm:$0xff] %vm1319, %v1300
      %1323 = vst.msk [vmem:[#allocation2 + $0x18] sm:$0xff] %vm1319, %v1302
      %1324 = vst.msk [vmem:[#allocation2 + $0x20] sm:$0xff] %vm1319, %v1304
      %1325 = vst.msk [vmem:[#allocation2 + $0x28] sm:$0xff] %vm1319, %v1306
      %1326 = vst.msk [vmem:[#allocation2 + $0x30] sm:$0xff] %vm1319, %v1308
      %1327 = vst.msk [vmem:[#allocation2 + $0x38] sm:$0xff] %vm1319, %v1310
      %s1328 = sadd.s32 %s238, 22
      %s1329 = scalar_lea.vmem %s221, %s1328
      %v1330 = vld [vmem:[%s1329] sm:$0xff]
      %v1331 = vld [vmem:[%s1329 + $0x8] sm:$0xff]
      %v1332 = vld [vmem:[%s1329 + $0x10] sm:$0xff]
      %v1333 = vld [vmem:[%s1329 + $0x18] sm:$0xff]
      %v1334 = vld [vmem:[%s1329 + $0x20] sm:$0xff]
      %v1335 = vld [vmem:[%s1329 + $0x28] sm:$0xff]
      %v1336 = vld [vmem:[%s1329 + $0x30] sm:$0xff]
      %v1337 = vld [vmem:[%s1329 + $0x38] sm:$0xff]
      %1346 = vrot.lane.b32.xlu0 %v1330, 22
      %v1347 = vpop.permute.xlu0 %1346
      %1348 = vrot.lane.b32.xlu0 %v1331, 22
      %v1349 = vpop.permute.xlu0 %1348
      %1350 = vrot.lane.b32.xlu0 %v1332, 22
      %v1351 = vpop.permute.xlu0 %1350
      %1352 = vrot.lane.b32.xlu0 %v1333, 22
      %v1353 = vpop.permute.xlu0 %1352
      %1354 = vrot.lane.b32.xlu0 %v1334, 22
      %v1355 = vpop.permute.xlu0 %1354
      %1356 = vrot.lane.b32.xlu0 %v1335, 22
      %v1357 = vpop.permute.xlu0 %1356
      %1358 = vrot.lane.b32.xlu0 %v1336, 22
      %v1359 = vpop.permute.xlu0 %1358
      %1360 = vrot.lane.b32.xlu0 %v1337, 22
      %v1361 = vpop.permute.xlu0 %1360
      %vm1370 = vcmask 187568
      %1371 = vst.msk [vmem:[#allocation2] sm:$0xff] %vm1370, %v1347
      %1372 = vst.msk [vmem:[#allocation2 + $0x8] sm:$0xff] %vm1370, %v1349
      %1373 = vst.msk [vmem:[#allocation2 + $0x10] sm:$0xff] %vm1370, %v1351
      %1374 = vst.msk [vmem:[#allocation2 + $0x18] sm:$0xff] %vm1370, %v1353
      %1375 = vst.msk [vmem:[#allocation2 + $0x20] sm:$0xff] %vm1370, %v1355
      %1376 = vst.msk [vmem:[#allocation2 + $0x28] sm:$0xff] %vm1370, %v1357
      %1377 = vst.msk [vmem:[#allocation2 + $0x30] sm:$0xff] %vm1370, %v1359
      %1378 = vst.msk [vmem:[#allocation2 + $0x38] sm:$0xff] %vm1370, %v1361
      %s1379 = sadd.s32 %s238, 23
      %s1380 = scalar_lea.vmem %s221, %s1379
      %v1381 = vld [vmem:[%s1380] sm:$0xff]
      %v1382 = vld [vmem:[%s1380 + $0x8] sm:$0xff]
      %v1383 = vld [vmem:[%s1380 + $0x10] sm:$0xff]
      %v1384 = vld [vmem:[%s1380 + $0x18] sm:$0xff]
      %v1385 = vld [vmem:[%s1380 + $0x20] sm:$0xff]
      %v1386 = vld [vmem:[%s1380 + $0x28] sm:$0xff]
      %v1387 = vld [vmem:[%s1380 + $0x30] sm:$0xff]
      %v1388 = vld [vmem:[%s1380 + $0x38] sm:$0xff]
      %1397 = vrot.lane.b32.xlu0 %v1381, 23
      %v1398 = vpop.permute.xlu0 %1397
      %1399 = vrot.lane.b32.xlu0 %v1382, 23
      %v1400 = vpop.permute.xlu0 %1399
      %1401 = vrot.lane.b32.xlu0 %v1383, 23
      %v1402 = vpop.permute.xlu0 %1401
      %1403 = vrot.lane.b32.xlu0 %v1384, 23
      %v1404 = vpop.permute.xlu0 %1403
      %1405 = vrot.lane.b32.xlu0 %v1385, 23
      %v1406 = vpop.permute.xlu0 %1405
      %1407 = vrot.lane.b32.xlu0 %v1386, 23
      %v1408 = vpop.permute.xlu0 %1407
      %1409 = vrot.lane.b32.xlu0 %v1387, 23
      %v1410 = vpop.permute.xlu0 %1409
      %1411 = vrot.lane.b32.xlu0 %v1388, 23
      %v1412 = vpop.permute.xlu0 %1411
      %vm1421 = vcmask 195768
      %1422 = vst.msk [vmem:[#allocation2] sm:$0xff] %vm1421, %v1398
      %1423 = vst.msk [vmem:[#allocation2 + $0x8] sm:$0xff] %vm1421, %v1400
      %1424 = vst.msk [vmem:[#allocation2 + $0x10] sm:$0xff] %vm1421, %v1402
      %1425 = vst.msk [vmem:[#allocation2 + $0x18] sm:$0xff] %vm1421, %v1404
      %1426 = vst.msk [vmem:[#allocation2 + $0x20] sm:$0xff] %vm1421, %v1406
      %1427 = vst.msk [vmem:[#allocation2 + $0x28] sm:$0xff] %vm1421, %v1408
      %1428 = vst.msk [vmem:[#allocation2 + $0x30] sm:$0xff] %vm1421, %v1410
      %1429 = vst.msk [vmem:[#allocation2 + $0x38] sm:$0xff] %vm1421, %v1412
      %s1430 = sadd.s32 %s238, 24
      %s1431 = scalar_lea.vmem %s221, %s1430
      %v1432 = vld [vmem:[%s1431] sm:$0xff]
      %v1433 = vld [vmem:[%s1431 + $0x8] sm:$0xff]
      %v1434 = vld [vmem:[%s1431 + $0x10] sm:$0xff]
      %v1435 = vld [vmem:[%s1431 + $0x18] sm:$0xff]
      %v1436 = vld [vmem:[%s1431 + $0x20] sm:$0xff]
      %v1437 = vld [vmem:[%s1431 + $0x28] sm:$0xff]
      %v1438 = vld [vmem:[%s1431 + $0x30] sm:$0xff]
      %v1439 = vld [vmem:[%s1431 + $0x38] sm:$0xff]
      %1448 = vrot.lane.b32.xlu0 %v1432, 24
      %v1449 = vpop.permute.xlu0 %1448
      %1450 = vrot.lane.b32.xlu0 %v1433, 24
      %v1451 = vpop.permute.xlu0 %1450
      %1452 = vrot.lane.b32.xlu0 %v1434, 24
      %v1453 = vpop.permute.xlu0 %1452
      %1454 = vrot.lane.b32.xlu0 %v1435, 24
      %v1455 = vpop.permute.xlu0 %1454
      %1456 = vrot.lane.b32.xlu0 %v1436, 24
      %v1457 = vpop.permute.xlu0 %1456
      %1458 = vrot.lane.b32.xlu0 %v1437, 24
      %v1459 = vpop.permute.xlu0 %1458
      %1460 = vrot.lane.b32.xlu0 %v1438, 24
      %v1461 = vpop.permute.xlu0 %1460
      %1462 = vrot.lane.b32.xlu0 %v1439, 24
      %v1463 = vpop.permute.xlu0 %1462
      %vm1472 = vcmask 203968
      %1473 = vst.msk [vmem:[#allocation2] sm:$0xff] %vm1472, %v1449
      %1474 = vst.msk [vmem:[#allocation2 + $0x8] sm:$0xff] %vm1472, %v1451
      %1475 = vst.msk [vmem:[#allocation2 + $0x10] sm:$0xff] %vm1472, %v1453
      %1476 = vst.msk [vmem:[#allocation2 + $0x18] sm:$0xff] %vm1472, %v1455
      %1477 = vst.msk [vmem:[#allocation2 + $0x20] sm:$0xff] %vm1472, %v1457
      %1478 = vst.msk [vmem:[#allocation2 + $0x28] sm:$0xff] %vm1472, %v1459
      %1479 = vst.msk [vmem:[#allocation2 + $0x30] sm:$0xff] %vm1472, %v1461
      %1480 = vst.msk [vmem:[#allocation2 + $0x38] sm:$0xff] %vm1472, %v1463
      %s1481 = sadd.s32 %s238, 25
      %s1482 = scalar_lea.vmem %s221, %s1481
      %v1483 = vld [vmem:[%s1482] sm:$0xff]
      %v1484 = vld [vmem:[%s1482 + $0x8] sm:$0xff]
      %v1485 = vld [vmem:[%s1482 + $0x10] sm:$0xff]
      %v1486 = vld [vmem:[%s1482 + $0x18] sm:$0xff]
      %v1487 = vld [vmem:[%s1482 + $0x20] sm:$0xff]
      %v1488 = vld [vmem:[%s1482 + $0x28] sm:$0xff]
      %v1489 = vld [vmem:[%s1482 + $0x30] sm:$0xff]
      %v1490 = vld [vmem:[%s1482 + $0x38] sm:$0xff]
      %1499 = vrot.lane.b32.xlu0 %v1483, 25
      %v1500 = vpop.permute.xlu0 %1499
      %1501 = vrot.lane.b32.xlu0 %v1484, 25
      %v1502 = vpop.permute.xlu0 %1501
      %1503 = vrot.lane.b32.xlu0 %v1485, 25
      %v1504 = vpop.permute.xlu0 %1503
      %1505 = vrot.lane.b32.xlu0 %v1486, 25
      %v1506 = vpop.permute.xlu0 %1505
      %1507 = vrot.lane.b32.xlu0 %v1487, 25
      %v1508 = vpop.permute.xlu0 %1507
      %1509 = vrot.lane.b32.xlu0 %v1488, 25
      %v1510 = vpop.permute.xlu0 %1509
      %1511 = vrot.lane.b32.xlu0 %v1489, 25
      %v1512 = vpop.permute.xlu0 %1511
      %1513 = vrot.lane.b32.xlu0 %v1490, 25
      %v1514 = vpop.permute.xlu0 %1513
      %vm1523 = vcmask 212168
      %1524 = vst.msk [vmem:[#allocation2] sm:$0xff] %vm1523, %v1500
      %1525 = vst.msk [vmem:[#allocation2 + $0x8] sm:$0xff] %vm1523, %v1502
      %1526 = vst.msk [vmem:[#allocation2 + $0x10] sm:$0xff] %vm1523, %v1504
      %1527 = vst.msk [vmem:[#allocation2 + $0x18] sm:$0xff] %vm1523, %v1506
      %1528 = vst.msk [vmem:[#allocation2 + $0x20] sm:$0xff] %vm1523, %v1508
      %1529 = vst.msk [vmem:[#allocation2 + $0x28] sm:$0xff] %vm1523, %v1510
      %1530 = vst.msk [vmem:[#allocation2 + $0x30] sm:$0xff] %vm1523, %v1512
      %1531 = vst.msk [vmem:[#allocation2 + $0x38] sm:$0xff] %vm1523, %v1514
      %s1532 = sadd.s32 %s238, 26
      %s1533 = scalar_lea.vmem %s221, %s1532
      %v1534 = vld [vmem:[%s1533] sm:$0xff]
      %v1535 = vld [vmem:[%s1533 + $0x8] sm:$0xff]
      %v1536 = vld [vmem:[%s1533 + $0x10] sm:$0xff]
      %v1537 = vld [vmem:[%s1533 + $0x18] sm:$0xff]
      %v1538 = vld [vmem:[%s1533 + $0x20] sm:$0xff]
      %v1539 = vld [vmem:[%s1533 + $0x28] sm:$0xff]
      %v1540 = vld [vmem:[%s1533 + $0x30] sm:$0xff]
      %v1541 = vld [vmem:[%s1533 + $0x38] sm:$0xff]
      %1550 = vrot.lane.b32.xlu0 %v1534, 26
      %v1551 = vpop.permute.xlu0 %1550
      %1552 = vrot.lane.b32.xlu0 %v1535, 26
      %v1553 = vpop.permute.xlu0 %1552
      %1554 = vrot.lane.b32.xlu0 %v1536, 26
      %v1555 = vpop.permute.xlu0 %1554
      %1556 = vrot.lane.b32.xlu0 %v1537, 26
      %v1557 = vpop.permute.xlu0 %1556
      %1558 = vrot.lane.b32.xlu0 %v1538, 26
      %v1559 = vpop.permute.xlu0 %1558
      %1560 = vrot.lane.b32.xlu0 %v1539, 26
      %v1561 = vpop.permute.xlu0 %1560
      %1562 = vrot.lane.b32.xlu0 %v1540, 26
      %v1563 = vpop.permute.xlu0 %1562
      %1564 = vrot.lane.b32.xlu0 %v1541, 26
      %v1565 = vpop.permute.xlu0 %1564
      %vm1574 = vcmask 220368
      %1575 = vst.msk [vmem:[#allocation2] sm:$0xff] %vm1574, %v1551
      %1576 = vst.msk [vmem:[#allocation2 + $0x8] sm:$0xff] %vm1574, %v1553
      %1577 = vst.msk [vmem:[#allocation2 + $0x10] sm:$0xff] %vm1574, %v1555
      %1578 = vst.msk [vmem:[#allocation2 + $0x18] sm:$0xff] %vm1574, %v1557
      %1579 = vst.msk [vmem:[#allocation2 + $0x20] sm:$0xff] %vm1574, %v1559
      %1580 = vst.msk [vmem:[#allocation2 + $0x28] sm:$0xff] %vm1574, %v1561
      %1581 = vst.msk [vmem:[#allocation2 + $0x30] sm:$0xff] %vm1574, %v1563
      %1582 = vst.msk [vmem:[#allocation2 + $0x38] sm:$0xff] %vm1574, %v1565
      %s1583 = sadd.s32 %s238, 27
      %s1584 = scalar_lea.vmem %s221, %s1583
      %v1585 = vld [vmem:[%s1584] sm:$0xff]
      %v1586 = vld [vmem:[%s1584 + $0x8] sm:$0xff]
      %v1587 = vld [vmem:[%s1584 + $0x10] sm:$0xff]
      %v1588 = vld [vmem:[%s1584 + $0x18] sm:$0xff]
      %v1589 = vld [vmem:[%s1584 + $0x20] sm:$0xff]
      %v1590 = vld [vmem:[%s1584 + $0x28] sm:$0xff]
      %v1591 = vld [vmem:[%s1584 + $0x30] sm:$0xff]
      %v1592 = vld [vmem:[%s1584 + $0x38] sm:$0xff]
      %1601 = vrot.lane.b32.xlu0 %v1585, 27
      %v1602 = vpop.permute.xlu0 %1601
      %1603 = vrot.lane.b32.xlu0 %v1586, 27
      %v1604 = vpop.permute.xlu0 %1603
      %1605 = vrot.lane.b32.xlu0 %v1587, 27
      %v1606 = vpop.permute.xlu0 %1605
      %1607 = vrot.lane.b32.xlu0 %v1588, 27
      %v1608 = vpop.permute.xlu0 %1607
      %1609 = vrot.lane.b32.xlu0 %v1589, 27
      %v1610 = vpop.permute.xlu0 %1609
      %1611 = vrot.lane.b32.xlu0 %v1590, 27
      %v1612 = vpop.permute.xlu0 %1611
      %1613 = vrot.lane.b32.xlu0 %v1591, 27
      %v1614 = vpop.permute.xlu0 %1613
      %1615 = vrot.lane.b32.xlu0 %v1592, 27
      %v1616 = vpop.permute.xlu0 %1615
      %vm1625 = vcmask 228568
      %1626 = vst.msk [vmem:[#allocation2] sm:$0xff] %vm1625, %v1602
      %1627 = vst.msk [vmem:[#allocation2 + $0x8] sm:$0xff] %vm1625, %v1604
      %1628 = vst.msk [vmem:[#allocation2 + $0x10] sm:$0xff] %vm1625, %v1606
      %1629 = vst.msk [vmem:[#allocation2 + $0x18] sm:$0xff] %vm1625, %v1608
      %1630 = vst.msk [vmem:[#allocation2 + $0x20] sm:$0xff] %vm1625, %v1610
      %1631 = vst.msk [vmem:[#allocation2 + $0x28] sm:$0xff] %vm1625, %v1612
      %1632 = vst.msk [vmem:[#allocation2 + $0x30] sm:$0xff] %vm1625, %v1614
      %1633 = vst.msk [vmem:[#allocation2 + $0x38] sm:$0xff] %vm1625, %v1616
      %s1634 = sadd.s32 %s238, 28
      %s1635 = scalar_lea.vmem %s221, %s1634
      %v1636 = vld [vmem:[%s1635] sm:$0xff]
      %v1637 = vld [vmem:[%s1635 + $0x8] sm:$0xff]
      %v1638 = vld [vmem:[%s1635 + $0x10] sm:$0xff]
      %v1639 = vld [vmem:[%s1635 + $0x18] sm:$0xff]
      %v1640 = vld [vmem:[%s1635 + $0x20] sm:$0xff]
      %v1641 = vld [vmem:[%s1635 + $0x28] sm:$0xff]
      %v1642 = vld [vmem:[%s1635 + $0x30] sm:$0xff]
      %v1643 = vld [vmem:[%s1635 + $0x38] sm:$0xff]
      %1652 = vrot.lane.b32.xlu0 %v1636, 28
      %v1653 = vpop.permute.xlu0 %1652
      %1654 = vrot.lane.b32.xlu0 %v1637, 28
      %v1655 = vpop.permute.xlu0 %1654
      %1656 = vrot.lane.b32.xlu0 %v1638, 28
      %v1657 = vpop.permute.xlu0 %1656
      %1658 = vrot.lane.b32.xlu0 %v1639, 28
      %v1659 = vpop.permute.xlu0 %1658
      %1660 = vrot.lane.b32.xlu0 %v1640, 28
      %v1661 = vpop.permute.xlu0 %1660
      %1662 = vrot.lane.b32.xlu0 %v1641, 28
      %v1663 = vpop.permute.xlu0 %1662
      %1664 = vrot.lane.b32.xlu0 %v1642, 28
      %v1665 = vpop.permute.xlu0 %1664
      %1666 = vrot.lane.b32.xlu0 %v1643, 28
      %v1667 = vpop.permute.xlu0 %1666
      %vm1676 = vcmask 236768
      %1677 = vst.msk [vmem:[#allocation2] sm:$0xff] %vm1676, %v1653
      %1678 = vst.msk [vmem:[#allocation2 + $0x8] sm:$0xff] %vm1676, %v1655
      %1679 = vst.msk [vmem:[#allocation2 + $0x10] sm:$0xff] %vm1676, %v1657
      %1680 = vst.msk [vmem:[#allocation2 + $0x18] sm:$0xff] %vm1676, %v1659
      %1681 = vst.msk [vmem:[#allocation2 + $0x20] sm:$0xff] %vm1676, %v1661
      %1682 = vst.msk [vmem:[#allocation2 + $0x28] sm:$0xff] %vm1676, %v1663
      %1683 = vst.msk [vmem:[#allocation2 + $0x30] sm:$0xff] %vm1676, %v1665
      %1684 = vst.msk [vmem:[#allocation2 + $0x38] sm:$0xff] %vm1676, %v1667
      %s1685 = sadd.s32 %s238, 29
      %s1686 = scalar_lea.vmem %s221, %s1685
      %v1687 = vld [vmem:[%s1686] sm:$0xff]
      %v1688 = vld [vmem:[%s1686 + $0x8] sm:$0xff]
      %v1689 = vld [vmem:[%s1686 + $0x10] sm:$0xff]
      %v1690 = vld [vmem:[%s1686 + $0x18] sm:$0xff]
      %v1691 = vld [vmem:[%s1686 + $0x20] sm:$0xff]
      %v1692 = vld [vmem:[%s1686 + $0x28] sm:$0xff]
      %v1693 = vld [vmem:[%s1686 + $0x30] sm:$0xff]
      %v1694 = vld [vmem:[%s1686 + $0x38] sm:$0xff]
      %1703 = vrot.lane.b32.xlu0 %v1687, 29
      %v1704 = vpop.permute.xlu0 %1703
      %1705 = vrot.lane.b32.xlu0 %v1688, 29
      %v1706 = vpop.permute.xlu0 %1705
      %1707 = vrot.lane.b32.xlu0 %v1689, 29
      %v1708 = vpop.permute.xlu0 %1707
      %1709 = vrot.lane.b32.xlu0 %v1690, 29
      %v1710 = vpop.permute.xlu0 %1709
      %1711 = vrot.lane.b32.xlu0 %v1691, 29
      %v1712 = vpop.permute.xlu0 %1711
      %1713 = vrot.lane.b32.xlu0 %v1692, 29
      %v1714 = vpop.permute.xlu0 %1713
      %1715 = vrot.lane.b32.xlu0 %v1693, 29
      %v1716 = vpop.permute.xlu0 %1715
      %1717 = vrot.lane.b32.xlu0 %v1694, 29
      %v1718 = vpop.permute.xlu0 %1717
      %vm1727 = vcmask 244968
      %1728 = vst.msk [vmem:[#allocation2] sm:$0xff] %vm1727, %v1704
      %1729 = vst.msk [vmem:[#allocation2 + $0x8] sm:$0xff] %vm1727, %v1706
      %1730 = vst.msk [vmem:[#allocation2 + $0x10] sm:$0xff] %vm1727, %v1708
      %1731 = vst.msk [vmem:[#allocation2 + $0x18] sm:$0xff] %vm1727, %v1710
      %1732 = vst.msk [vmem:[#allocation2 + $0x20] sm:$0xff] %vm1727, %v1712
      %1733 = vst.msk [vmem:[#allocation2 + $0x28] sm:$0xff] %vm1727, %v1714
      %1734 = vst.msk [vmem:[#allocation2 + $0x30] sm:$0xff] %vm1727, %v1716
      %1735 = vst.msk [vmem:[#allocation2 + $0x38] sm:$0xff] %vm1727, %v1718
      %s1736 = sadd.s32 %s238, 30
      %s1737 = scalar_lea.vmem %s221, %s1736
      %v1738 = vld [vmem:[%s1737] sm:$0xff]
      %v1739 = vld [vmem:[%s1737 + $0x8] sm:$0xff]
      %v1740 = vld [vmem:[%s1737 + $0x10] sm:$0xff]
      %v1741 = vld [vmem:[%s1737 + $0x18] sm:$0xff]
      %v1742 = vld [vmem:[%s1737 + $0x20] sm:$0xff]
      %v1743 = vld [vmem:[%s1737 + $0x28] sm:$0xff]
      %v1744 = vld [vmem:[%s1737 + $0x30] sm:$0xff]
      %v1745 = vld [vmem:[%s1737 + $0x38] sm:$0xff]
      %1754 = vrot.lane.b32.xlu0 %v1738, 30
      %v1755 = vpop.permute.xlu0 %1754
      %1756 = vrot.lane.b32.xlu0 %v1739, 30
      %v1757 = vpop.permute.xlu0 %1756
      %1758 = vrot.lane.b32.xlu0 %v1740, 30
      %v1759 = vpop.permute.xlu0 %1758
      %1760 = vrot.lane.b32.xlu0 %v1741, 30
      %v1761 = vpop.permute.xlu0 %1760
      %1762 = vrot.lane.b32.xlu0 %v1742, 30
      %v1763 = vpop.permute.xlu0 %1762
      %1764 = vrot.lane.b32.xlu0 %v1743, 30
      %v1765 = vpop.permute.xlu0 %1764
      %1766 = vrot.lane.b32.xlu0 %v1744, 30
      %v1767 = vpop.permute.xlu0 %1766
      %1768 = vrot.lane.b32.xlu0 %v1745, 30
      %v1769 = vpop.permute.xlu0 %1768
      %vm1778 = vcmask 253168
      %1779 = vst.msk [vmem:[#allocation2] sm:$0xff] %vm1778, %v1755
      %1780 = vst.msk [vmem:[#allocation2 + $0x8] sm:$0xff] %vm1778, %v1757
      %1781 = vst.msk [vmem:[#allocation2 + $0x10] sm:$0xff] %vm1778, %v1759
      %1782 = vst.msk [vmem:[#allocation2 + $0x18] sm:$0xff] %vm1778, %v1761
      %1783 = vst.msk [vmem:[#allocation2 + $0x20] sm:$0xff] %vm1778, %v1763
      %1784 = vst.msk [vmem:[#allocation2 + $0x28] sm:$0xff] %vm1778, %v1765
      %1785 = vst.msk [vmem:[#allocation2 + $0x30] sm:$0xff] %vm1778, %v1767
      %1786 = vst.msk [vmem:[#allocation2 + $0x38] sm:$0xff] %vm1778, %v1769
      %s1787 = sadd.s32 %s238, 31
      %s1788 = scalar_lea.vmem %s221, %s1787
      %v1789 = vld [vmem:[%s1788] sm:$0xff]
      %v1790 = vld [vmem:[%s1788 + $0x8] sm:$0xff]
      %v1791 = vld [vmem:[%s1788 + $0x10] sm:$0xff]
      %v1792 = vld [vmem:[%s1788 + $0x18] sm:$0xff]
      %v1793 = vld [vmem:[%s1788 + $0x20] sm:$0xff]
      %v1794 = vld [vmem:[%s1788 + $0x28] sm:$0xff]
      %v1795 = vld [vmem:[%s1788 + $0x30] sm:$0xff]
      %v1796 = vld [vmem:[%s1788 + $0x38] sm:$0xff]
      %1805 = vrot.lane.b32.xlu0 %v1789, 31
      %v1806 = vpop.permute.xlu0 %1805
      %1807 = vrot.lane.b32.xlu0 %v1790, 31
      %v1808 = vpop.permute.xlu0 %1807
      %1809 = vrot.lane.b32.xlu0 %v1791, 31
      %v1810 = vpop.permute.xlu0 %1809
      %1811 = vrot.lane.b32.xlu0 %v1792, 31
      %v1812 = vpop.permute.xlu0 %1811
      %1813 = vrot.lane.b32.xlu0 %v1793, 31
      %v1814 = vpop.permute.xlu0 %1813
      %1815 = vrot.lane.b32.xlu0 %v1794, 31
      %v1816 = vpop.permute.xlu0 %1815
      %1817 = vrot.lane.b32.xlu0 %v1795, 31
      %v1818 = vpop.permute.xlu0 %1817
      %1819 = vrot.lane.b32.xlu0 %v1796, 31
      %v1820 = vpop.permute.xlu0 %1819
      %vm1829 = vcmask 261368
      %1830 = vst.msk [vmem:[#allocation2] sm:$0xff] %vm1829, %v1806
      %1831 = vst.msk [vmem:[#allocation2 + $0x8] sm:$0xff] %vm1829, %v1808
      %1832 = vst.msk [vmem:[#allocation2 + $0x10] sm:$0xff] %vm1829, %v1810
      %1833 = vst.msk [vmem:[#allocation2 + $0x18] sm:$0xff] %vm1829, %v1812
      %1834 = vst.msk [vmem:[#allocation2 + $0x20] sm:$0xff] %vm1829, %v1814
      %1835 = vst.msk [vmem:[#allocation2 + $0x28] sm:$0xff] %vm1829, %v1816
      %1836 = vst.msk [vmem:[#allocation2 + $0x30] sm:$0xff] %vm1829, %v1818
      %1837 = vst.msk [vmem:[#allocation2 + $0x38] sm:$0xff] %vm1829, %v1820
      %s1838 = sadd.s32 %s238, 32
      %s1839 = scalar_lea.vmem %s221, %s1838
      %v1840 = vld [vmem:[%s1839] sm:$0xff]
      %v1841 = vld [vmem:[%s1839 + $0x8] sm:$0xff]
      %v1842 = vld [vmem:[%s1839 + $0x10] sm:$0xff]
      %v1843 = vld [vmem:[%s1839 + $0x18] sm:$0xff]
      %v1844 = vld [vmem:[%s1839 + $0x20] sm:$0xff]
      %v1845 = vld [vmem:[%s1839 + $0x28] sm:$0xff]
      %v1846 = vld [vmem:[%s1839 + $0x30] sm:$0xff]
      %v1847 = vld [vmem:[%s1839 + $0x38] sm:$0xff]
      %1856 = vrot.lane.b32.xlu0 %v1840, 32
      %v1857 = vpop.permute.xlu0 %1856
      %1858 = vrot.lane.b32.xlu0 %v1841, 32
      %v1859 = vpop.permute.xlu0 %1858
      %1860 = vrot.lane.b32.xlu0 %v1842, 32
      %v1861 = vpop.permute.xlu0 %1860
      %1862 = vrot.lane.b32.xlu0 %v1843, 32
      %v1863 = vpop.permute.xlu0 %1862
      %1864 = vrot.lane.b32.xlu0 %v1844, 32
      %v1865 = vpop.permute.xlu0 %1864
      %1866 = vrot.lane.b32.xlu0 %v1845, 32
      %v1867 = vpop.permute.xlu0 %1866
      %1868 = vrot.lane.b32.xlu0 %v1846, 32
      %v1869 = vpop.permute.xlu0 %1868
      %1870 = vrot.lane.b32.xlu0 %v1847, 32
      %v1871 = vpop.permute.xlu0 %1870
      %vm1880 = vcmask 269568
      %1881 = vst.msk [vmem:[#allocation2] sm:$0xff] %vm1880, %v1857
      %1882 = vst.msk [vmem:[#allocation2 + $0x8] sm:$0xff] %vm1880, %v1859
      %1883 = vst.msk [vmem:[#allocation2 + $0x10] sm:$0xff] %vm1880, %v1861
      %1884 = vst.msk [vmem:[#allocation2 + $0x18] sm:$0xff] %vm1880, %v1863
      %1885 = vst.msk [vmem:[#allocation2 + $0x20] sm:$0xff] %vm1880, %v1865
      %1886 = vst.msk [vmem:[#allocation2 + $0x28] sm:$0xff] %vm1880, %v1867
      %1887 = vst.msk [vmem:[#allocation2 + $0x30] sm:$0xff] %vm1880, %v1869
      %1888 = vst.msk [vmem:[#allocation2 + $0x38] sm:$0xff] %vm1880, %v1871
      %s1889 = sadd.s32 %s238, 33
      %s1890 = scalar_lea.vmem %s221, %s1889
      %v1891 = vld [vmem:[%s1890] sm:$0xff]
      %v1892 = vld [vmem:[%s1890 + $0x8] sm:$0xff]
      %v1893 = vld [vmem:[%s1890 + $0x10] sm:$0xff]
      %v1894 = vld [vmem:[%s1890 + $0x18] sm:$0xff]
      %v1895 = vld [vmem:[%s1890 + $0x20] sm:$0xff]
      %v1896 = vld [vmem:[%s1890 + $0x28] sm:$0xff]
      %v1897 = vld [vmem:[%s1890 + $0x30] sm:$0xff]
      %v1898 = vld [vmem:[%s1890 + $0x38] sm:$0xff]
      %1907 = vrot.lane.b32.xlu0 %v1891, 33
      %v1908 = vpop.permute.xlu0 %1907
      %1909 = vrot.lane.b32.xlu0 %v1892, 33
      %v1910 = vpop.permute.xlu0 %1909
      %1911 = vrot.lane.b32.xlu0 %v1893, 33
      %v1912 = vpop.permute.xlu0 %1911
      %1913 = vrot.lane.b32.xlu0 %v1894, 33
      %v1914 = vpop.permute.xlu0 %1913
      %1915 = vrot.lane.b32.xlu0 %v1895, 33
      %v1916 = vpop.permute.xlu0 %1915
      %1917 = vrot.lane.b32.xlu0 %v1896, 33
      %v1918 = vpop.permute.xlu0 %1917
      %1919 = vrot.lane.b32.xlu0 %v1897, 33
      %v1920 = vpop.permute.xlu0 %1919
      %1921 = vrot.lane.b32.xlu0 %v1898, 33
      %v1922 = vpop.permute.xlu0 %1921
      %vm1931 = vcmask 277768
      %1932 = vst.msk [vmem:[#allocation2] sm:$0xff] %vm1931, %v1908
      %1933 = vst.msk [vmem:[#allocation2 + $0x8] sm:$0xff] %vm1931, %v1910
      %1934 = vst.msk [vmem:[#allocation2 + $0x10] sm:$0xff] %vm1931, %v1912
      %1935 = vst.msk [vmem:[#allocation2 + $0x18] sm:$0xff] %vm1931, %v1914
      %1936 = vst.msk [vmem:[#allocation2 + $0x20] sm:$0xff] %vm1931, %v1916
      %1937 = vst.msk [vmem:[#allocation2 + $0x28] sm:$0xff] %vm1931, %v1918
      %1938 = vst.msk [vmem:[#allocation2 + $0x30] sm:$0xff] %vm1931, %v1920
      %1939 = vst.msk [vmem:[#allocation2 + $0x38] sm:$0xff] %vm1931, %v1922
      %s1940 = sadd.s32 %s238, 34
      %s1941 = scalar_lea.vmem %s221, %s1940
      %v1942 = vld [vmem:[%s1941] sm:$0xff]
      %v1943 = vld [vmem:[%s1941 + $0x8] sm:$0xff]
      %v1944 = vld [vmem:[%s1941 + $0x10] sm:$0xff]
      %v1945 = vld [vmem:[%s1941 + $0x18] sm:$0xff]
      %v1946 = vld [vmem:[%s1941 + $0x20] sm:$0xff]
      %v1947 = vld [vmem:[%s1941 + $0x28] sm:$0xff]
      %v1948 = vld [vmem:[%s1941 + $0x30] sm:$0xff]
      %v1949 = vld [vmem:[%s1941 + $0x38] sm:$0xff]
      %1958 = vrot.lane.b32.xlu0 %v1942, 34
      %v1959 = vpop.permute.xlu0 %1958
      %1960 = vrot.lane.b32.xlu0 %v1943, 34
      %v1961 = vpop.permute.xlu0 %1960
      %1962 = vrot.lane.b32.xlu0 %v1944, 34
      %v1963 = vpop.permute.xlu0 %1962
      %1964 = vrot.lane.b32.xlu0 %v1945, 34
      %v1965 = vpop.permute.xlu0 %1964
      %1966 = vrot.lane.b32.xlu0 %v1946, 34
      %v1967 = vpop.permute.xlu0 %1966
      %1968 = vrot.lane.b32.xlu0 %v1947, 34
      %v1969 = vpop.permute.xlu0 %1968
      %1970 = vrot.lane.b32.xlu0 %v1948, 34
      %v1971 = vpop.permute.xlu0 %1970
      %1972 = vrot.lane.b32.xlu0 %v1949, 34
      %v1973 = vpop.permute.xlu0 %1972
      %vm1982 = vcmask 285968
      %1983 = vst.msk [vmem:[#allocation2] sm:$0xff] %vm1982, %v1959
      %1984 = vst.msk [vmem:[#allocation2 + $0x8] sm:$0xff] %vm1982, %v1961
      %1985 = vst.msk [vmem:[#allocation2 + $0x10] sm:$0xff] %vm1982, %v1963
      %1986 = vst.msk [vmem:[#allocation2 + $0x18] sm:$0xff] %vm1982, %v1965
      %1987 = vst.msk [vmem:[#allocation2 + $0x20] sm:$0xff] %vm1982, %v1967
      %1988 = vst.msk [vmem:[#allocation2 + $0x28] sm:$0xff] %vm1982, %v1969
      %1989 = vst.msk [vmem:[#allocation2 + $0x30] sm:$0xff] %vm1982, %v1971
      %1990 = vst.msk [vmem:[#allocation2 + $0x38] sm:$0xff] %vm1982, %v1973
      %s1991 = sadd.s32 %s238, 35
      %s1992 = scalar_lea.vmem %s221, %s1991
      %v1993 = vld [vmem:[%s1992] sm:$0xff]
      %v1994 = vld [vmem:[%s1992 + $0x8] sm:$0xff]
      %v1995 = vld [vmem:[%s1992 + $0x10] sm:$0xff]
      %v1996 = vld [vmem:[%s1992 + $0x18] sm:$0xff]
      %v1997 = vld [vmem:[%s1992 + $0x20] sm:$0xff]
      %v1998 = vld [vmem:[%s1992 + $0x28] sm:$0xff]
      %v1999 = vld [vmem:[%s1992 + $0x30] sm:$0xff]
      %v2000 = vld [vmem:[%s1992 + $0x38] sm:$0xff]
      %2009 = vrot.lane.b32.xlu0 %v1993, 35
      %v2010 = vpop.permute.xlu0 %2009
      %2011 = vrot.lane.b32.xlu0 %v1994, 35
      %v2012 = vpop.permute.xlu0 %2011
      %2013 = vrot.lane.b32.xlu0 %v1995, 35
      %v2014 = vpop.permute.xlu0 %2013
      %2015 = vrot.lane.b32.xlu0 %v1996, 35
      %v2016 = vpop.permute.xlu0 %2015
      %2017 = vrot.lane.b32.xlu0 %v1997, 35
      %v2018 = vpop.permute.xlu0 %2017
      %2019 = vrot.lane.b32.xlu0 %v1998, 35
      %v2020 = vpop.permute.xlu0 %2019
      %2021 = vrot.lane.b32.xlu0 %v1999, 35
      %v2022 = vpop.permute.xlu0 %2021
      %2023 = vrot.lane.b32.xlu0 %v2000, 35
      %v2024 = vpop.permute.xlu0 %2023
      %vm2033 = vcmask 294168
      %2034 = vst.msk [vmem:[#allocation2] sm:$0xff] %vm2033, %v2010
      %2035 = vst.msk [vmem:[#allocation2 + $0x8] sm:$0xff] %vm2033, %v2012
      %2036 = vst.msk [vmem:[#allocation2 + $0x10] sm:$0xff] %vm2033, %v2014
      %2037 = vst.msk [vmem:[#allocation2 + $0x18] sm:$0xff] %vm2033, %v2016
      %2038 = vst.msk [vmem:[#allocation2 + $0x20] sm:$0xff] %vm2033, %v2018
      %2039 = vst.msk [vmem:[#allocation2 + $0x28] sm:$0xff] %vm2033, %v2020
      %2040 = vst.msk [vmem:[#allocation2 + $0x30] sm:$0xff] %vm2033, %v2022
      %2041 = vst.msk [vmem:[#allocation2 + $0x38] sm:$0xff] %vm2033, %v2024
      %s2042 = sadd.s32 %s238, 36
      %s2043 = scalar_lea.vmem %s221, %s2042
      %v2044 = vld [vmem:[%s2043] sm:$0xff]
      %v2045 = vld [vmem:[%s2043 + $0x8] sm:$0xff]
      %v2046 = vld [vmem:[%s2043 + $0x10] sm:$0xff]
      %v2047 = vld [vmem:[%s2043 + $0x18] sm:$0xff]
      %v2048 = vld [vmem:[%s2043 + $0x20] sm:$0xff]
      %v2049 = vld [vmem:[%s2043 + $0x28] sm:$0xff]
      %v2050 = vld [vmem:[%s2043 + $0x30] sm:$0xff]
      %v2051 = vld [vmem:[%s2043 + $0x38] sm:$0xff]
      %2060 = vrot.lane.b32.xlu0 %v2044, 36
      %v2061 = vpop.permute.xlu0 %2060
      %2062 = vrot.lane.b32.xlu0 %v2045, 36
      %v2063 = vpop.permute.xlu0 %2062
      %2064 = vrot.lane.b32.xlu0 %v2046, 36
      %v2065 = vpop.permute.xlu0 %2064
      %2066 = vrot.lane.b32.xlu0 %v2047, 36
      %v2067 = vpop.permute.xlu0 %2066
      %2068 = vrot.lane.b32.xlu0 %v2048, 36
      %v2069 = vpop.permute.xlu0 %2068
      %2070 = vrot.lane.b32.xlu0 %v2049, 36
      %v2071 = vpop.permute.xlu0 %2070
      %2072 = vrot.lane.b32.xlu0 %v2050, 36
      %v2073 = vpop.permute.xlu0 %2072
      %2074 = vrot.lane.b32.xlu0 %v2051, 36
      %v2075 = vpop.permute.xlu0 %2074
      %vm2084 = vcmask 302368
      %2085 = vst.msk [vmem:[#allocation2] sm:$0xff] %vm2084, %v2061
      %2086 = vst.msk [vmem:[#allocation2 + $0x8] sm:$0xff] %vm2084, %v2063
      %2087 = vst.msk [vmem:[#allocation2 + $0x10] sm:$0xff] %vm2084, %v2065
      %2088 = vst.msk [vmem:[#allocation2 + $0x18] sm:$0xff] %vm2084, %v2067
      %2089 = vst.msk [vmem:[#allocation2 + $0x20] sm:$0xff] %vm2084, %v2069
      %2090 = vst.msk [vmem:[#allocation2 + $0x28] sm:$0xff] %vm2084, %v2071
      %2091 = vst.msk [vmem:[#allocation2 + $0x30] sm:$0xff] %vm2084, %v2073
      %2092 = vst.msk [vmem:[#allocation2 + $0x38] sm:$0xff] %vm2084, %v2075
      %s2093 = sadd.s32 %s238, 37
      %s2094 = scalar_lea.vmem %s221, %s2093
      %v2095 = vld [vmem:[%s2094] sm:$0xff]
      %v2096 = vld [vmem:[%s2094 + $0x8] sm:$0xff]
      %v2097 = vld [vmem:[%s2094 + $0x10] sm:$0xff]
      %v2098 = vld [vmem:[%s2094 + $0x18] sm:$0xff]
      %v2099 = vld [vmem:[%s2094 + $0x20] sm:$0xff]
      %v2100 = vld [vmem:[%s2094 + $0x28] sm:$0xff]
      %v2101 = vld [vmem:[%s2094 + $0x30] sm:$0xff]
      %v2102 = vld [vmem:[%s2094 + $0x38] sm:$0xff]
      %2111 = vrot.lane.b32.xlu0 %v2095, 37
      %v2112 = vpop.permute.xlu0 %2111
      %2113 = vrot.lane.b32.xlu0 %v2096, 37
      %v2114 = vpop.permute.xlu0 %2113
      %2115 = vrot.lane.b32.xlu0 %v2097, 37
      %v2116 = vpop.permute.xlu0 %2115
      %2117 = vrot.lane.b32.xlu0 %v2098, 37
      %v2118 = vpop.permute.xlu0 %2117
      %2119 = vrot.lane.b32.xlu0 %v2099, 37
      %v2120 = vpop.permute.xlu0 %2119
      %2121 = vrot.lane.b32.xlu0 %v2100, 37
      %v2122 = vpop.permute.xlu0 %2121
      %2123 = vrot.lane.b32.xlu0 %v2101, 37
      %v2124 = vpop.permute.xlu0 %2123
      %2125 = vrot.lane.b32.xlu0 %v2102, 37
      %v2126 = vpop.permute.xlu0 %2125
      %vm2135 = vcmask 310568
      %2136 = vst.msk [vmem:[#allocation2] sm:$0xff] %vm2135, %v2112
      %2137 = vst.msk [vmem:[#allocation2 + $0x8] sm:$0xff] %vm2135, %v2114
      %2138 = vst.msk [vmem:[#allocation2 + $0x10] sm:$0xff] %vm2135, %v2116
      %2139 = vst.msk [vmem:[#allocation2 + $0x18] sm:$0xff] %vm2135, %v2118
      %2140 = vst.msk [vmem:[#allocation2 + $0x20] sm:$0xff] %vm2135, %v2120
      %2141 = vst.msk [vmem:[#allocation2 + $0x28] sm:$0xff] %vm2135, %v2122
      %2142 = vst.msk [vmem:[#allocation2 + $0x30] sm:$0xff] %vm2135, %v2124
      %2143 = vst.msk [vmem:[#allocation2 + $0x38] sm:$0xff] %vm2135, %v2126
      %s2144 = sadd.s32 %s238, 38
      %s2145 = scalar_lea.vmem %s221, %s2144
      %v2146 = vld [vmem:[%s2145] sm:$0xff]
      %v2147 = vld [vmem:[%s2145 + $0x8] sm:$0xff]
      %v2148 = vld [vmem:[%s2145 + $0x10] sm:$0xff]
      %v2149 = vld [vmem:[%s2145 + $0x18] sm:$0xff]
      %v2150 = vld [vmem:[%s2145 + $0x20] sm:$0xff]
      %v2151 = vld [vmem:[%s2145 + $0x28] sm:$0xff]
      %v2152 = vld [vmem:[%s2145 + $0x30] sm:$0xff]
      %v2153 = vld [vmem:[%s2145 + $0x38] sm:$0xff]
      %2162 = vrot.lane.b32.xlu0 %v2146, 38
      %v2163 = vpop.permute.xlu0 %2162
      %2164 = vrot.lane.b32.xlu0 %v2147, 38
      %v2165 = vpop.permute.xlu0 %2164
      %2166 = vrot.lane.b32.xlu0 %v2148, 38
      %v2167 = vpop.permute.xlu0 %2166
      %2168 = vrot.lane.b32.xlu0 %v2149, 38
      %v2169 = vpop.permute.xlu0 %2168
      %2170 = vrot.lane.b32.xlu0 %v2150, 38
      %v2171 = vpop.permute.xlu0 %2170
      %2172 = vrot.lane.b32.xlu0 %v2151, 38
      %v2173 = vpop.permute.xlu0 %2172
      %2174 = vrot.lane.b32.xlu0 %v2152, 38
      %v2175 = vpop.permute.xlu0 %2174
      %2176 = vrot.lane.b32.xlu0 %v2153, 38
      %v2177 = vpop.permute.xlu0 %2176
      %vm2186 = vcmask 318768
      %2187 = vst.msk [vmem:[#allocation2] sm:$0xff] %vm2186, %v2163
      %2188 = vst.msk [vmem:[#allocation2 + $0x8] sm:$0xff] %vm2186, %v2165
      %2189 = vst.msk [vmem:[#allocation2 + $0x10] sm:$0xff] %vm2186, %v2167
      %2190 = vst.msk [vmem:[#allocation2 + $0x18] sm:$0xff] %vm2186, %v2169
      %2191 = vst.msk [vmem:[#allocation2 + $0x20] sm:$0xff] %vm2186, %v2171
      %2192 = vst.msk [vmem:[#allocation2 + $0x28] sm:$0xff] %vm2186, %v2173
      %2193 = vst.msk [vmem:[#allocation2 + $0x30] sm:$0xff] %vm2186, %v2175
      %2194 = vst.msk [vmem:[#allocation2 + $0x38] sm:$0xff] %vm2186, %v2177
      %s2195 = sadd.s32 %s238, 39
      %s2196 = scalar_lea.vmem %s221, %s2195
      %v2197 = vld [vmem:[%s2196] sm:$0xff]
      %v2198 = vld [vmem:[%s2196 + $0x8] sm:$0xff]
      %v2199 = vld [vmem:[%s2196 + $0x10] sm:$0xff]
      %v2200 = vld [vmem:[%s2196 + $0x18] sm:$0xff]
      %v2201 = vld [vmem:[%s2196 + $0x20] sm:$0xff]
      %v2202 = vld [vmem:[%s2196 + $0x28] sm:$0xff]
      %v2203 = vld [vmem:[%s2196 + $0x30] sm:$0xff]
      %v2204 = vld [vmem:[%s2196 + $0x38] sm:$0xff]
      %2213 = vrot.lane.b32.xlu0 %v2197, 39
      %v2214 = vpop.permute.xlu0 %2213
      %2215 = vrot.lane.b32.xlu0 %v2198, 39
      %v2216 = vpop.permute.xlu0 %2215
      %2217 = vrot.lane.b32.xlu0 %v2199, 39
      %v2218 = vpop.permute.xlu0 %2217
      %2219 = vrot.lane.b32.xlu0 %v2200, 39
      %v2220 = vpop.permute.xlu0 %2219
      %2221 = vrot.lane.b32.xlu0 %v2201, 39
      %v2222 = vpop.permute.xlu0 %2221
      %2223 = vrot.lane.b32.xlu0 %v2202, 39
      %v2224 = vpop.permute.xlu0 %2223
      %2225 = vrot.lane.b32.xlu0 %v2203, 39
      %v2226 = vpop.permute.xlu0 %2225
      %2227 = vrot.lane.b32.xlu0 %v2204, 39
      %v2228 = vpop.permute.xlu0 %2227
      %vm2237 = vcmask 326968
      %2238 = vst.msk [vmem:[#allocation2] sm:$0xff] %vm2237, %v2214
      %2239 = vst.msk [vmem:[#allocation2 + $0x8] sm:$0xff] %vm2237, %v2216
      %2240 = vst.msk [vmem:[#allocation2 + $0x10] sm:$0xff] %vm2237, %v2218
      %2241 = vst.msk [vmem:[#allocation2 + $0x18] sm:$0xff] %vm2237, %v2220
      %2242 = vst.msk [vmem:[#allocation2 + $0x20] sm:$0xff] %vm2237, %v2222
      %2243 = vst.msk [vmem:[#allocation2 + $0x28] sm:$0xff] %vm2237, %v2224
      %2244 = vst.msk [vmem:[#allocation2 + $0x30] sm:$0xff] %vm2237, %v2226
      %2245 = vst.msk [vmem:[#allocation2 + $0x38] sm:$0xff] %vm2237, %v2228
      %s2246 = sadd.s32 %s238, 40
      %s2247 = scalar_lea.vmem %s221, %s2246
      %v2248 = vld [vmem:[%s2247] sm:$0xff]
      %v2249 = vld [vmem:[%s2247 + $0x8] sm:$0xff]
      %v2250 = vld [vmem:[%s2247 + $0x10] sm:$0xff]
      %v2251 = vld [vmem:[%s2247 + $0x18] sm:$0xff]
      %v2252 = vld [vmem:[%s2247 + $0x20] sm:$0xff]
      %v2253 = vld [vmem:[%s2247 + $0x28] sm:$0xff]
      %v2254 = vld [vmem:[%s2247 + $0x30] sm:$0xff]
      %v2255 = vld [vmem:[%s2247 + $0x38] sm:$0xff]
      %2264 = vrot.lane.b32.xlu0 %v2248, 40
      %v2265 = vpop.permute.xlu0 %2264
      %2266 = vrot.lane.b32.xlu0 %v2249, 40
      %v2267 = vpop.permute.xlu0 %2266
      %2268 = vrot.lane.b32.xlu0 %v2250, 40
      %v2269 = vpop.permute.xlu0 %2268
      %2270 = vrot.lane.b32.xlu0 %v2251, 40
      %v2271 = vpop.permute.xlu0 %2270
      %2272 = vrot.lane.b32.xlu0 %v2252, 40
      %v2273 = vpop.permute.xlu0 %2272
      %2274 = vrot.lane.b32.xlu0 %v2253, 40
      %v2275 = vpop.permute.xlu0 %2274
      %2276 = vrot.lane.b32.xlu0 %v2254, 40
      %v2277 = vpop.permute.xlu0 %2276
      %2278 = vrot.lane.b32.xlu0 %v2255, 40
      %v2279 = vpop.permute.xlu0 %2278
      %vm2288 = vcmask 335168
      %2289 = vst.msk [vmem:[#allocation2] sm:$0xff] %vm2288, %v2265
      %2290 = vst.msk [vmem:[#allocation2 + $0x8] sm:$0xff] %vm2288, %v2267
      %2291 = vst.msk [vmem:[#allocation2 + $0x10] sm:$0xff] %vm2288, %v2269
      %2292 = vst.msk [vmem:[#allocation2 + $0x18] sm:$0xff] %vm2288, %v2271
      %2293 = vst.msk [vmem:[#allocation2 + $0x20] sm:$0xff] %vm2288, %v2273
      %2294 = vst.msk [vmem:[#allocation2 + $0x28] sm:$0xff] %vm2288, %v2275
      %2295 = vst.msk [vmem:[#allocation2 + $0x30] sm:$0xff] %vm2288, %v2277
      %2296 = vst.msk [vmem:[#allocation2 + $0x38] sm:$0xff] %vm2288, %v2279
      %s2297 = sadd.s32 %s238, 41
      %s2298 = scalar_lea.vmem %s221, %s2297
      %v2299 = vld [vmem:[%s2298] sm:$0xff]
      %v2300 = vld [vmem:[%s2298 + $0x8] sm:$0xff]
      %v2301 = vld [vmem:[%s2298 + $0x10] sm:$0xff]
      %v2302 = vld [vmem:[%s2298 + $0x18] sm:$0xff]
      %v2303 = vld [vmem:[%s2298 + $0x20] sm:$0xff]
      %v2304 = vld [vmem:[%s2298 + $0x28] sm:$0xff]
      %v2305 = vld [vmem:[%s2298 + $0x30] sm:$0xff]
      %v2306 = vld [vmem:[%s2298 + $0x38] sm:$0xff]
      %2315 = vrot.lane.b32.xlu0 %v2299, 41
      %v2316 = vpop.permute.xlu0 %2315
      %2317 = vrot.lane.b32.xlu0 %v2300, 41
      %v2318 = vpop.permute.xlu0 %2317
      %2319 = vrot.lane.b32.xlu0 %v2301, 41
      %v2320 = vpop.permute.xlu0 %2319
      %2321 = vrot.lane.b32.xlu0 %v2302, 41
      %v2322 = vpop.permute.xlu0 %2321
      %2323 = vrot.lane.b32.xlu0 %v2303, 41
      %v2324 = vpop.permute.xlu0 %2323
      %2325 = vrot.lane.b32.xlu0 %v2304, 41
      %v2326 = vpop.permute.xlu0 %2325
      %2327 = vrot.lane.b32.xlu0 %v2305, 41
      %v2328 = vpop.permute.xlu0 %2327
      %2329 = vrot.lane.b32.xlu0 %v2306, 41
      %v2330 = vpop.permute.xlu0 %2329
      %vm2339 = vcmask 343368
      %2340 = vst.msk [vmem:[#allocation2] sm:$0xff] %vm2339, %v2316
      %2341 = vst.msk [vmem:[#allocation2 + $0x8] sm:$0xff] %vm2339, %v2318
      %2342 = vst.msk [vmem:[#allocation2 + $0x10] sm:$0xff] %vm2339, %v2320
      %2343 = vst.msk [vmem:[#allocation2 + $0x18] sm:$0xff] %vm2339, %v2322
      %2344 = vst.msk [vmem:[#allocation2 + $0x20] sm:$0xff] %vm2339, %v2324
      %2345 = vst.msk [vmem:[#allocation2 + $0x28] sm:$0xff] %vm2339, %v2326
      %2346 = vst.msk [vmem:[#allocation2 + $0x30] sm:$0xff] %vm2339, %v2328
      %2347 = vst.msk [vmem:[#allocation2 + $0x38] sm:$0xff] %vm2339, %v2330
      %s2348 = sadd.s32 %s238, 42
      %s2349 = scalar_lea.vmem %s221, %s2348
      %v2350 = vld [vmem:[%s2349] sm:$0xff]
      %v2351 = vld [vmem:[%s2349 + $0x8] sm:$0xff]
      %v2352 = vld [vmem:[%s2349 + $0x10] sm:$0xff]
      %v2353 = vld [vmem:[%s2349 + $0x18] sm:$0xff]
      %v2354 = vld [vmem:[%s2349 + $0x20] sm:$0xff]
      %v2355 = vld [vmem:[%s2349 + $0x28] sm:$0xff]
      %v2356 = vld [vmem:[%s2349 + $0x30] sm:$0xff]
      %v2357 = vld [vmem:[%s2349 + $0x38] sm:$0xff]
      %2366 = vrot.lane.b32.xlu0 %v2350, 42
      %v2367 = vpop.permute.xlu0 %2366
      %2368 = vrot.lane.b32.xlu0 %v2351, 42
      %v2369 = vpop.permute.xlu0 %2368
      %2370 = vrot.lane.b32.xlu0 %v2352, 42
      %v2371 = vpop.permute.xlu0 %2370
      %2372 = vrot.lane.b32.xlu0 %v2353, 42
      %v2373 = vpop.permute.xlu0 %2372
      %2374 = vrot.lane.b32.xlu0 %v2354, 42
      %v2375 = vpop.permute.xlu0 %2374
      %2376 = vrot.lane.b32.xlu0 %v2355, 42
      %v2377 = vpop.permute.xlu0 %2376
      %2378 = vrot.lane.b32.xlu0 %v2356, 42
      %v2379 = vpop.permute.xlu0 %2378
      %2380 = vrot.lane.b32.xlu0 %v2357, 42
      %v2381 = vpop.permute.xlu0 %2380
      %vm2390 = vcmask 351568
      %2391 = vst.msk [vmem:[#allocation2] sm:$0xff] %vm2390, %v2367
      %2392 = vst.msk [vmem:[#allocation2 + $0x8] sm:$0xff] %vm2390, %v2369
      %2393 = vst.msk [vmem:[#allocation2 + $0x10] sm:$0xff] %vm2390, %v2371
      %2394 = vst.msk [vmem:[#allocation2 + $0x18] sm:$0xff] %vm2390, %v2373
      %2395 = vst.msk [vmem:[#allocation2 + $0x20] sm:$0xff] %vm2390, %v2375
      %2396 = vst.msk [vmem:[#allocation2 + $0x28] sm:$0xff] %vm2390, %v2377
      %2397 = vst.msk [vmem:[#allocation2 + $0x30] sm:$0xff] %vm2390, %v2379
      %2398 = vst.msk [vmem:[#allocation2 + $0x38] sm:$0xff] %vm2390, %v2381
      %s2399 = sadd.s32 %s238, 43
      %s2400 = scalar_lea.vmem %s221, %s2399
      %v2401 = vld [vmem:[%s2400] sm:$0xff]
      %v2402 = vld [vmem:[%s2400 + $0x8] sm:$0xff]
      %v2403 = vld [vmem:[%s2400 + $0x10] sm:$0xff]
      %v2404 = vld [vmem:[%s2400 + $0x18] sm:$0xff]
      %v2405 = vld [vmem:[%s2400 + $0x20] sm:$0xff]
      %v2406 = vld [vmem:[%s2400 + $0x28] sm:$0xff]
      %v2407 = vld [vmem:[%s2400 + $0x30] sm:$0xff]
      %v2408 = vld [vmem:[%s2400 + $0x38] sm:$0xff]
      %2417 = vrot.lane.b32.xlu0 %v2401, 43
      %v2418 = vpop.permute.xlu0 %2417
      %2419 = vrot.lane.b32.xlu0 %v2402, 43
      %v2420 = vpop.permute.xlu0 %2419
      %2421 = vrot.lane.b32.xlu0 %v2403, 43
      %v2422 = vpop.permute.xlu0 %2421
      %2423 = vrot.lane.b32.xlu0 %v2404, 43
      %v2424 = vpop.permute.xlu0 %2423
      %2425 = vrot.lane.b32.xlu0 %v2405, 43
      %v2426 = vpop.permute.xlu0 %2425
      %2427 = vrot.lane.b32.xlu0 %v2406, 43
      %v2428 = vpop.permute.xlu0 %2427
      %2429 = vrot.lane.b32.xlu0 %v2407, 43
      %v2430 = vpop.permute.xlu0 %2429
      %2431 = vrot.lane.b32.xlu0 %v2408, 43
      %v2432 = vpop.permute.xlu0 %2431
      %vm2441 = vcmask 359768
      %2442 = vst.msk [vmem:[#allocation2] sm:$0xff] %vm2441, %v2418
      %2443 = vst.msk [vmem:[#allocation2 + $0x8] sm:$0xff] %vm2441, %v2420
      %2444 = vst.msk [vmem:[#allocation2 + $0x10] sm:$0xff] %vm2441, %v2422
      %2445 = vst.msk [vmem:[#allocation2 + $0x18] sm:$0xff] %vm2441, %v2424
      %2446 = vst.msk [vmem:[#allocation2 + $0x20] sm:$0xff] %vm2441, %v2426
      %2447 = vst.msk [vmem:[#allocation2 + $0x28] sm:$0xff] %vm2441, %v2428
      %2448 = vst.msk [vmem:[#allocation2 + $0x30] sm:$0xff] %vm2441, %v2430
      %2449 = vst.msk [vmem:[#allocation2 + $0x38] sm:$0xff] %vm2441, %v2432
      %s2450 = sadd.s32 %s238, 44
      %s2451 = scalar_lea.vmem %s221, %s2450
      %v2452 = vld [vmem:[%s2451] sm:$0xff]
      %v2453 = vld [vmem:[%s2451 + $0x8] sm:$0xff]
      %v2454 = vld [vmem:[%s2451 + $0x10] sm:$0xff]
      %v2455 = vld [vmem:[%s2451 + $0x18] sm:$0xff]
      %v2456 = vld [vmem:[%s2451 + $0x20] sm:$0xff]
      %v2457 = vld [vmem:[%s2451 + $0x28] sm:$0xff]
      %v2458 = vld [vmem:[%s2451 + $0x30] sm:$0xff]
      %v2459 = vld [vmem:[%s2451 + $0x38] sm:$0xff]
      %2468 = vrot.lane.b32.xlu0 %v2452, 44
      %v2469 = vpop.permute.xlu0 %2468
      %2470 = vrot.lane.b32.xlu0 %v2453, 44
      %v2471 = vpop.permute.xlu0 %2470
      %2472 = vrot.lane.b32.xlu0 %v2454, 44
      %v2473 = vpop.permute.xlu0 %2472
      %2474 = vrot.lane.b32.xlu0 %v2455, 44
      %v2475 = vpop.permute.xlu0 %2474
      %2476 = vrot.lane.b32.xlu0 %v2456, 44
      %v2477 = vpop.permute.xlu0 %2476
      %2478 = vrot.lane.b32.xlu0 %v2457, 44
      %v2479 = vpop.permute.xlu0 %2478
      %2480 = vrot.lane.b32.xlu0 %v2458, 44
      %v2481 = vpop.permute.xlu0 %2480
      %2482 = vrot.lane.b32.xlu0 %v2459, 44
      %v2483 = vpop.permute.xlu0 %2482
      %vm2492 = vcmask 367968
      %2493 = vst.msk [vmem:[#allocation2] sm:$0xff] %vm2492, %v2469
      %2494 = vst.msk [vmem:[#allocation2 + $0x8] sm:$0xff] %vm2492, %v2471
      %2495 = vst.msk [vmem:[#allocation2 + $0x10] sm:$0xff] %vm2492, %v2473
      %2496 = vst.msk [vmem:[#allocation2 + $0x18] sm:$0xff] %vm2492, %v2475
      %2497 = vst.msk [vmem:[#allocation2 + $0x20] sm:$0xff] %vm2492, %v2477
      %2498 = vst.msk [vmem:[#allocation2 + $0x28] sm:$0xff] %vm2492, %v2479
      %2499 = vst.msk [vmem:[#allocation2 + $0x30] sm:$0xff] %vm2492, %v2481
      %2500 = vst.msk [vmem:[#allocation2 + $0x38] sm:$0xff] %vm2492, %v2483
      %s2501 = sadd.s32 %s238, 45
      %s2502 = scalar_lea.vmem %s221, %s2501
      %v2503 = vld [vmem:[%s2502] sm:$0xff]
      %v2504 = vld [vmem:[%s2502 + $0x8] sm:$0xff]
      %v2505 = vld [vmem:[%s2502 + $0x10] sm:$0xff]
      %v2506 = vld [vmem:[%s2502 + $0x18] sm:$0xff]
      %v2507 = vld [vmem:[%s2502 + $0x20] sm:$0xff]
      %v2508 = vld [vmem:[%s2502 + $0x28] sm:$0xff]
      %v2509 = vld [vmem:[%s2502 + $0x30] sm:$0xff]
      %v2510 = vld [vmem:[%s2502 + $0x38] sm:$0xff]
      %2519 = vrot.lane.b32.xlu0 %v2503, 45
      %v2520 = vpop.permute.xlu0 %2519
      %2521 = vrot.lane.b32.xlu0 %v2504, 45
      %v2522 = vpop.permute.xlu0 %2521
      %2523 = vrot.lane.b32.xlu0 %v2505, 45
      %v2524 = vpop.permute.xlu0 %2523
      %2525 = vrot.lane.b32.xlu0 %v2506, 45
      %v2526 = vpop.permute.xlu0 %2525
      %2527 = vrot.lane.b32.xlu0 %v2507, 45
      %v2528 = vpop.permute.xlu0 %2527
      %2529 = vrot.lane.b32.xlu0 %v2508, 45
      %v2530 = vpop.permute.xlu0 %2529
      %2531 = vrot.lane.b32.xlu0 %v2509, 45
      %v2532 = vpop.permute.xlu0 %2531
      %2533 = vrot.lane.b32.xlu0 %v2510, 45
      %v2534 = vpop.permute.xlu0 %2533
      %vm2543 = vcmask 376168
      %2544 = vst.msk [vmem:[#allocation2] sm:$0xff] %vm2543, %v2520
      %2545 = vst.msk [vmem:[#allocation2 + $0x8] sm:$0xff] %vm2543, %v2522
      %2546 = vst.msk [vmem:[#allocation2 + $0x10] sm:$0xff] %vm2543, %v2524
      %2547 = vst.msk [vmem:[#allocation2 + $0x18] sm:$0xff] %vm2543, %v2526
      %2548 = vst.msk [vmem:[#allocation2 + $0x20] sm:$0xff] %vm2543, %v2528
      %2549 = vst.msk [vmem:[#allocation2 + $0x28] sm:$0xff] %vm2543, %v2530
      %2550 = vst.msk [vmem:[#allocation2 + $0x30] sm:$0xff] %vm2543, %v2532
      %2551 = vst.msk [vmem:[#allocation2 + $0x38] sm:$0xff] %vm2543, %v2534
      %s2552 = sadd.s32 %s238, 46
      %s2553 = scalar_lea.vmem %s221, %s2552
      %v2554 = vld [vmem:[%s2553] sm:$0xff]
      %v2555 = vld [vmem:[%s2553 + $0x8] sm:$0xff]
      %v2556 = vld [vmem:[%s2553 + $0x10] sm:$0xff]
      %v2557 = vld [vmem:[%s2553 + $0x18] sm:$0xff]
      %v2558 = vld [vmem:[%s2553 + $0x20] sm:$0xff]
      %v2559 = vld [vmem:[%s2553 + $0x28] sm:$0xff]
      %v2560 = vld [vmem:[%s2553 + $0x30] sm:$0xff]
      %v2561 = vld [vmem:[%s2553 + $0x38] sm:$0xff]
      %2570 = vrot.lane.b32.xlu0 %v2554, 46
      %v2571 = vpop.permute.xlu0 %2570
      %2572 = vrot.lane.b32.xlu0 %v2555, 46
      %v2573 = vpop.permute.xlu0 %2572
      %2574 = vrot.lane.b32.xlu0 %v2556, 46
      %v2575 = vpop.permute.xlu0 %2574
      %2576 = vrot.lane.b32.xlu0 %v2557, 46
      %v2577 = vpop.permute.xlu0 %2576
      %2578 = vrot.lane.b32.xlu0 %v2558, 46
      %v2579 = vpop.permute.xlu0 %2578
      %2580 = vrot.lane.b32.xlu0 %v2559, 46
      %v2581 = vpop.permute.xlu0 %2580
      %2582 = vrot.lane.b32.xlu0 %v2560, 46
      %v2583 = vpop.permute.xlu0 %2582
      %2584 = vrot.lane.b32.xlu0 %v2561, 46
      %v2585 = vpop.permute.xlu0 %2584
      %vm2594 = vcmask 384368
      %2595 = vst.msk [vmem:[#allocation2] sm:$0xff] %vm2594, %v2571
      %2596 = vst.msk [vmem:[#allocation2 + $0x8] sm:$0xff] %vm2594, %v2573
      %2597 = vst.msk [vmem:[#allocation2 + $0x10] sm:$0xff] %vm2594, %v2575
      %2598 = vst.msk [vmem:[#allocation2 + $0x18] sm:$0xff] %vm2594, %v2577
      %2599 = vst.msk [vmem:[#allocation2 + $0x20] sm:$0xff] %vm2594, %v2579
      %2600 = vst.msk [vmem:[#allocation2 + $0x28] sm:$0xff] %vm2594, %v2581
      %2601 = vst.msk [vmem:[#allocation2 + $0x30] sm:$0xff] %vm2594, %v2583
      %2602 = vst.msk [vmem:[#allocation2 + $0x38] sm:$0xff] %vm2594, %v2585
      %s2603 = sadd.s32 %s238, 47
      %s2604 = scalar_lea.vmem %s221, %s2603
      %v2605 = vld [vmem:[%s2604] sm:$0xff]
      %v2606 = vld [vmem:[%s2604 + $0x8] sm:$0xff]
      %v2607 = vld [vmem:[%s2604 + $0x10] sm:$0xff]
      %v2608 = vld [vmem:[%s2604 + $0x18] sm:$0xff]
      %v2609 = vld [vmem:[%s2604 + $0x20] sm:$0xff]
      %v2610 = vld [vmem:[%s2604 + $0x28] sm:$0xff]
      %v2611 = vld [vmem:[%s2604 + $0x30] sm:$0xff]
      %v2612 = vld [vmem:[%s2604 + $0x38] sm:$0xff]
      %2621 = vrot.lane.b32.xlu0 %v2605, 47
      %v2622 = vpop.permute.xlu0 %2621
      %2623 = vrot.lane.b32.xlu0 %v2606, 47
      %v2624 = vpop.permute.xlu0 %2623
      %2625 = vrot.lane.b32.xlu0 %v2607, 47
      %v2626 = vpop.permute.xlu0 %2625
      %2627 = vrot.lane.b32.xlu0 %v2608, 47
      %v2628 = vpop.permute.xlu0 %2627
      %2629 = vrot.lane.b32.xlu0 %v2609, 47
      %v2630 = vpop.permute.xlu0 %2629
      %2631 = vrot.lane.b32.xlu0 %v2610, 47
      %v2632 = vpop.permute.xlu0 %2631
      %2633 = vrot.lane.b32.xlu0 %v2611, 47
      %v2634 = vpop.permute.xlu0 %2633
      %2635 = vrot.lane.b32.xlu0 %v2612, 47
      %v2636 = vpop.permute.xlu0 %2635
      %vm2645 = vcmask 392568
      %2646 = vst.msk [vmem:[#allocation2] sm:$0xff] %vm2645, %v2622
      %2647 = vst.msk [vmem:[#allocation2 + $0x8] sm:$0xff] %vm2645, %v2624
      %2648 = vst.msk [vmem:[#allocation2 + $0x10] sm:$0xff] %vm2645, %v2626
      %2649 = vst.msk [vmem:[#allocation2 + $0x18] sm:$0xff] %vm2645, %v2628
      %2650 = vst.msk [vmem:[#allocation2 + $0x20] sm:$0xff] %vm2645, %v2630
      %2651 = vst.msk [vmem:[#allocation2 + $0x28] sm:$0xff] %vm2645, %v2632
      %2652 = vst.msk [vmem:[#allocation2 + $0x30] sm:$0xff] %vm2645, %v2634
      %2653 = vst.msk [vmem:[#allocation2 + $0x38] sm:$0xff] %vm2645, %v2636
      %s2654 = sadd.s32 %s238, 48
      %s2655 = scalar_lea.vmem %s221, %s2654
      %v2656 = vld [vmem:[%s2655] sm:$0xff]
      %v2657 = vld [vmem:[%s2655 + $0x8] sm:$0xff]
      %v2658 = vld [vmem:[%s2655 + $0x10] sm:$0xff]
      %v2659 = vld [vmem:[%s2655 + $0x18] sm:$0xff]
      %v2660 = vld [vmem:[%s2655 + $0x20] sm:$0xff]
      %v2661 = vld [vmem:[%s2655 + $0x28] sm:$0xff]
      %v2662 = vld [vmem:[%s2655 + $0x30] sm:$0xff]
      %v2663 = vld [vmem:[%s2655 + $0x38] sm:$0xff]
      %2672 = vrot.lane.b32.xlu0 %v2656, 48
      %v2673 = vpop.permute.xlu0 %2672
      %2674 = vrot.lane.b32.xlu0 %v2657, 48
      %v2675 = vpop.permute.xlu0 %2674
      %2676 = vrot.lane.b32.xlu0 %v2658, 48
      %v2677 = vpop.permute.xlu0 %2676
      %2678 = vrot.lane.b32.xlu0 %v2659, 48
      %v2679 = vpop.permute.xlu0 %2678
      %2680 = vrot.lane.b32.xlu0 %v2660, 48
      %v2681 = vpop.permute.xlu0 %2680
      %2682 = vrot.lane.b32.xlu0 %v2661, 48
      %v2683 = vpop.permute.xlu0 %2682
      %2684 = vrot.lane.b32.xlu0 %v2662, 48
      %v2685 = vpop.permute.xlu0 %2684
      %2686 = vrot.lane.b32.xlu0 %v2663, 48
      %v2687 = vpop.permute.xlu0 %2686
      %vm2696 = vcmask 400768
      %2697 = vst.msk [vmem:[#allocation2] sm:$0xff] %vm2696, %v2673
      %2698 = vst.msk [vmem:[#allocation2 + $0x8] sm:$0xff] %vm2696, %v2675
      %2699 = vst.msk [vmem:[#allocation2 + $0x10] sm:$0xff] %vm2696, %v2677
      %2700 = vst.msk [vmem:[#allocation2 + $0x18] sm:$0xff] %vm2696, %v2679
      %2701 = vst.msk [vmem:[#allocation2 + $0x20] sm:$0xff] %vm2696, %v2681
      %2702 = vst.msk [vmem:[#allocation2 + $0x28] sm:$0xff] %vm2696, %v2683
      %2703 = vst.msk [vmem:[#allocation2 + $0x30] sm:$0xff] %vm2696, %v2685
      %2704 = vst.msk [vmem:[#allocation2 + $0x38] sm:$0xff] %vm2696, %v2687
      %s2705 = sadd.s32 %s238, 49
      %s2706 = scalar_lea.vmem %s221, %s2705
      %v2707 = vld [vmem:[%s2706] sm:$0xff]
      %v2708 = vld [vmem:[%s2706 + $0x8] sm:$0xff]
      %v2709 = vld [vmem:[%s2706 + $0x10] sm:$0xff]
      %v2710 = vld [vmem:[%s2706 + $0x18] sm:$0xff]
      %v2711 = vld [vmem:[%s2706 + $0x20] sm:$0xff]
      %v2712 = vld [vmem:[%s2706 + $0x28] sm:$0xff]
      %v2713 = vld [vmem:[%s2706 + $0x30] sm:$0xff]
      %v2714 = vld [vmem:[%s2706 + $0x38] sm:$0xff]
      %2723 = vrot.lane.b32.xlu0 %v2707, 49
      %v2724 = vpop.permute.xlu0 %2723
      %2725 = vrot.lane.b32.xlu0 %v2708, 49
      %v2726 = vpop.permute.xlu0 %2725
      %2727 = vrot.lane.b32.xlu0 %v2709, 49
      %v2728 = vpop.permute.xlu0 %2727
      %2729 = vrot.lane.b32.xlu0 %v2710, 49
      %v2730 = vpop.permute.xlu0 %2729
      %2731 = vrot.lane.b32.xlu0 %v2711, 49
      %v2732 = vpop.permute.xlu0 %2731
      %2733 = vrot.lane.b32.xlu0 %v2712, 49
      %v2734 = vpop.permute.xlu0 %2733
      %2735 = vrot.lane.b32.xlu0 %v2713, 49
      %v2736 = vpop.permute.xlu0 %2735
      %2737 = vrot.lane.b32.xlu0 %v2714, 49
      %v2738 = vpop.permute.xlu0 %2737
      %vm2747 = vcmask 408968
      %2748 = vst.msk [vmem:[#allocation2] sm:$0xff] %vm2747, %v2724
      %2749 = vst.msk [vmem:[#allocation2 + $0x8] sm:$0xff] %vm2747, %v2726
      %2750 = vst.msk [vmem:[#allocation2 + $0x10] sm:$0xff] %vm2747, %v2728
      %2751 = vst.msk [vmem:[#allocation2 + $0x18] sm:$0xff] %vm2747, %v2730
      %2752 = vst.msk [vmem:[#allocation2 + $0x20] sm:$0xff] %vm2747, %v2732
      %2753 = vst.msk [vmem:[#allocation2 + $0x28] sm:$0xff] %vm2747, %v2734
      %2754 = vst.msk [vmem:[#allocation2 + $0x30] sm:$0xff] %vm2747, %v2736
      %2755 = vst.msk [vmem:[#allocation2 + $0x38] sm:$0xff] %vm2747, %v2738
      %s2756 = sadd.s32 %s238, 50
      %s2757 = scalar_lea.vmem %s221, %s2756
      %v2758 = vld [vmem:[%s2757] sm:$0xff]
      %v2759 = vld [vmem:[%s2757 + $0x8] sm:$0xff]
      %v2760 = vld [vmem:[%s2757 + $0x10] sm:$0xff]
      %v2761 = vld [vmem:[%s2757 + $0x18] sm:$0xff]
      %v2762 = vld [vmem:[%s2757 + $0x20] sm:$0xff]
      %v2763 = vld [vmem:[%s2757 + $0x28] sm:$0xff]
      %v2764 = vld [vmem:[%s2757 + $0x30] sm:$0xff]
      %v2765 = vld [vmem:[%s2757 + $0x38] sm:$0xff]
      %2774 = vrot.lane.b32.xlu0 %v2758, 50
      %v2775 = vpop.permute.xlu0 %2774
      %2776 = vrot.lane.b32.xlu0 %v2759, 50
      %v2777 = vpop.permute.xlu0 %2776
      %2778 = vrot.lane.b32.xlu0 %v2760, 50
      %v2779 = vpop.permute.xlu0 %2778
      %2780 = vrot.lane.b32.xlu0 %v2761, 50
      %v2781 = vpop.permute.xlu0 %2780
      %2782 = vrot.lane.b32.xlu0 %v2762, 50
      %v2783 = vpop.permute.xlu0 %2782
      %2784 = vrot.lane.b32.xlu0 %v2763, 50
      %v2785 = vpop.permute.xlu0 %2784
      %2786 = vrot.lane.b32.xlu0 %v2764, 50
      %v2787 = vpop.permute.xlu0 %2786
      %2788 = vrot.lane.b32.xlu0 %v2765, 50
      %v2789 = vpop.permute.xlu0 %2788
      %vm2798 = vcmask 417168
      %2799 = vst.msk [vmem:[#allocation2] sm:$0xff] %vm2798, %v2775
      %2800 = vst.msk [vmem:[#allocation2 + $0x8] sm:$0xff] %vm2798, %v2777
      %2801 = vst.msk [vmem:[#allocation2 + $0x10] sm:$0xff] %vm2798, %v2779
      %2802 = vst.msk [vmem:[#allocation2 + $0x18] sm:$0xff] %vm2798, %v2781
      %2803 = vst.msk [vmem:[#allocation2 + $0x20] sm:$0xff] %vm2798, %v2783
      %2804 = vst.msk [vmem:[#allocation2 + $0x28] sm:$0xff] %vm2798, %v2785
      %2805 = vst.msk [vmem:[#allocation2 + $0x30] sm:$0xff] %vm2798, %v2787
      %2806 = vst.msk [vmem:[#allocation2 + $0x38] sm:$0xff] %vm2798, %v2789
      %s2807 = sadd.s32 %s238, 51
      %s2808 = scalar_lea.vmem %s221, %s2807
      %v2809 = vld [vmem:[%s2808] sm:$0xff]
      %v2810 = vld [vmem:[%s2808 + $0x8] sm:$0xff]
      %v2811 = vld [vmem:[%s2808 + $0x10] sm:$0xff]
      %v2812 = vld [vmem:[%s2808 + $0x18] sm:$0xff]
      %v2813 = vld [vmem:[%s2808 + $0x20] sm:$0xff]
      %v2814 = vld [vmem:[%s2808 + $0x28] sm:$0xff]
      %v2815 = vld [vmem:[%s2808 + $0x30] sm:$0xff]
      %v2816 = vld [vmem:[%s2808 + $0x38] sm:$0xff]
      %2825 = vrot.lane.b32.xlu0 %v2809, 51
      %v2826 = vpop.permute.xlu0 %2825
      %2827 = vrot.lane.b32.xlu0 %v2810, 51
      %v2828 = vpop.permute.xlu0 %2827
      %2829 = vrot.lane.b32.xlu0 %v2811, 51
      %v2830 = vpop.permute.xlu0 %2829
      %2831 = vrot.lane.b32.xlu0 %v2812, 51
      %v2832 = vpop.permute.xlu0 %2831
      %2833 = vrot.lane.b32.xlu0 %v2813, 51
      %v2834 = vpop.permute.xlu0 %2833
      %2835 = vrot.lane.b32.xlu0 %v2814, 51
      %v2836 = vpop.permute.xlu0 %2835
      %2837 = vrot.lane.b32.xlu0 %v2815, 51
      %v2838 = vpop.permute.xlu0 %2837
      %2839 = vrot.lane.b32.xlu0 %v2816, 51
      %v2840 = vpop.permute.xlu0 %2839
      %vm2849 = vcmask 425368
      %2850 = vst.msk [vmem:[#allocation2] sm:$0xff] %vm2849, %v2826
      %2851 = vst.msk [vmem:[#allocation2 + $0x8] sm:$0xff] %vm2849, %v2828
      %2852 = vst.msk [vmem:[#allocation2 + $0x10] sm:$0xff] %vm2849, %v2830
      %2853 = vst.msk [vmem:[#allocation2 + $0x18] sm:$0xff] %vm2849, %v2832
      %2854 = vst.msk [vmem:[#allocation2 + $0x20] sm:$0xff] %vm2849, %v2834
      %2855 = vst.msk [vmem:[#allocation2 + $0x28] sm:$0xff] %vm2849, %v2836
      %2856 = vst.msk [vmem:[#allocation2 + $0x30] sm:$0xff] %vm2849, %v2838
      %2857 = vst.msk [vmem:[#allocation2 + $0x38] sm:$0xff] %vm2849, %v2840
      %s2858 = sadd.s32 %s238, 52
      %s2859 = scalar_lea.vmem %s221, %s2858
      %v2860 = vld [vmem:[%s2859] sm:$0xff]
      %v2861 = vld [vmem:[%s2859 + $0x8] sm:$0xff]
      %v2862 = vld [vmem:[%s2859 + $0x10] sm:$0xff]
      %v2863 = vld [vmem:[%s2859 + $0x18] sm:$0xff]
      %v2864 = vld [vmem:[%s2859 + $0x20] sm:$0xff]
      %v2865 = vld [vmem:[%s2859 + $0x28] sm:$0xff]
      %v2866 = vld [vmem:[%s2859 + $0x30] sm:$0xff]
      %v2867 = vld [vmem:[%s2859 + $0x38] sm:$0xff]
      %2876 = vrot.lane.b32.xlu0 %v2860, 52
      %v2877 = vpop.permute.xlu0 %2876
      %2878 = vrot.lane.b32.xlu0 %v2861, 52
      %v2879 = vpop.permute.xlu0 %2878
      %2880 = vrot.lane.b32.xlu0 %v2862, 52
      %v2881 = vpop.permute.xlu0 %2880
      %2882 = vrot.lane.b32.xlu0 %v2863, 52
      %v2883 = vpop.permute.xlu0 %2882
      %2884 = vrot.lane.b32.xlu0 %v2864, 52
      %v2885 = vpop.permute.xlu0 %2884
      %2886 = vrot.lane.b32.xlu0 %v2865, 52
      %v2887 = vpop.permute.xlu0 %2886
      %2888 = vrot.lane.b32.xlu0 %v2866, 52
      %v2889 = vpop.permute.xlu0 %2888
      %2890 = vrot.lane.b32.xlu0 %v2867, 52
      %v2891 = vpop.permute.xlu0 %2890
      %vm2900 = vcmask 433568
      %2901 = vst.msk [vmem:[#allocation2] sm:$0xff] %vm2900, %v2877
      %2902 = vst.msk [vmem:[#allocation2 + $0x8] sm:$0xff] %vm2900, %v2879
      %2903 = vst.msk [vmem:[#allocation2 + $0x10] sm:$0xff] %vm2900, %v2881
      %2904 = vst.msk [vmem:[#allocation2 + $0x18] sm:$0xff] %vm2900, %v2883
      %2905 = vst.msk [vmem:[#allocation2 + $0x20] sm:$0xff] %vm2900, %v2885
      %2906 = vst.msk [vmem:[#allocation2 + $0x28] sm:$0xff] %vm2900, %v2887
      %2907 = vst.msk [vmem:[#allocation2 + $0x30] sm:$0xff] %vm2900, %v2889
      %2908 = vst.msk [vmem:[#allocation2 + $0x38] sm:$0xff] %vm2900, %v2891
      %s2909 = sadd.s32 %s238, 53
      %s2910 = scalar_lea.vmem %s221, %s2909
      %v2911 = vld [vmem:[%s2910] sm:$0xff]
      %v2912 = vld [vmem:[%s2910 + $0x8] sm:$0xff]
      %v2913 = vld [vmem:[%s2910 + $0x10] sm:$0xff]
      %v2914 = vld [vmem:[%s2910 + $0x18] sm:$0xff]
      %v2915 = vld [vmem:[%s2910 + $0x20] sm:$0xff]
      %v2916 = vld [vmem:[%s2910 + $0x28] sm:$0xff]
      %v2917 = vld [vmem:[%s2910 + $0x30] sm:$0xff]
      %v2918 = vld [vmem:[%s2910 + $0x38] sm:$0xff]
      %2927 = vrot.lane.b32.xlu0 %v2911, 53
      %v2928 = vpop.permute.xlu0 %2927
      %2929 = vrot.lane.b32.xlu0 %v2912, 53
      %v2930 = vpop.permute.xlu0 %2929
      %2931 = vrot.lane.b32.xlu0 %v2913, 53
      %v2932 = vpop.permute.xlu0 %2931
      %2933 = vrot.lane.b32.xlu0 %v2914, 53
      %v2934 = vpop.permute.xlu0 %2933
      %2935 = vrot.lane.b32.xlu0 %v2915, 53
      %v2936 = vpop.permute.xlu0 %2935
      %2937 = vrot.lane.b32.xlu0 %v2916, 53
      %v2938 = vpop.permute.xlu0 %2937
      %2939 = vrot.lane.b32.xlu0 %v2917, 53
      %v2940 = vpop.permute.xlu0 %2939
      %2941 = vrot.lane.b32.xlu0 %v2918, 53
      %v2942 = vpop.permute.xlu0 %2941
      %vm2951 = vcmask 441768
      %2952 = vst.msk [vmem:[#allocation2] sm:$0xff] %vm2951, %v2928
      %2953 = vst.msk [vmem:[#allocation2 + $0x8] sm:$0xff] %vm2951, %v2930
      %2954 = vst.msk [vmem:[#allocation2 + $0x10] sm:$0xff] %vm2951, %v2932
      %2955 = vst.msk [vmem:[#allocation2 + $0x18] sm:$0xff] %vm2951, %v2934
      %2956 = vst.msk [vmem:[#allocation2 + $0x20] sm:$0xff] %vm2951, %v2936
      %2957 = vst.msk [vmem:[#allocation2 + $0x28] sm:$0xff] %vm2951, %v2938
      %2958 = vst.msk [vmem:[#allocation2 + $0x30] sm:$0xff] %vm2951, %v2940
      %2959 = vst.msk [vmem:[#allocation2 + $0x38] sm:$0xff] %vm2951, %v2942
      %s2960 = sadd.s32 %s238, 54
      %s2961 = scalar_lea.vmem %s221, %s2960
      %v2962 = vld [vmem:[%s2961] sm:$0xff]
      %v2963 = vld [vmem:[%s2961 + $0x8] sm:$0xff]
      %v2964 = vld [vmem:[%s2961 + $0x10] sm:$0xff]
      %v2965 = vld [vmem:[%s2961 + $0x18] sm:$0xff]
      %v2966 = vld [vmem:[%s2961 + $0x20] sm:$0xff]
      %v2967 = vld [vmem:[%s2961 + $0x28] sm:$0xff]
      %v2968 = vld [vmem:[%s2961 + $0x30] sm:$0xff]
      %v2969 = vld [vmem:[%s2961 + $0x38] sm:$0xff]
      %2978 = vrot.lane.b32.xlu0 %v2962, 54
      %v2979 = vpop.permute.xlu0 %2978
      %2980 = vrot.lane.b32.xlu0 %v2963, 54
      %v2981 = vpop.permute.xlu0 %2980
      %2982 = vrot.lane.b32.xlu0 %v2964, 54
      %v2983 = vpop.permute.xlu0 %2982
      %2984 = vrot.lane.b32.xlu0 %v2965, 54
      %v2985 = vpop.permute.xlu0 %2984
      %2986 = vrot.lane.b32.xlu0 %v2966, 54
      %v2987 = vpop.permute.xlu0 %2986
      %2988 = vrot.lane.b32.xlu0 %v2967, 54
      %v2989 = vpop.permute.xlu0 %2988
      %2990 = vrot.lane.b32.xlu0 %v2968, 54
      %v2991 = vpop.permute.xlu0 %2990
      %2992 = vrot.lane.b32.xlu0 %v2969, 54
      %v2993 = vpop.permute.xlu0 %2992
      %vm3002 = vcmask 449968
      %3003 = vst.msk [vmem:[#allocation2] sm:$0xff] %vm3002, %v2979
      %3004 = vst.msk [vmem:[#allocation2 + $0x8] sm:$0xff] %vm3002, %v2981
      %3005 = vst.msk [vmem:[#allocation2 + $0x10] sm:$0xff] %vm3002, %v2983
      %3006 = vst.msk [vmem:[#allocation2 + $0x18] sm:$0xff] %vm3002, %v2985
      %3007 = vst.msk [vmem:[#allocation2 + $0x20] sm:$0xff] %vm3002, %v2987
      %3008 = vst.msk [vmem:[#allocation2 + $0x28] sm:$0xff] %vm3002, %v2989
      %3009 = vst.msk [vmem:[#allocation2 + $0x30] sm:$0xff] %vm3002, %v2991
      %3010 = vst.msk [vmem:[#allocation2 + $0x38] sm:$0xff] %vm3002, %v2993
      %v3011 = vld [vmem:[#allocation2] sm:$0xff]
      %v3012 = vld [vmem:[#allocation2 + $0x8] sm:$0xff]
      %v3013 = vld [vmem:[#allocation2 + $0x10] sm:$0xff]
      %v3014 = vld [vmem:[#allocation2 + $0x18] sm:$0xff]
      %v3015 = vld [vmem:[#allocation2 + $0x20] sm:$0xff]
      %v3016 = vld [vmem:[#allocation2 + $0x28] sm:$0xff]
      %v3017 = vld [vmem:[#allocation2 + $0x30] sm:$0xff]
      %v3018 = vld [vmem:[#allocation2 + $0x38] sm:$0xff]
      %v3019 = vld [vmem:[%s1] sm:$0xff]
      %v3020 = vld [vmem:[%s1 + $0x8] sm:$0xff]
      %v3021 = vld [vmem:[%s1 + $0x10] sm:$0xff]
      %v3022 = vld [vmem:[%s1 + $0x18] sm:$0xff]
      %v3023 = vld [vmem:[%s1 + $0x20] sm:$0xff]
      %v3024 = vld [vmem:[%s1 + $0x28] sm:$0xff]
      %v3025 = vld [vmem:[%s1 + $0x30] sm:$0x7f]
      %vm3026 = vcmask 449536
      %v3028 = vsel %vm3026, %v3011, 0
      %v3031 = vsel %vm3026, %v3012, 0
      %v3034 = vsel %vm3026, %v3013, 0
      %v3037 = vsel %vm3026, %v3014, 0
      %v3040 = vsel %vm3026, %v3015, 0
      %v3043 = vsel %vm3026, %v3016, 0
      %v3046 = vsel %vm3026, %v3017, 0
      %v3049 = vsel %vm3026, %v3018, 0
      %vm3051 = vcmask 1046528
      %v3053 = vsel %vm3051, %v3025, 0
      %3055 = vmatprep.subr.mxu0 0.0
      %3056 = vmatpush1.msra.mxu0 %v3019
      %3057 = vmatprep.subr.mxu0 0.0
      %3058 = vmatpush1.msra.mxu0 %v3020
      %3059 = vmatprep.subr.mxu0 0.0
      %3060 = vmatpush1.msra.mxu0 %v3021
      %3061 = vmatprep.subr.mxu0 0.0
      %3062 = vmatpush1.msra.mxu0 %v3022
      %3063 = vmatprep.subr.mxu0 0.0
      %3064 = vmatpush1.msra.mxu0 %v3023
      %3065 = vmatprep.subr.mxu0 0.0
      %3066 = vmatpush1.msra.mxu0 %v3024
      %3067 = vmatprep.subr.mxu0 0.0
      %3068 = vmatpush1.msra.mxu0 %v3053
      %3069 = vmatprep.subr.mxu0 0.0
      %3070 = vmatpush1.msra.mxu0 0.0
      %3071 = vmatprep.subr.mxu0 0.0
      %3072 = vmatpush1.msra.mxu0 0.0
      %3073 = vmatprep.subr.mxu0 0.0
      %3074 = vmatpush1.msra.mxu0 0.0
      %3075 = vmatprep.subr.mxu0 0.0
      %3076 = vmatpush1.msra.mxu0 0.0
      %3077 = vmatprep.subr.mxu0 0.0
      %3078 = vmatpush1.msra.mxu0 0.0
      %3079 = vmatprep.subr.mxu0 0.0
      %3080 = vmatpush1.msra.mxu0 0.0
      %3081 = vmatprep.subr.mxu0 0.0
      %3082 = vmatpush1.msra.mxu0 0.0
      %3083 = vmatprep.subr.mxu0 0.0
      %3084 = vmatpush1.msra.mxu0 0.0
      %3085 = vmatprep.subr.mxu0 0.0
      %3086 = vmatpush1.msra.mxu0 0.0
      %3087 = vmatprep.subr.mxu0 0.0
      %3088 = vmatpush1.msra.mxu0 0.0
      %3089 = vmatprep.subr.mxu0 0.0
      %3090 = vmatpush1.msra.mxu0 0.0
      %3091 = vmatprep.subr.mxu0 0.0
      %3092 = vmatpush1.msra.mxu0 0.0
      %3093 = vmatprep.subr.mxu0 0.0
      %3094 = vmatpush1.msra.mxu0 0.0
      %3095 = vmatprep.subr.mxu0 0.0
      %3096 = vmatpush1.msra.mxu0 0.0
      %3097 = vmatprep.subr.mxu0 0.0
      %3098 = vmatpush1.msra.mxu0 0.0
      %3099 = vmatprep.subr.mxu0 0.0
      %3100 = vmatpush1.msra.mxu0 0.0
      %3101 = vmatprep.subr.mxu0 0.0
      %3102 = vmatpush1.msra.mxu0 0.0
      %3103 = vmatprep.subr.mxu0 0.0
      %3104 = vmatpush1.msra.mxu0 0.0
      %3105 = vmatprep.subr.mxu0 0.0
      %3106 = vmatpush1.msra.mxu0 0.0
      %3107 = vmatprep.subr.mxu0 0.0
      %3108 = vmatpush1.msra.mxu0 0.0
      %3109 = vmatprep.subr.mxu0 0.0
      %3110 = vmatpush1.msra.mxu0 0.0
      %3111 = vmatprep.subr.mxu0 0.0
      %3112 = vmatpush1.msra.mxu0 0.0
      %3113 = vmatprep.subr.mxu0 0.0
      %3114 = vmatpush1.msra.mxu0 0.0
      %3115 = vmatprep.subr.mxu0 0.0
      %3116 = vmatpush1.msra.mxu0 0.0
      %3117 = vmatprep.subr.mxu0 0.0
      %3118 = vmatpush1.msra.mxu0 0.0
      %3119 = vmatprep.mubr.f32.mxu0 0.0
      %3120 = vmatmul.mubr.f32.gmra.mrb[0].mxu0 %v3028
      %v3121 = vpop.f32.mrb[0].mxu0
      %v3122 = vadd.f32 0.0, %v3121
      %v3123 = vpop.f32.mrb[0].mxu0
      %3124 = vmatprep.mubr.f32.mxu0 0.0
      %3125 = vmatmul.mubr.f32.gmra.mrb[0].mxu0 %v3031
      %v3126 = vpop.f32.mrb[0].mxu0
      %v3127 = vadd.f32 0.0, %v3126
      %v3128 = vpop.f32.mrb[0].mxu0
      %3129 = vmatprep.mubr.f32.mxu0 0.0
      %3130 = vmatmul.mubr.f32.gmra.mrb[0].mxu0 %v3034
      %v3131 = vpop.f32.mrb[0].mxu0
      %v3132 = vadd.f32 0.0, %v3131
      %v3133 = vpop.f32.mrb[0].mxu0
      %3134 = vmatprep.mubr.f32.mxu0 0.0
      %3135 = vmatmul.mubr.f32.gmra.mrb[0].mxu0 %v3037
      %v3136 = vpop.f32.mrb[0].mxu0
      %v3137 = vadd.f32 0.0, %v3136
      %v3138 = vpop.f32.mrb[0].mxu0
      %3139 = vmatprep.mubr.f32.mxu0 0.0
      %3140 = vmatmul.mubr.f32.gmra.mrb[0].mxu0 %v3040
      %v3141 = vpop.f32.mrb[0].mxu0
      %v3142 = vadd.f32 0.0, %v3141
      %v3143 = vpop.f32.mrb[0].mxu0
      %3144 = vmatprep.mubr.f32.mxu0 0.0
      %3145 = vmatmul.mubr.f32.gmra.mrb[0].mxu0 %v3043
      %v3146 = vpop.f32.mrb[0].mxu0
      %v3147 = vadd.f32 0.0, %v3146
      %v3148 = vpop.f32.mrb[0].mxu0
      %3149 = vmatprep.mubr.f32.mxu0 0.0
      %3150 = vmatmul.mubr.f32.gmra.mrb[0].mxu0 %v3046
      %v3151 = vpop.f32.mrb[0].mxu0
      %v3152 = vadd.f32 0.0, %v3151
      %v3153 = vpop.f32.mrb[0].mxu0
      %3154 = vmatprep.mubr.f32.mxu0 0.0
      %3155 = vmatmul.mubr.f32.gmra.mrb[0].mxu0 %v3049
      %v3156 = vpop.f32.mrb[0].mxu0
      %v3157 = vadd.f32 0.0, %v3156
      %v3158 = vpop.f32.mrb[0].mxu0
      %3159 = vdwg.mxu0
      %v3160 = vlaneseq
      %v3161 = vshrl.u32 %v3160, 7
      %v3162 = vadd.s32 %v3161, 8
      %v3163 = vadd.s32 %v3161, 16
      %v3164 = vadd.s32 %v3161, 24
      %v3165 = vadd.s32 %v3161, 32
      %v3166 = vadd.s32 %v3161, 40
      %v3167 = vadd.s32 %v3161, 48
      %v3168 = vadd.s32 %v3161, 56
      %s3169 = ssub.s32 64, %s238
      %v3170 = vstv %s3169
      %vm3171 = vcmp.lt.s32.totalorder %v3161, %v3170
      %vm3172 = vcmp.lt.s32.totalorder %v3162, %v3170
      %vm3173 = vcmp.lt.s32.totalorder %v3163, %v3170
      %vm3174 = vcmp.lt.s32.totalorder %v3164, %v3170
      %vm3175 = vcmp.lt.s32.totalorder %v3165, %v3170
      %vm3176 = vcmp.lt.s32.totalorder %v3166, %v3170
      %vm3177 = vcmp.lt.s32.totalorder %v3167, %v3170
      %vm3178 = vcmp.lt.s32.totalorder %v3168, %v3170
      %v3179 = vsel %vm3171, 1, 0
      %v3180 = vsel %vm3172, 1, 0
      %v3181 = vsel %vm3173, 1, 0
      %v3182 = vsel %vm3174, 1, 0
      %v3183 = vsel %vm3175, 1, 0
      %v3184 = vsel %vm3176, 1, 0
      %v3185 = vsel %vm3177, 1, 0
      %v3186 = vsel %vm3178, 1, 0
      %vm3187 = vcmp.eq.s32.totalorder %v3179, 1
      %vm3188 = vcmp.eq.s32.totalorder %v3180, 1
      %vm3189 = vcmp.eq.s32.totalorder %v3181, 1
      %vm3190 = vcmp.eq.s32.totalorder %v3182, 1
      %vm3191 = vcmp.eq.s32.totalorder %v3183, 1
      %vm3192 = vcmp.eq.s32.totalorder %v3184, 1
      %vm3193 = vcmp.eq.s32.totalorder %v3185, 1
      %vm3194 = vcmp.eq.s32.totalorder %v3186, 1
      %v3195 = vsel %vm3187, %v3122, 0.0
      %v3196 = vsel %vm3188, %v3127, 0.0
      %v3197 = vsel %vm3189, %v3132, 0.0
      %v3198 = vsel %vm3190, %v3137, 0.0
      %v3199 = vsel %vm3191, %v3142, 0.0
      %v3200 = vsel %vm3192, %v3147, 0.0
      %v3201 = vsel %vm3193, %v3152, 0.0
      %v3202 = vsel %vm3194, %v3157, 0.0
      %p3203 = scmp.eq.s32.totalorder %s21, 0
      // Predicated region
      $region29: #{_cbl_block_impl.2} parent=27 // pred_check
        %p3204 = pneg %p3203
      $region30: #{_cbl_block_impl.2} parent=27 // pred_check_branch
        %3206 = sbr.rel (%p3204) target = $region32
      $region31: #{_cbl_block_impl.2} parent=27 // pred_region
        %3207 = vst [vmem:[%s234] sm:$0x1] 0.0
        %3208 = vst [vmem:[%s237] sm:$0x1] 0.0
      $region32: #{_cbl_block_impl.2} parent=27 // pred_fallthru
        _
      %v3209 = vld [vmem:[%s234] sm:$0x1]
      %v3210 = vadd.f32 %v3195, %v3196
      %v3211 = vadd.f32 %v3210, %v3197
      %v3212 = vadd.f32 %v3211, %v3198
      %v3213 = vadd.f32 %v3212, %v3199
      %v3214 = vadd.f32 %v3213, %v3200
      %v3215 = vadd.f32 %v3214, %v3201
      %v3216 = vadd.f32 %v3215, %v3202
      %v3217 = vrot.slane %v3216, 4
      %v3218 = vadd.f32 %v3216, %v3217
      %v3219 = vrot.slane %v3218, 2
      %v3220 = vadd.f32 %v3218, %v3219
      %v3221 = vrot.slane %v3220, 1
      %v3222 = vadd.f32 %v3220, %v3221
      %v3223 = vadd.f32 %v3209, %v3222
      %3224 = vst [vmem:[%s234] sm:$0x1] %v3223
      %v3225 = vld [vmem:[%s237] sm:$0x1]
      %v3226 = vmul.f32 %v3195, %v3195
      %v3227 = vmul.f32 %v3196, %v3196
      %v3228 = vmul.f32 %v3197, %v3197
      %v3229 = vmul.f32 %v3198, %v3198
      %v3230 = vmul.f32 %v3199, %v3199
      %v3231 = vmul.f32 %v3200, %v3200
      %v3232 = vmul.f32 %v3201, %v3201
      %v3233 = vmul.f32 %v3202, %v3202
      %v3234 = vadd.f32 %v3226, %v3227
      %v3235 = vadd.f32 %v3234, %v3228
      %v3236 = vadd.f32 %v3235, %v3229
      %v3237 = vadd.f32 %v3236, %v3230
      %v3238 = vadd.f32 %v3237, %v3231
      %v3239 = vadd.f32 %v3238, %v3232
      %v3240 = vadd.f32 %v3239, %v3233
      %v3241 = vrot.slane %v3240, 4
      %v3242 = vadd.f32 %v3240, %v3241
      %v3243 = vrot.slane %v3242, 2
      %v3244 = vadd.f32 %v3242, %v3243
      %v3245 = vrot.slane %v3244, 1
      %v3246 = vadd.f32 %v3244, %v3245
      %v3247 = vadd.f32 %v3225, %v3246
      %3248 = vst [vmem:[%s237] sm:$0x1] %v3247
      %3249 = vst [vmem:[%s230] sm:$0xff] %v3122
      %3250 = vst [vmem:[%s230 + $0x8] sm:$0xff] %v3127
      %3251 = vst [vmem:[%s230 + $0x10] sm:$0xff] %v3132
      %3252 = vst [vmem:[%s230 + $0x18] sm:$0xff] %v3137
      %3253 = vst [vmem:[%s230 + $0x20] sm:$0xff] %v3142
      %3254 = vst [vmem:[%s230 + $0x28] sm:$0xff] %v3147
      %3255 = vst [vmem:[%s230 + $0x30] sm:$0xff] %v3152
      %3256 = vst [vmem:[%s230 + $0x38] sm:$0xff] %v3157
      %s3257 = smul.u32 8, %s21
      %p3258 = scmp.lt.s32.totalorder %s20, 1
      %s3259 = scalar_select %p3258, %s20, 1
      %p3260 = scmp.lt.s32.totalorder %s3257, 7
      %s3261 = scalar_select %p3260, %s3257, 7
      %s3262 = smul.addr %s3259, 8
      %s3263 = sadd.s32 %s3261, %s3262
      %s3264 = smul.addr %s3263, 8
      %s3265 = scalar_lea.vmem %s2, %s3264
      %p3266 = scmp.lt.s32.totalorder %s20, 1
      %s3267 = scalar_select %p3266, %s20, 1
      %s3268 = scalar_lea.vmem %s3, %s3267
      %p3269 = scmp.lt.s32.totalorder %s20, 1
      %s3270 = scalar_select %p3269, %s20, 1
      %s3271 = scalar_lea.vmem %s4, %s3270
      // Predicated region
      $region33: #{_cbl_block_impl.2} parent=27 // pred_check
        %p3272 = pneg %p95
      $region34: #{_cbl_block_impl.2} parent=27 // pred_check_branch
        %3274 = sbr.rel (%p3272) target = $region36
      $region35: #{_cbl_block_impl.2} parent=27 // pred_region
        %s3275 = smul.u32 8, %s21
      $region36: #{_cbl_block_impl.2} parent=27 // pred_fallthru
        _
      // Predicated region
      $region37: #{_cbl_block_impl.2} parent=27 // pred_check
        %p3276 = pneg %p121
      $region38: #{_cbl_block_impl.2} parent=27 // pred_check_branch
        %3278 = sbr.rel (%p3276) target = $region40
      $region39: #{_cbl_block_impl.2} parent=27 // pred_region
        _
      $region40: #{_cbl_block_impl.2} parent=27 // pred_fallthru
        _
      // Predicated region
      $region41: #{_cbl_block_impl.2} parent=27 // pred_check
        %p3279 = pneg %p147
      $region42: #{_cbl_block_impl.2} parent=27 // pred_check_branch
        %3281 = sbr.rel (%p3279) target = $region44
      $region43: #{_cbl_block_impl.2} parent=27 // pred_region
        _
      $region44: #{_cbl_block_impl.2} parent=27 // pred_fallthru
        _
    $region28: #{_cbl_block_impl.2} parent=5 // pred_fallthru
      _
    %p3282 = scmp.le.s32.totalorder 2, %s11
    // Predicated region
    $region45: #{_cbl_block_impl.2} parent=5 // pred_check
      %p3283 = pneg %p3282
    $region46: #{_cbl_block_impl.2} parent=5 // pred_check_branch
      %3285 = sbr.rel (%p3283) target = $region48
    $region47: #{_cbl_block_impl.2} parent=5 // pred_region
      %s3286 = ssub.s32 %s11, 2
      // Predicated region
      $region49: #{_cbl_block_impl.2} parent=47 // pred_check
        %p3287 = pneg %p101
      $region50: #{_cbl_block_impl.2} parent=47 // pred_check_branch
        %3289 = sbr.rel (%p3287) target = $region52
      $region51: #{_cbl_block_impl.2} parent=47 // pred_region
        %s3290 = smul.u32 8, %s23
        %p3291 = scmp.lt.s32.totalorder %s22, 1
        %s3292 = scalar_select %p3291, %s22, 1
        %p3293 = scmp.lt.s32.totalorder %s3290, 7
        %s3294 = scalar_select %p3293, %s3290, 7
        %s3295 = smul.addr %s3292, 8
        %s3296 = sadd.s32 %s3294, %s3295
        %s3297 = smul.addr %s3296, 8
        %s3298 = scalar_lea.vmem %s2, %s3297
      $region52: #{_cbl_block_impl.2} parent=47 // pred_fallthru
        _
      // Predicated region
      $region53: #{_cbl_block_impl.2} parent=47 // pred_check
        %p3299 = pneg %p127
      $region54: #{_cbl_block_impl.2} parent=47 // pred_check_branch
        %3301 = sbr.rel (%p3299) target = $region56
      $region55: #{_cbl_block_impl.2} parent=47 // pred_region
        %p3302 = scmp.lt.s32.totalorder %s22, 1
        %s3303 = scalar_select %p3302, %s22, 1
        %s3304 = scalar_lea.vmem %s3, %s3303
      $region56: #{_cbl_block_impl.2} parent=47 // pred_fallthru
        _
      // Predicated region
      $region57: #{_cbl_block_impl.2} parent=47 // pred_check
        %p3305 = pneg %p153
      $region58: #{_cbl_block_impl.2} parent=47 // pred_check_branch
        %3307 = sbr.rel (%p3305) target = $region60
      $region59: #{_cbl_block_impl.2} parent=47 // pred_region
        %p3308 = scmp.lt.s32.totalorder %s22, 1
        %s3309 = scalar_select %p3308, %s22, 1
        %s3310 = scalar_lea.vmem %s4, %s3309
      $region60: #{_cbl_block_impl.2} parent=47 // pred_fallthru
        _
    $region48: #{_cbl_block_impl.2} parent=5 // pred_fallthru
      _
  $region6: #{_cbl_block_impl.2} parent=0 // loop_footer
    %s15 = sadd.s32 1, %s11
  $region7: #{_cbl_block_impl.2} parent=0 // loop_footer_branch
    %10 = sbr.rel target = $region3
  $region8: #{_cbl_block_impl.2} parent=0 // loop_exit
    _

</llo_original>
